<compile_context>
chip_gen: v6e
topology: v6e:2x2x1
jax: 0.10.0
libtpu: 0.0.40
codegen_flags: <defaults>
</compile_context>

<pallas_src>
import functools

import jax
import jax.numpy as jnp
from jax import lax
from jax.experimental import pallas as pl
from jax.experimental.pallas import tpu as pltpu

FEAT_DIM = 512   # PointNetfeat output channel (x = 1, outchannel = 512)


# ----------------------------- parameter setup ------------------------------

def _bn_fold(gamma, beta, mean, var, eps=1e-5):
    scale = gamma / jnp.sqrt(var + eps)
    shift = beta - mean * scale
    return scale.reshape(1, -1).astype(jnp.float32), shift.reshape(1, -1).astype(jnp.float32)


def make_params(key, input_dim, channels):
    """Raw (un-folded) parameters mirroring the PyTorch module's state."""
    keys = iter(jax.random.split(key, 64))

    def lin(cin, cout):                     # kaiming-normal style, stored (Cin, Cout)
        std = (2.0 / cin) ** 0.5
        return (std * jax.random.normal(next(keys), (cin, cout))).astype(jnp.float32)

    def bias(c):                            # zeros_, matching PointNet.init_weights
        return jnp.zeros((1, c), jnp.float32)

    def bn(c):                              # deterministic non-trivial eval-mode BN stats
        gamma = 1.0 + 0.1 * jax.random.normal(next(keys), (c,))
        beta = 0.1 * jax.random.normal(next(keys), (c,))
        mean = 0.1 * jax.random.normal(next(keys), (c,))
        var = 1.0 + 0.1 * jnp.abs(jax.random.normal(next(keys), (c,)))
        return _bn_fold(gamma, beta, mean, var)

    p = {}
    p["pre_s"], p["pre_t"] = bn(input_dim)

    dims = [input_dim, 64, 128, 256, FEAT_DIM]
    for i in range(4):
        p[f"w{i+1}"] = lin(dims[i], dims[i + 1])
        p[f"b{i+1}"] = bias(dims[i + 1])
        p[f"s{i+1}"], p[f"t{i+1}"] = bn(dims[i + 1])

    p["fc1w"], p["fc1b"] = lin(FEAT_DIM, 256), bias(256)
    p["bn1s"], p["bn1t"] = bn(256)
    p["fc2w"], p["fc2b"] = lin(256, channels), bias(channels)
    p["bn2s"], p["bn2t"] = bn(channels)

    p["ce1w"], p["ce1b"], p["ce2w"] = lin(channels, 256), bias(256), lin(256, 3)
    p["s1w"], p["s1b"], p["s2w"] = lin(channels, 256), bias(256), lin(256, 3)
    p["hr1w"], p["hr1b"], p["hr2w"] = lin(channels, 256), bias(256), lin(256, 1)
    return p


def fold_params(raw, weight_dtype=jnp.bfloat16):
    """Fold BN / pre_bn into the conv/fc weights, concatenate the three
    regression branches, and cast matmul operands to bf16 (biases stay f32)."""
    w = lambda a: a.astype(weight_dtype)
    f = lambda a: a.astype(jnp.float32)

    p = {}
    # pre_bn + conv1 + bn1:  relu(((x*pre_s + pre_t) @ W1 + b1) * s1 + t1)
    w1 = raw["pre_s"].reshape(-1, 1) * raw["w1"]
    b1 = raw["pre_t"] @ raw["w1"] + raw["b1"]
    p["w1"], p["b1"] = w(w1 * raw["s1"]), f(b1 * raw["s1"] + raw["t1"])
    for i in (2, 3, 4):
        p[f"w{i}"] = w(raw[f"w{i}"] * raw[f"s{i}"])
        p[f"b{i}"] = f(raw[f"b{i}"] * raw[f"s{i}"] + raw[f"t{i}"])

    p["fc1w"] = w(raw["fc1w"] * raw["bn1s"])
    p["fc1b"] = f(raw["fc1b"] * raw["bn1s"] + raw["bn1t"])
    p["fc2w"] = w(raw["fc2w"] * raw["bn2s"])
    p["fc2b"] = f(raw["fc2b"] * raw["bn2s"] + raw["bn2t"])

    # fc_ce1 / fc_s1 / fc_hr1 -> one (channels, 768) matmul
    p["br1w"] = w(jnp.concatenate([raw["ce1w"], raw["s1w"], raw["hr1w"]], axis=1))
    p["br1b"] = f(jnp.concatenate([raw["ce1b"], raw["s1b"], raw["hr1b"]], axis=1))
    # fc_ce2 / fc_s2 / fc_hr2 -> one block-diagonal (768, 7) matmul (no bias)
    br2 = jnp.zeros((768, 7), jnp.float32)
    br2 = br2.at[0:256, 0:3].set(raw["ce2w"])
    br2 = br2.at[256:512, 3:6].set(raw["s2w"])
    br2 = br2.at[512:768, 6:7].set(raw["hr2w"])
    p["br2w"] = w(br2)
    return p


# ------------------------------- kernel body ---------------------------------

def pointnet_kernel(x_ref,
                    w1, b1, w2, b2, w3, b3, w4, b4,
                    fc1w, fc1b, fc2w, fc2b,
                    br1w, br1b, br2w,
                    boxes_ref, feat_ref, xori_ref,
                    acc_ref,
                    *, n_points):
    n = pl.program_id(1)
    tn = x_ref.shape[1]
    f32 = jnp.float32
    bf16 = jnp.bfloat16

    @pl.when(n == 0)
    def _():
        acc_ref[...] = jnp.full(acc_ref.shape, -jnp.inf, dtype=acc_ref.dtype)

    x = x_ref[0]                                                        # (TN, Cin) bf16
    h = jnp.dot(x, w1[...], preferred_element_type=f32) + b1[...]
    h = jnp.maximum(h, 0.0).astype(bf16)
    h = jnp.dot(h, w2[...], preferred_element_type=f32) + b2[...]
    h = jnp.maximum(h, 0.0).astype(bf16)
    h = jnp.dot(h, w3[...], preferred_element_type=f32) + b3[...]
    h = jnp.maximum(h, 0.0).astype(bf16)
    x_ori = jnp.dot(h, w4[...], preferred_element_type=f32) + b4[...]   # (TN, 512), no relu

    # TODO(synk): emit feat_traj in bf16 if downstream tolerates it — this store
    # is the dominant HBM writeback of the whole kernel.
    xori_ref[0] = x_ori.astype(xori_ref.dtype)

    # Masked max over this tile's valid rows, accumulated across the N grid axis.
    row = n * tn + lax.broadcasted_iota(jnp.int32, (tn, 1), 0)
    masked = jnp.where(row < n_points, x_ori, -jnp.inf)
    acc_ref[...] = jnp.maximum(acc_ref[...], jnp.max(masked, axis=0, keepdims=True))

    # Fused head: runs once per batch element, on the last N tile.
    @pl.when(n == pl.num_programs(1) - 1)
    def _():
        pooled = acc_ref[...].astype(bf16)                              # (1, 512)
        h1 = jnp.dot(pooled, fc1w[...], preferred_element_type=f32) + fc1b[...]
        h1 = jnp.maximum(h1, 0.0).astype(bf16)
        feat = jnp.maximum(
            jnp.dot(h1, fc2w[...], preferred_element_type=f32) + fc2b[...], 0.0)
        feat_ref[0] = feat.astype(feat_ref.dtype)                       # (1, channels)

        hb = jnp.maximum(
            jnp.dot(feat.astype(bf16), br1w[...], preferred_element_type=f32)
            + br1b[...], 0.0)                                           # (1, 768)
        boxes = jnp.dot(hb.astype(bf16), br2w[...], preferred_element_type=f32)
        boxes_ref[0] = boxes.astype(boxes_ref.dtype)                    # (1, 7)


# ---------------------------------- wrapper -----------------------------------

def _round_up(v, m):
    return (v + m - 1) // m * m


@functools.partial(jax.jit, static_argnames=("tn",))
def pointnet_forward(x_bnc, params, tn=512):
    """x_bnc: (B, N, Cin) float32.  Returns (boxes (B, 7), feat (B, channels),
    feat_traj (B, N, 512)); feat_traj is the channels-last transpose of the
    PyTorch x_ori (B, 512, N)."""
    p = params
    B, N, cin = x_bnc.shape
    channels = p["fc2w"].shape[1]

    # Points tile: multiple of 16 (bf16 sublane tile); the default 512 keeps the
    # f32 (TN, 512) x_ori block at ~1 MiB so it is v7x (64 MiB VMEM) safe.
    # Sweep larger (2048-4096) on v5e/v6e if DMA-step overhead dominates.
    tn = min(tn, _round_up(N, 16))
    n_pad = _round_up(N, tn)
    num_tiles = n_pad // tn

    x_bf = x_bnc.astype(jnp.bfloat16)
    if n_pad != N:
        x_bf = jnp.pad(x_bf, ((0, 0), (0, n_pad - N), (0, 0)))

    weight_args = [p["w1"], p["b1"], p["w2"], p["b2"], p["w3"], p["b3"],
                   p["w4"], p["b4"],
                   p["fc1w"], p["fc1b"], p["fc2w"], p["fc2b"],
                   p["br1w"], p["br1b"], p["br2w"]]

    # Constant index map -> each weight is DMA'd into VMEM once per core and
    # never re-fetched across grid steps.
    const_spec = lambda a: pl.BlockSpec(a.shape, lambda b, n: (0, 0))

    boxes, feat, x_ori = pl.pallas_call(
        functools.partial(pointnet_kernel, n_points=N),
        out_shape=(jax.ShapeDtypeStruct((B, 1, 7), jnp.float32),
                   jax.ShapeDtypeStruct((B, 1, channels), jnp.float32),
                   jax.ShapeDtypeStruct((B, n_pad, FEAT_DIM), jnp.float32)),
        grid=(B, num_tiles),
        in_specs=[pl.BlockSpec((1, tn, cin), lambda b, n: (b, n, 0))]
                 + [const_spec(a) for a in weight_args],
        out_specs=(pl.BlockSpec((1, 1, 7), lambda b, n: (b, 0, 0)),
                   pl.BlockSpec((1, 1, channels), lambda b, n: (b, 0, 0)),
                   pl.BlockSpec((1, tn, FEAT_DIM), lambda b, n: (b, n, 0))),
        scratch_shapes=[pltpu.VMEM((1, FEAT_DIM), jnp.float32)],   # max-pool accumulator
        compiler_params=pltpu.CompilerParams(
            dimension_semantics=("parallel", "arbitrary")),
    )(x_bf, *weight_args)

    return boxes.reshape(B, 7), feat.reshape(B, channels), x_ori[:, :N, :]


# ------------------------------ pure-JAX reference ----------------------------

def pointnet_reference(x_bnc, p):
    """Reference mirroring the kernel numerics (bf16 matmul operands,
    f32 accumulation and f32 epilogues), using the same folded params."""
    bf = lambda a: a.astype(jnp.bfloat16)
    dot = lambda a, w: jnp.dot(bf(a), w, preferred_element_type=jnp.float32)
    relu = lambda v: jnp.maximum(v, 0.0)

    h = relu(dot(x_bnc, p["w1"]) + p["b1"])
    h = relu(dot(h, p["w2"]) + p["b2"])
    h = relu(dot(h, p["w3"]) + p["b3"])
    x_ori = dot(h, p["w4"]) + p["b4"]                    # (B, N, 512)
    pooled = jnp.max(x_ori, axis=1)                      # (B, 512)

    h = relu(dot(pooled, p["fc1w"]) + p["fc1b"])
    feat = relu(dot(h, p["fc2w"]) + p["fc2b"])
    boxes = dot(relu(dot(feat, p["br1w"]) + p["br1b"]), p["br2w"])
    return boxes, feat, x_ori


# ------------------------------------ main -------------------------------------

if __name__ == "__main__":
    B, N, INPUT_DIM = 2, 20, 4
    CHANNELS = 128   # model_cfg.TRANS_INPUT

    key = jax.random.PRNGKey(0)
    kx, kp = jax.random.split(key)
    x = jax.random.normal(kx, (B, N, INPUT_DIM), jnp.float32)   # (B, N, C) layout
    params = fold_params(make_params(kp, INPUT_DIM, CHANNELS))

    # tn=16 at this toy size exercises the multi-tile max reduction + padding mask
    boxes, feat, feat_traj = pointnet_forward(x, params, tn=16)
    jax.block_until_ready((boxes, feat, feat_traj))

    r_boxes, r_feat, r_traj = pointnet_reference(x, params)
    assert boxes.shape == (B, 7) and feat.shape == (B, CHANNELS)
    assert feat_traj.shape == (B, N, FEAT_DIM)
    assert jnp.allclose(boxes, r_boxes, rtol=2e-2, atol=2e-2)
    assert jnp.allclose(feat, r_feat, rtol=2e-2, atol=2e-2)
    assert jnp.allclose(feat_traj, r_traj, rtol=2e-2, atol=2e-2)

    print("KERNEL_OK")
</pallas_src>

<mosaic_0001>
module attributes {stable_mosaic.version = 11 : i64} {
  func.func @pointnet_kernel(%arg0: i32, %arg1: i32, %arg2: memref<1x16x4xbf16, #tpu.memory_space<vmem>>, %arg3: memref<4x64xbf16, #tpu.memory_space<vmem>>, %arg4: memref<1x64xf32, #tpu.memory_space<vmem>>, %arg5: memref<64x128xbf16, #tpu.memory_space<vmem>>, %arg6: memref<1x128xf32, #tpu.memory_space<vmem>>, %arg7: memref<128x256xbf16, #tpu.memory_space<vmem>>, %arg8: memref<1x256xf32, #tpu.memory_space<vmem>>, %arg9: memref<256x512xbf16, #tpu.memory_space<vmem>>, %arg10: memref<1x512xf32, #tpu.memory_space<vmem>>, %arg11: memref<512x256xbf16, #tpu.memory_space<vmem>>, %arg12: memref<1x256xf32, #tpu.memory_space<vmem>>, %arg13: memref<256x128xbf16, #tpu.memory_space<vmem>>, %arg14: memref<1x128xf32, #tpu.memory_space<vmem>>, %arg15: memref<128x768xbf16, #tpu.memory_space<vmem>>, %arg16: memref<1x768xf32, #tpu.memory_space<vmem>>, %arg17: memref<768x7xbf16, #tpu.memory_space<vmem>>, %arg18: memref<1x1x7xf32, #tpu.memory_space<vmem>>, %arg19: memref<1x1x128xf32, #tpu.memory_space<vmem>>, %arg20: memref<1x16x512xf32, #tpu.memory_space<vmem>>, %arg21: memref<1x512xf32, #tpu.memory_space<vmem>>) attributes {dimension_semantics = [#tpu.dimension_semantics<parallel>, #tpu.dimension_semantics<arbitrary>], iteration_bounds = array<i64: 2, 2>, scalar_prefetch = 0 : i64, scratch_operands = 1 : i64, tpu.core_type = #tpu.core_type<tc>, window_params = [{transform_indices = @transform_0, window_bounds = array<i64: 1, 16, 4>}, {pipeline_mode = #tpu.pipeline_mode<synchronous>, transform_indices = @transform_1, window_bounds = array<i64: 4, 64>}, {pipeline_mode = #tpu.pipeline_mode<synchronous>, transform_indices = @transform_2, window_bounds = array<i64: 1, 64>}, {pipeline_mode = #tpu.pipeline_mode<synchronous>, transform_indices = @transform_3, window_bounds = array<i64: 64, 128>}, {pipeline_mode = #tpu.pipeline_mode<synchronous>, transform_indices = @transform_4, window_bounds = array<i64: 1, 128>}, {pipeline_mode = #tpu.pipeline_mode<synchronous>, transform_indices = @transform_5, window_bounds = array<i64: 128, 256>}, {pipeline_mode = #tpu.pipeline_mode<synchronous>, transform_indices = @transform_6, window_bounds = array<i64: 1, 256>}, {pipeline_mode = #tpu.pipeline_mode<synchronous>, transform_indices = @transform_7, window_bounds = array<i64: 256, 512>}, {pipeline_mode = #tpu.pipeline_mode<synchronous>, transform_indices = @transform_8, window_bounds = array<i64: 1, 512>}, {pipeline_mode = #tpu.pipeline_mode<synchronous>, transform_indices = @transform_9, window_bounds = array<i64: 512, 256>}, {pipeline_mode = #tpu.pipeline_mode<synchronous>, transform_indices = @transform_10, window_bounds = array<i64: 1, 256>}, {pipeline_mode = #tpu.pipeline_mode<synchronous>, transform_indices = @transform_11, window_bounds = array<i64: 256, 128>}, {pipeline_mode = #tpu.pipeline_mode<synchronous>, transform_indices = @transform_12, window_bounds = array<i64: 1, 128>}, {pipeline_mode = #tpu.pipeline_mode<synchronous>, transform_indices = @transform_13, window_bounds = array<i64: 128, 768>}, {pipeline_mode = #tpu.pipeline_mode<synchronous>, transform_indices = @transform_14, window_bounds = array<i64: 1, 768>}, {pipeline_mode = #tpu.pipeline_mode<synchronous>, transform_indices = @transform_15, window_bounds = array<i64: 768, 7>}, {transform_indices = @transform_16, window_bounds = array<i64: 1, 1, 7>}, {transform_indices = @transform_17, window_bounds = array<i64: 1, 1, 128>}, {transform_indices = @transform_18, window_bounds = array<i64: 1, 16, 512>}]} {
    %c0_i32 = arith.constant 0 : i32
    %0 = arith.cmpi eq, %arg1, %c0_i32 : i32
    %1 = arith.extui %0 : i1 to i32
    %c0_i32_0 = arith.constant 0 : i32
    %2 = arith.cmpi ne, %1, %c0_i32_0 : i32
    scf.if %2 {
      %cst_35 = arith.constant 0xFF800000 : f32
      %55 = vector.broadcast %cst_35 : f32 to vector<1x512xf32>
      %c0_36 = arith.constant 0 : index
      %c0_37 = arith.constant 0 : index
      %56 = vector.load %arg21[%c0_36, %c0_37] : memref<1x512xf32, #tpu.memory_space<vmem>>, vector<1x512xf32>
      tpu.vector_store %arg21[%c0_36, %c0_37], %55 {strides = array<i32>} : memref<1x512xf32, #tpu.memory_space<vmem>>, vector<1x512xf32>,
    } else {
    }
    %c0 = arith.constant 0 : index
    %c0_1 = arith.constant 0 : index
    %c0_2 = arith.constant 0 : index
    %3 = vector.load %arg2[%c0, %c0_1, %c0_2] : memref<1x16x4xbf16, #tpu.memory_space<vmem>>, vector<1x16x4xbf16>
    %4 = vector.shape_cast %3 : vector<1x16x4xbf16> to vector<16x4xbf16>
    %c0_3 = arith.constant 0 : index
    %c0_4 = arith.constant 0 : index
    %5 = vector.load %arg3[%c0_3, %c0_4] : memref<4x64xbf16, #tpu.memory_space<vmem>>, vector<4x64xbf16>
    %cst = arith.constant dense<0.000000e+00> : vector<16x64xf32>
    %6 = tpu.matmul %4, %5, %cst {dimension_numbers = #tpu.dot_dimension_numbers<[1], [0], [0], [1], [0, 0, 1, 1], [], []>} : vector<16x4xbf16>, vector<4x64xbf16>, vector<16x64xf32> -> vector<16x64xf32>
    %c0_5 = arith.constant 0 : index
    %c0_6 = arith.constant 0 : index
    %7 = vector.load %arg4[%c0_5, %c0_6] : memref<1x64xf32, #tpu.memory_space<vmem>>, vector<1x64xf32>
    %8 = vector.broadcast %7 : vector<1x64xf32> to vector<16x64xf32>
    %9 = arith.addf %6, %8 : vector<16x64xf32>
    %cst_7 = arith.constant 0.000000e+00 : f32
    %10 = vector.broadcast %cst_7 : f32 to vector<16x64xf32>
    %11 = arith.maximumf %9, %10 : vector<16x64xf32>
    %12 = arith.truncf %11 : vector<16x64xf32> to vector<16x64xbf16>
    %c0_8 = arith.constant 0 : index
    %c0_9 = arith.constant 0 : index
    %13 = vector.load %arg5[%c0_8, %c0_9] : memref<64x128xbf16, #tpu.memory_space<vmem>>, vector<64x128xbf16>
    %cst_10 = arith.constant dense<0.000000e+00> : vector<16x128xf32>
    %14 = tpu.matmul %12, %13, %cst_10 {dimension_numbers = #tpu.dot_dimension_numbers<[1], [0], [0], [1], [0, 0, 1, 1], [], []>} : vector<16x64xbf16>, vector<64x128xbf16>, vector<16x128xf32> -> vector<16x128xf32>
    %c0_11 = arith.constant 0 : index
    %c0_12 = arith.constant 0 : index
    %15 = vector.load %arg6[%c0_11, %c0_12] : memref<1x128xf32, #tpu.memory_space<vmem>>, vector<1x128xf32>
    %16 = vector.broadcast %15 : vector<1x128xf32> to vector<16x128xf32>
    %17 = arith.addf %14, %16 : vector<16x128xf32>
    %cst_13 = arith.constant 0.000000e+00 : f32
    %18 = vector.broadcast %cst_13 : f32 to vector<16x128xf32>
    %19 = arith.maximumf %17, %18 : vector<16x128xf32>
    %20 = arith.truncf %19 : vector<16x128xf32> to vector<16x128xbf16>
    %c0_14 = arith.constant 0 : index
    %c0_15 = arith.constant 0 : index
    %21 = vector.load %arg7[%c0_14, %c0_15] : memref<128x256xbf16, #tpu.memory_space<vmem>>, vector<128x256xbf16>
    %cst_16 = arith.constant dense<0.000000e+00> : vector<16x256xf32>
    %22 = tpu.matmul %20, %21, %cst_16 {dimension_numbers = #tpu.dot_dimension_numbers<[1], [0], [0], [1], [0, 0, 1, 1], [], []>} : vector<16x128xbf16>, vector<128x256xbf16>, vector<16x256xf32> -> vector<16x256xf32>
    %c0_17 = arith.constant 0 : index
    %c0_18 = arith.constant 0 : index
    %23 = vector.load %arg8[%c0_17, %c0_18] : memref<1x256xf32, #tpu.memory_space<vmem>>, vector<1x256xf32>
    %24 = vector.broadcast %23 : vector<1x256xf32> to vector<16x256xf32>
    %25 = arith.addf %22, %24 : vector<16x256xf32>
    %cst_19 = arith.constant 0.000000e+00 : f32
    %26 = vector.broadcast %cst_19 : f32 to vector<16x256xf32>
    %27 = arith.maximumf %25, %26 : vector<16x256xf32>
    %28 = arith.truncf %27 : vector<16x256xf32> to vector<16x256xbf16>
    %c0_20 = arith.constant 0 : index
    %c0_21 = arith.constant 0 : index
    %29 = vector.load %arg9[%c0_20, %c0_21] : memref<256x512xbf16, #tpu.memory_space<vmem>>, vector<256x512xbf16>
    %cst_22 = arith.constant dense<0.000000e+00> : vector<16x512xf32>
    %30 = tpu.matmul %28, %29, %cst_22 {dimension_numbers = #tpu.dot_dimension_numbers<[1], [0], [0], [1], [0, 0, 1, 1], [], []>} : vector<16x256xbf16>, vector<256x512xbf16>, vector<16x512xf32> -> vector<16x512xf32>
    %c0_23 = arith.constant 0 : index
    %c0_24 = arith.constant 0 : index
    %31 = vector.load %arg10[%c0_23, %c0_24] : memref<1x512xf32, #tpu.memory_space<vmem>>, vector<1x512xf32>
    %32 = vector.broadcast %31 : vector<1x512xf32> to vector<16x512xf32>
    %33 = arith.addf %30, %32 : vector<16x512xf32>
    %c0_25 = arith.constant 0 : index
    %c0_26 = arith.constant 0 : index
    %c0_27 = arith.constant 0 : index
    %34 = vector.load %arg20[%c0_25, %c0_26, %c0_27] : memref<1x16x512xf32, #tpu.memory_space<vmem>>, vector<1x16x512xf32>
    %35 = vector.shape_cast %34 : vector<1x16x512xf32> to vector<16x512xf32>
    %36 = vector.shape_cast %33 : vector<16x512xf32> to vector<1x16x512xf32>
    tpu.vector_store %arg20[%c0_25, %c0_26, %c0_27], %36 {strides = array<i32>} : memref<1x16x512xf32, #tpu.memory_space<vmem>>, vector<1x16x512xf32>,
    %c16_i32 = arith.constant 16 : i32
    %37 = arith.muli %arg1, %c16_i32 : i32
    %38 = tpu.iota {dimensions = array<i32: 0>} : vector<16x1xi32>
    %39 = vector.broadcast %37 : i32 to vector<16x1xi32>
    %40 = arith.addi %39, %38 : vector<16x1xi32>
    %c20_i32 = arith.constant 20 : i32
    %41 = vector.broadcast %c20_i32 : i32 to vector<16x1xi32>
    %42 = arith.cmpi slt, %40, %41 : vector<16x1xi32>
    %cst_28 = arith.constant 0xFF800000 : f32
    %43 = vector.shape_cast %42 : vector<16x1xi1> to vector<16x1xi1>
    %44 = vector.broadcast %43 : vector<16x1xi1> to vector<16x512xi1>
    %45 = vector.broadcast %cst_28 : f32 to vector<16x512xf32>
    %46 = arith.select %44, %33, %45 : vector<16x512xi1>, vector<16x512xf32>
    %c0_29 = arith.constant 0 : index
    %c0_30 = arith.constant 0 : index
    %47 = vector.load %arg21[%c0_29, %c0_30] : memref<1x512xf32, #tpu.memory_space<vmem>>, vector<1x512xf32>
    %cst_31 = arith.constant dense<0xFF800000> : vector<512xf32>
    %48 = vector.multi_reduction <maximumf>, %46, %cst_31 [0] : vector<16x512xf32> to vector<512xf32>
    %49 = vector.shape_cast %48 : vector<512xf32> to vector<1x512xf32>
    %50 = arith.maximumf %47, %49 : vector<1x512xf32>
    %c0_32 = arith.constant 0 : index
    %c0_33 = arith.constant 0 : index
    %51 = vector.load %arg21[%c0_32, %c0_33] : memref<1x512xf32, #tpu.memory_space<vmem>>, vector<1x512xf32>
    tpu.vector_store %arg21[%c0_32, %c0_33], %50 {strides = array<i32>} : memref<1x512xf32, #tpu.memory_space<vmem>>, vector<1x512xf32>,
    %c1_i32 = arith.constant 1 : i32
    %52 = arith.cmpi eq, %arg1, %c1_i32 : i32
    %53 = arith.extui %52 : i1 to i32
    %c0_i32_34 = arith.constant 0 : i32
    %54 = arith.cmpi ne, %53, %c0_i32_34 : i32
    scf.if %54 {
      %c0_35 = arith.constant 0 : index
      %c0_36 = arith.constant 0 : index
      %55 = vector.load %arg21[%c0_35, %c0_36] : memref<1x512xf32, #tpu.memory_space<vmem>>, vector<1x512xf32>
      %56 = arith.truncf %55 : vector<1x512xf32> to vector<1x512xbf16>
      %c0_37 = arith.constant 0 : index
      %c0_38 = arith.constant 0 : index
      %57 = vector.load %arg11[%c0_37, %c0_38] : memref<512x256xbf16, #tpu.memory_space<vmem>>, vector<512x256xbf16>
      %cst_39 = arith.constant dense<0.000000e+00> : vector<1x256xf32>
      %58 = tpu.matmul %56, %57, %cst_39 {dimension_numbers = #tpu.dot_dimension_numbers<[1], [0], [0], [1], [0, 0, 1, 1], [], []>} : vector<1x512xbf16>, vector<512x256xbf16>, vector<1x256xf32> -> vector<1x256xf32>
      %c0_40 = arith.constant 0 : index
      %c0_41 = arith.constant 0 : index
      %59 = vector.load %arg12[%c0_40, %c0_41] : memref<1x256xf32, #tpu.memory_space<vmem>>, vector<1x256xf32>
      %60 = arith.addf %58, %59 : vector<1x256xf32>
      %cst_42 = arith.constant 0.000000e+00 : f32
      %61 = vector.broadcast %cst_42 : f32 to vector<1x256xf32>
      %62 = arith.maximumf %60, %61 : vector<1x256xf32>
      %63 = arith.truncf %62 : vector<1x256xf32> to vector<1x256xbf16>
      %c0_43 = arith.constant 0 : index
      %c0_44 = arith.constant 0 : index
      %64 = vector.load %arg13[%c0_43, %c0_44] : memref<256x128xbf16, #tpu.memory_space<vmem>>, vector<256x128xbf16>
      %cst_45 = arith.constant dense<0.000000e+00> : vector<1x128xf32>
      %65 = tpu.matmul %63, %64, %cst_45 {dimension_numbers = #tpu.dot_dimension_numbers<[1], [0], [0], [1], [0, 0, 1, 1], [], []>} : vector<1x256xbf16>, vector<256x128xbf16>, vector<1x128xf32> -> vector<1x128xf32>
      %c0_46 = arith.constant 0 : index
      %c0_47 = arith.constant 0 : index
      %66 = vector.load %arg14[%c0_46, %c0_47] : memref<1x128xf32, #tpu.memory_space<vmem>>, vector<1x128xf32>
      %67 = arith.addf %65, %66 : vector<1x128xf32>
      %cst_48 = arith.constant 0.000000e+00 : f32
      %68 = vector.broadcast %cst_48 : f32 to vector<1x128xf32>
      %69 = arith.maximumf %67, %68 : vector<1x128xf32>
      %c0_49 = arith.constant 0 : index
      %c0_50 = arith.constant 0 : index
      %c0_51 = arith.constant 0 : index
      %70 = vector.load %arg19[%c0_49, %c0_50, %c0_51] : memref<1x1x128xf32, #tpu.memory_space<vmem>>, vector<1x1x128xf32>
      %71 = vector.shape_cast %70 : vector<1x1x128xf32> to vector<1x128xf32>
      %72 = vector.shape_cast %69 : vector<1x128xf32> to vector<1x1x128xf32>
      tpu.vector_store %arg19[%c0_49, %c0_50, %c0_51], %72 {strides = array<i32>} : memref<1x1x128xf32, #tpu.memory_space<vmem>>, vector<1x1x128xf32>,
      %73 = arith.truncf %69 : vector<1x128xf32> to vector<1x128xbf16>
      %c0_52 = arith.constant 0 : index
      %c0_53 = arith.constant 0 : index
      %74 = vector.load %arg15[%c0_52, %c0_53] : memref<128x768xbf16, #tpu.memory_space<vmem>>, vector<128x768xbf16>
      %cst_54 = arith.constant dense<0.000000e+00> : vector<1x768xf32>
      %75 = tpu.matmul %73, %74, %cst_54 {dimension_numbers = #tpu.dot_dimension_numbers<[1], [0], [0], [1], [0, 0, 1, 1], [], []>} : vector<1x128xbf16>, vector<128x768xbf16>, vector<1x768xf32> -> vector<1x768xf32>
      %c0_55 = arith.constant 0 : index
      %c0_56 = arith.constant 0 : index
      %76 = vector.load %arg16[%c0_55, %c0_56] : memref<1x768xf32, #tpu.memory_space<vmem>>, vector<1x768xf32>
      %77 = arith.addf %75, %76 : vector<1x768xf32>
      %cst_57 = arith.constant 0.000000e+00 : f32
      %78 = vector.broadcast %cst_57 : f32 to vector<1x768xf32>
      %79 = arith.maximumf %77, %78 : vector<1x768xf32>
      %80 = arith.truncf %79 : vector<1x768xf32> to vector<1x768xbf16>
      %c0_58 = arith.constant 0 : index
      %c0_59 = arith.constant 0 : index
      %81 = vector.load %arg17[%c0_58, %c0_59] : memref<768x7xbf16, #tpu.memory_space<vmem>>, vector<768x7xbf16>
      %cst_60 = arith.constant dense<0.000000e+00> : vector<1x7xf32>
      %82 = tpu.matmul %80, %81, %cst_60 {dimension_numbers = #tpu.dot_dimension_numbers<[1], [0], [0], [1], [0, 0, 1, 1], [], []>} : vector<1x768xbf16>, vector<768x7xbf16>, vector<1x7xf32> -> vector<1x7xf32>
      %c0_61 = arith.constant 0 : index
      %c0_62 = arith.constant 0 : index
      %c0_63 = arith.constant 0 : index
      %83 = vector.load %arg18[%c0_61, %c0_62, %c0_63] : memref<1x1x7xf32, #tpu.memory_space<vmem>>, vector<1x1x7xf32>
      %84 = vector.shape_cast %83 : vector<1x1x7xf32> to vector<1x7xf32>
      %85 = vector.shape_cast %82 : vector<1x7xf32> to vector<1x1x7xf32>
      tpu.vector_store %arg18[%c0_61, %c0_62, %c0_63], %85 {strides = array<i32>} : memref<1x1x7xf32, #tpu.memory_space<vmem>>, vector<1x1x7xf32>,
    } else {
    }
    return
  }
  func.func @transform_0(%arg0: i32, %arg1: i32) -> (i32, i32, i32) {
    %c0_i32 = arith.constant 0 : i32
    %c0_i32_0 = arith.constant 0 : i32
    return %arg0, %arg1, %c0_i32 : i32, i32, i32
  }
  func.func @transform_1(%arg0: i32, %arg1: i32) -> (i32, i32) {
    %c0_i32 = arith.constant 0 : i32
    %c0_i32_0 = arith.constant 0 : i32
    %c0_i32_1 = arith.constant 0 : i32
    return %c0_i32, %c0_i32_0 : i32, i32
  }
  func.func @transform_2(%arg0: i32, %arg1: i32) -> (i32, i32) {
    %c0_i32 = arith.constant 0 : i32
    %c0_i32_0 = arith.constant 0 : i32
    %c0_i32_1 = arith.constant 0 : i32
    return %c0_i32, %c0_i32_0 : i32, i32
  }
  func.func @transform_3(%arg0: i32, %arg1: i32) -> (i32, i32) {
    %c0_i32 = arith.constant 0 : i32
    %c0_i32_0 = arith.constant 0 : i32
    %c0_i32_1 = arith.constant 0 : i32
    return %c0_i32, %c0_i32_0 : i32, i32
  }
  func.func @transform_4(%arg0: i32, %arg1: i32) -> (i32, i32) {
    %c0_i32 = arith.constant 0 : i32
    %c0_i32_0 = arith.constant 0 : i32
    %c0_i32_1 = arith.constant 0 : i32
    return %c0_i32, %c0_i32_0 : i32, i32
  }
  func.func @transform_5(%arg0: i32, %arg1: i32) -> (i32, i32) {
    %c0_i32 = arith.constant 0 : i32
    %c0_i32_0 = arith.constant 0 : i32
    %c0_i32_1 = arith.constant 0 : i32
    return %c0_i32, %c0_i32_0 : i32, i32
  }
  func.func @transform_6(%arg0: i32, %arg1: i32) -> (i32, i32) {
    %c0_i32 = arith.constant 0 : i32
    %c0_i32_0 = arith.constant 0 : i32
    %c0_i32_1 = arith.constant 0 : i32
    return %c0_i32, %c0_i32_0 : i32, i32
  }
  func.func @transform_7(%arg0: i32, %arg1: i32) -> (i32, i32) {
    %c0_i32 = arith.constant 0 : i32
    %c0_i32_0 = arith.constant 0 : i32
    %c0_i32_1 = arith.constant 0 : i32
    return %c0_i32, %c0_i32_0 : i32, i32
  }
  func.func @transform_8(%arg0: i32, %arg1: i32) -> (i32, i32) {
    %c0_i32 = arith.constant 0 : i32
    %c0_i32_0 = arith.constant 0 : i32
    %c0_i32_1 = arith.constant 0 : i32
    return %c0_i32, %c0_i32_0 : i32, i32
  }
  func.func @transform_9(%arg0: i32, %arg1: i32) -> (i32, i32) {
    %c0_i32 = arith.constant 0 : i32
    %c0_i32_0 = arith.constant 0 : i32
    %c0_i32_1 = arith.constant 0 : i32
    return %c0_i32, %c0_i32_0 : i32, i32
  }
  func.func @transform_10(%arg0: i32, %arg1: i32) -> (i32, i32) {
    %c0_i32 = arith.constant 0 : i32
    %c0_i32_0 = arith.constant 0 : i32
    %c0_i32_1 = arith.constant 0 : i32
    return %c0_i32, %c0_i32_0 : i32, i32
  }
  func.func @transform_11(%arg0: i32, %arg1: i32) -> (i32, i32) {
    %c0_i32 = arith.constant 0 : i32
    %c0_i32_0 = arith.constant 0 : i32
    %c0_i32_1 = arith.constant 0 : i32
    return %c0_i32, %c0_i32_0 : i32, i32
  }
  func.func @transform_12(%arg0: i32, %arg1: i32) -> (i32, i32) {
    %c0_i32 = arith.constant 0 : i32
    %c0_i32_0 = arith.constant 0 : i32
    %c0_i32_1 = arith.constant 0 : i32
    return %c0_i32, %c0_i32_0 : i32, i32
  }
  func.func @transform_13(%arg0: i32, %arg1: i32) -> (i32, i32) {
    %c0_i32 = arith.constant 0 : i32
    %c0_i32_0 = arith.constant 0 : i32
    %c0_i32_1 = arith.constant 0 : i32
    return %c0_i32, %c0_i32_0 : i32, i32
  }
  func.func @transform_14(%arg0: i32, %arg1: i32) -> (i32, i32) {
    %c0_i32 = arith.constant 0 : i32
    %c0_i32_0 = arith.constant 0 : i32
    %c0_i32_1 = arith.constant 0 : i32
    return %c0_i32, %c0_i32_0 : i32, i32
  }
  func.func @transform_15(%arg0: i32, %arg1: i32) -> (i32, i32) {
    %c0_i32 = arith.constant 0 : i32
    %c0_i32_0 = arith.constant 0 : i32
    %c0_i32_1 = arith.constant 0 : i32
    return %c0_i32, %c0_i32_0 : i32, i32
  }
  func.func @transform_16(%arg0: i32, %arg1: i32) -> (i32, i32, i32) {
    %c0_i32 = arith.constant 0 : i32
    %c0_i32_0 = arith.constant 0 : i32
    %c0_i32_1 = arith.constant 0 : i32
    return %arg0, %c0_i32, %c0_i32_0 : i32, i32, i32
  }
  func.func @transform_17(%arg0: i32, %arg1: i32) -> (i32, i32, i32) {
    %c0_i32 = arith.constant 0 : i32
    %c0_i32_0 = arith.constant 0 : i32
    %c0_i32_1 = arith.constant 0 : i32
    return %arg0, %c0_i32, %c0_i32_0 : i32, i32, i32
  }
  func.func @transform_18(%arg0: i32, %arg1: i32) -> (i32, i32, i32) {
    %c0_i32 = arith.constant 0 : i32
    %c0_i32_0 = arith.constant 0 : i32
    return %arg0, %arg1, %c0_i32 : i32, i32, i32
  }
}

</mosaic_0001>

<llo_original>
// kernel: pointnet_forward.1
$region0: #{pointnet_forward.1}
  #allocation0 [shape = 'u32[]', space=smem, size = 0x4, offset = 0x4, fixed_abs, tag = 'smem constant byte address 0x4 - core index']
  #allocation1 [shape = 'u32[144,128]{1,0:T(1,128)}', space=vmem, size = 0x12000, scoped, tag = 'internal scratch']
  #allocation2 [shape = 'f32[1,512]{1,0:T(1,128)}', space=vmem, size = 0x800, scoped, tag = 'scratch operand']
  %s0 = inlined_call_operand.vmem [shape: bf16[2,32,4], index: 0, kind: input, shape index: {}]
  %s1 = inlined_call_operand.vmem [shape: bf16[4,64], index: 1, kind: input, shape index: {}]
  %s2 = inlined_call_operand.vmem [shape: f32[1,64], index: 2, kind: input, shape index: {}]
  %s3 = inlined_call_operand.hbm [shape: bf16[64,128], index: 3, kind: input, shape index: {}]
  %s4 = inlined_call_operand.vmem [shape: f32[1,128], index: 4, kind: input, shape index: {}]
  %s5 = inlined_call_operand.hbm [shape: bf16[128,256], index: 5, kind: input, shape index: {}]
  %s6 = inlined_call_operand.vmem [shape: f32[1,256], index: 6, kind: input, shape index: {}]
  %s7 = inlined_call_operand.vmem [shape: bf16[256,512], index: 7, kind: input, shape index: {}]
  %s8 = inlined_call_operand.vmem [shape: f32[1,512], index: 8, kind: input, shape index: {}]
  %s9 = inlined_call_operand.hbm [shape: bf16[512,256], index: 9, kind: input, shape index: {}]
  %s10 = inlined_call_operand.vmem [shape: f32[1,256], index: 10, kind: input, shape index: {}]
  %s11 = inlined_call_operand.hbm [shape: bf16[256,128], index: 11, kind: input, shape index: {}]
  %s12 = inlined_call_operand.vmem [shape: f32[1,128], index: 12, kind: input, shape index: {}]
  %s13 = inlined_call_operand.hbm [shape: bf16[128,768], index: 13, kind: input, shape index: {}]
  %s14 = inlined_call_operand.vmem [shape: f32[1,768], index: 14, kind: input, shape index: {}]
  %s15 = inlined_call_operand.vmem [shape: bf16[768,7], index: 15, kind: input, shape index: {}]
  %s16 = inlined_call_operand.hbm [shape: f32[2,1,7], index: 16, kind: output, shape index: {0}]
  %s17 = inlined_call_operand.hbm [shape: f32[2,1,128], index: 17, kind: output, shape index: {1}]
  %s18 = inlined_call_operand.vmem [shape: f32[2,32,512], index: 18, kind: output, shape index: {2}]
  %19 = xla_tuple %s16, %s17, %s18
  %s20 = sld [smem:[#allocation0]]
  $region141: #{pointnet_forward.1} parent=0
    _
  %s22 = ssub.s32 1, %s20
  %s23 = scalar_select 0, %s22, %s20
  $region1: #{pointnet_forward.1} parent=0
    #allocation3 [shape = 'u8[16384]{0}', space=vmem, size = 0x4000, scoped, tag = 'input window, operand 3, single buffered']
    #allocation4 [shape = 's32[2]{0}', space=sflag, size = 0x8, scoped, tag = 'scoped memory for pointnet_forward.1']
    #allocation5 [shape = 's32[2]{0}', space=sflag, size = 0x8, scoped, tag = 'scoped memory for pointnet_forward.1']
    #allocation6 [shape = 'u8[65536]{0}', space=vmem, size = 0x10000, scoped, tag = 'input window, operand 5, single buffered']
    #allocation7 [shape = 's32[1]{0}', space=sflag, size = 0x4, scoped, tag = 'scoped memory for pointnet_forward.1']
    #allocation8 [shape = 'u8[262144]{0}', space=vmem, size = 0x40000, scoped, tag = 'input window, operand 9, single buffered']
    #allocation9 [shape = 'u8[65536]{0}', space=vmem, size = 0x10000, scoped, tag = 'input window, operand 11, single buffered']
    #allocation10 [shape = 's32[1]{0}', space=sflag, size = 0x4, scoped, tag = 'scoped memory for pointnet_forward.1']
    #allocation11 [shape = 'u8[196608]{0}', space=vmem, size = 0x30000, scoped, tag = 'input window, operand 13, single buffered']
    #allocation12 [shape = 'u8[1024]{0}', space=vmem, size = 0x400, scoped, tag = 'output window, operand 0']
    #allocation13 [shape = 'u8[1024]{0}', space=vmem, size = 0x400, scoped, tag = 'output window, operand 1']
    #allocation14 [shape = 's32[2]{0}', space=sflag, size = 0x8, scoped, tag = 'scoped memory for pointnet_forward.1']
    %24 = vsyncpa [#allocation4], 0
    %25 = vsyncpa [#allocation7], 0
    %26 = vsyncpa [#allocation10], 0
    %27 = vsyncpa [#allocation5], 0
    %s28 = scalar_lea.sflag [#allocation5], 1
    %29 = vsyncpa %s28, 0
    %30 = vsyncpa [#allocation14], 0
    %s31 = scalar_lea.sflag [#allocation14], 1
    %32 = vsyncpa %s31, 0
    loop: start=0, step=1, limit=6
    $region2: #{pointnet_forward.1} parent=1 // loop_pre_header
      _
    $region3: #{pointnet_forward.1} parent=1 // loop_header
      %s34 = sphi 0, %s38
      %p35 = scmp.ge.s32.totalorder %s34, 6
      %s41 = sphi 0, %s53
      %s42 = sphi 0, %s49
      %s43 = sphi 0, %s41
      %s44 = sphi 0, %s42
      %s45 = sphi 0, %s43
      %s46 = sphi 0, %s44
      %s58 = sphi 0, %s60
      %s61 = sphi 0, %s58
      %s62 = sphi 0, %s61
      %s78 = sphi 0, %s62
      %s82 = sphi 0, %s82
      %s84 = sphi 0, %s82
      %s85 = sphi 0, %s84
      %s99 = sphi 0, %s85
      %s103 = sphi 0, %s103
      %s105 = sphi 0, %s103
      %s106 = sphi 0, %s105
      %s120 = sphi 0, %s106
      %s124 = sphi 0, %s124
      %s126 = sphi 0, %s124
      %s127 = sphi 0, %s126
      %s141 = sphi 0, %s127
      %s145 = sphi 0, %s145
      %s147 = sphi 0, %s145
      %s148 = sphi 0, %s147
      %s162 = sphi 0, %s148
      %s166 = sphi 0, %s166
      %s168 = sphi 0, %s166
      %s169 = sphi 0, %s168
      %s183 = sphi 0, %s169
      %s187 = sphi 0, %s187
      %s189 = sphi 0, %s187
      %s190 = sphi 0, %s189
      %s204 = sphi 0, %s190
      %s208 = sphi 0, %s208
      %s210 = sphi 0, %s208
      %s211 = sphi 0, %s210
      %s225 = sphi 0, %s211
      %s229 = sphi 0, %s229
      %s231 = sphi 0, %s229
      %s232 = sphi 0, %s231
      %s246 = sphi 0, %s232
      %s250 = sphi 0, %s250
      %s252 = sphi 0, %s250
      %s253 = sphi 0, %s252
      %s267 = sphi 0, %s253
      %s271 = sphi 0, %s271
      %s273 = sphi 0, %s271
      %s274 = sphi 0, %s273
      %s288 = sphi 0, %s274
      %s292 = sphi 0, %s292
      %s294 = sphi 0, %s292
      %s295 = sphi 0, %s294
      %s309 = sphi 0, %s295
      %s313 = sphi 0, %s313
      %s315 = sphi 0, %s313
      %s316 = sphi 0, %s315
      %s330 = sphi 0, %s316
      %s334 = sphi 0, %s334
      %s336 = sphi 0, %s334
      %s337 = sphi 0, %s336
      %s351 = sphi 0, %s337
      %s355 = sphi 0, %s355
      %s357 = sphi 0, %s355
      %s358 = sphi 0, %s357
      %s372 = sphi 0, %s358
      %s376 = sphi 0, %s376
      %s378 = sphi 0, %s376
      %s379 = sphi 0, %s378
      %s393 = sphi 0, %s379
      %s399 = sphi 0, %s401
      %s402 = sphi 0, %s399
      %s403 = sphi 0, %s402
      %s419 = sphi 0, %s403
      %s425 = sphi 0, %s427
      %s428 = sphi 0, %s425
      %s429 = sphi 0, %s428
      %s445 = sphi 0, %s429
      %s453 = sphi 0, %s455
      %s456 = sphi 0, %s453
      %s457 = sphi 0, %s456
      %s473 = sphi 0, %s457
    $region4: #{pointnet_forward.1} parent=1 // loop_header_branch
      %37 = sbr.rel (%p35) target = $region8
    $region5: #{pointnet_forward.1} parent=1 // loop_body
      %s39 = ssub.s32 %s34, 1
      %s40 = ssub.s32 %s34, 2
      %s47 = sadd.s32 1, %s42
      %p48 = scmp.ge.s32.totalorder %s47, 2
      %s49 = scalar_select %p48, 0, %s47
      %s50 = sadd.s32 1, %s41
      %s51 = scalar_select %p48, %s50, %s41
      %p52 = scmp.ge.s32.totalorder %s51, 2
      %s53 = scalar_select %p52, 0, %s51
      %s54 = ssub.s32 %s41, %s53
      %s55 = ssub.s32 %s42, %s49
      %s56 = sor.u32 %s54, %s55
      %p57 = scmp.eq.s32.totalorder %s56, 0
      %s59 = sadd.s32 %s58, 1
      %s60 = scalar_select %p57, %s58, %s59
      %p63 = pneg %p57
      %p64 = scmp.eq.s32.totalorder %s34, 3
      %p65 = por %p63, %p64
      %p66 = scmp.ne.s32.totalorder %s58, %s61
      %p67 = scmp.eq.s32.totalorder %s34, 0
      %p68 = por %p66, %p67
      %p69 = scmp.ne.s32.totalorder %s58, %s61
      %p70 = scmp.eq.s32.totalorder %s39, 3
      %p71 = por %p69, %p70
      %p72 = scmp.ne.s32.totalorder %s61, %s62
      %p73 = scmp.eq.s32.totalorder %s39, 0
      %p74 = por %p72, %p73
      %p75 = scmp.ne.s32.totalorder %s61, %s62
      %p76 = scmp.eq.s32.totalorder %s40, 3
      %p77 = por %p75, %p76
      %p79 = scmp.ne.s32.totalorder %s62, %s78
      %p80 = scmp.eq.s32.totalorder %s40, 0
      %p81 = por %p79, %p80
      %s83 = sadd.s32 %s82, 1
      %p86 = scmp.eq.s32.totalorder %s34, 3
      %p87 = scmp.ne.s32.totalorder %s82, %s84
      %p88 = scmp.eq.s32.totalorder %s34, 0
      %p89 = por %p87, %p88
      %p90 = scmp.ne.s32.totalorder %s82, %s84
      %p91 = scmp.eq.s32.totalorder %s39, 3
      %p92 = por %p90, %p91
      %p93 = scmp.ne.s32.totalorder %s84, %s85
      %p94 = scmp.eq.s32.totalorder %s39, 0
      %p95 = por %p93, %p94
      %p96 = scmp.ne.s32.totalorder %s84, %s85
      %p97 = scmp.eq.s32.totalorder %s40, 3
      %p98 = por %p96, %p97
      %p100 = scmp.ne.s32.totalorder %s85, %s99
      %p101 = scmp.eq.s32.totalorder %s40, 0
      %p102 = por %p100, %p101
      %s104 = sadd.s32 %s103, 1
      %p107 = scmp.eq.s32.totalorder %s34, 3
      %p108 = scmp.ne.s32.totalorder %s103, %s105
      %p109 = scmp.eq.s32.totalorder %s34, 0
      %p110 = por %p108, %p109
      %p111 = scmp.ne.s32.totalorder %s103, %s105
      %p112 = scmp.eq.s32.totalorder %s39, 3
      %p113 = por %p111, %p112
      %p114 = scmp.ne.s32.totalorder %s105, %s106
      %p115 = scmp.eq.s32.totalorder %s39, 0
      %p116 = por %p114, %p115
      %p117 = scmp.ne.s32.totalorder %s105, %s106
      %p118 = scmp.eq.s32.totalorder %s40, 3
      %p119 = por %p117, %p118
      %p121 = scmp.ne.s32.totalorder %s106, %s120
      %p122 = scmp.eq.s32.totalorder %s40, 0
      %p123 = por %p121, %p122
      %s125 = sadd.s32 %s124, 1
      %p128 = scmp.eq.s32.totalorder %s34, 3
      %p129 = scmp.ne.s32.totalorder %s124, %s126
      %p130 = scmp.eq.s32.totalorder %s34, 0
      %p131 = por %p129, %p130
      %p132 = scmp.ne.s32.totalorder %s124, %s126
      %p133 = scmp.eq.s32.totalorder %s39, 3
      %p134 = por %p132, %p133
      %p135 = scmp.ne.s32.totalorder %s126, %s127
      %p136 = scmp.eq.s32.totalorder %s39, 0
      %p137 = por %p135, %p136
      %p138 = scmp.ne.s32.totalorder %s126, %s127
      %p139 = scmp.eq.s32.totalorder %s40, 3
      %p140 = por %p138, %p139
      %p142 = scmp.ne.s32.totalorder %s127, %s141
      %p143 = scmp.eq.s32.totalorder %s40, 0
      %p144 = por %p142, %p143
      %s146 = sadd.s32 %s145, 1
      %p149 = scmp.eq.s32.totalorder %s34, 3
      %p150 = scmp.ne.s32.totalorder %s145, %s147
      %p151 = scmp.eq.s32.totalorder %s34, 0
      %p152 = por %p150, %p151
      %p153 = scmp.ne.s32.totalorder %s145, %s147
      %p154 = scmp.eq.s32.totalorder %s39, 3
      %p155 = por %p153, %p154
      %p156 = scmp.ne.s32.totalorder %s147, %s148
      %p157 = scmp.eq.s32.totalorder %s39, 0
      %p158 = por %p156, %p157
      %p159 = scmp.ne.s32.totalorder %s147, %s148
      %p160 = scmp.eq.s32.totalorder %s40, 3
      %p161 = por %p159, %p160
      %p163 = scmp.ne.s32.totalorder %s148, %s162
      %p164 = scmp.eq.s32.totalorder %s40, 0
      %p165 = por %p163, %p164
      %s167 = sadd.s32 %s166, 1
      %p170 = scmp.eq.s32.totalorder %s34, 3
      %p171 = scmp.ne.s32.totalorder %s166, %s168
      %p172 = scmp.eq.s32.totalorder %s34, 0
      %p173 = por %p171, %p172
      %p174 = scmp.ne.s32.totalorder %s166, %s168
      %p175 = scmp.eq.s32.totalorder %s39, 3
      %p176 = por %p174, %p175
      %p177 = scmp.ne.s32.totalorder %s168, %s169
      %p178 = scmp.eq.s32.totalorder %s39, 0
      %p179 = por %p177, %p178
      %p180 = scmp.ne.s32.totalorder %s168, %s169
      %p181 = scmp.eq.s32.totalorder %s40, 3
      %p182 = por %p180, %p181
      %p184 = scmp.ne.s32.totalorder %s169, %s183
      %p185 = scmp.eq.s32.totalorder %s40, 0
      %p186 = por %p184, %p185
      %s188 = sadd.s32 %s187, 1
      %p191 = scmp.eq.s32.totalorder %s34, 3
      %p192 = scmp.ne.s32.totalorder %s187, %s189
      %p193 = scmp.eq.s32.totalorder %s34, 0
      %p194 = por %p192, %p193
      %p195 = scmp.ne.s32.totalorder %s187, %s189
      %p196 = scmp.eq.s32.totalorder %s39, 3
      %p197 = por %p195, %p196
      %p198 = scmp.ne.s32.totalorder %s189, %s190
      %p199 = scmp.eq.s32.totalorder %s39, 0
      %p200 = por %p198, %p199
      %p201 = scmp.ne.s32.totalorder %s189, %s190
      %p202 = scmp.eq.s32.totalorder %s40, 3
      %p203 = por %p201, %p202
      %p205 = scmp.ne.s32.totalorder %s190, %s204
      %p206 = scmp.eq.s32.totalorder %s40, 0
      %p207 = por %p205, %p206
      %s209 = sadd.s32 %s208, 1
      %p212 = scmp.eq.s32.totalorder %s34, 3
      %p213 = scmp.ne.s32.totalorder %s208, %s210
      %p214 = scmp.eq.s32.totalorder %s34, 0
      %p215 = por %p213, %p214
      %p216 = scmp.ne.s32.totalorder %s208, %s210
      %p217 = scmp.eq.s32.totalorder %s39, 3
      %p218 = por %p216, %p217
      %p219 = scmp.ne.s32.totalorder %s210, %s211
      %p220 = scmp.eq.s32.totalorder %s39, 0
      %p221 = por %p219, %p220
      %p222 = scmp.ne.s32.totalorder %s210, %s211
      %p223 = scmp.eq.s32.totalorder %s40, 3
      %p224 = por %p222, %p223
      %p226 = scmp.ne.s32.totalorder %s211, %s225
      %p227 = scmp.eq.s32.totalorder %s40, 0
      %p228 = por %p226, %p227
      %s230 = sadd.s32 %s229, 1
      %p233 = scmp.eq.s32.totalorder %s34, 3
      %p234 = scmp.ne.s32.totalorder %s229, %s231
      %p235 = scmp.eq.s32.totalorder %s34, 0
      %p236 = por %p234, %p235
      %p237 = scmp.ne.s32.totalorder %s229, %s231
      %p238 = scmp.eq.s32.totalorder %s39, 3
      %p239 = por %p237, %p238
      %p240 = scmp.ne.s32.totalorder %s231, %s232
      %p241 = scmp.eq.s32.totalorder %s39, 0
      %p242 = por %p240, %p241
      %p243 = scmp.ne.s32.totalorder %s231, %s232
      %p244 = scmp.eq.s32.totalorder %s40, 3
      %p245 = por %p243, %p244
      %p247 = scmp.ne.s32.totalorder %s232, %s246
      %p248 = scmp.eq.s32.totalorder %s40, 0
      %p249 = por %p247, %p248
      %s251 = sadd.s32 %s250, 1
      %p254 = scmp.eq.s32.totalorder %s34, 3
      %p255 = scmp.ne.s32.totalorder %s250, %s252
      %p256 = scmp.eq.s32.totalorder %s34, 0
      %p257 = por %p255, %p256
      %p258 = scmp.ne.s32.totalorder %s250, %s252
      %p259 = scmp.eq.s32.totalorder %s39, 3
      %p260 = por %p258, %p259
      %p261 = scmp.ne.s32.totalorder %s252, %s253
      %p262 = scmp.eq.s32.totalorder %s39, 0
      %p263 = por %p261, %p262
      %p264 = scmp.ne.s32.totalorder %s252, %s253
      %p265 = scmp.eq.s32.totalorder %s40, 3
      %p266 = por %p264, %p265
      %p268 = scmp.ne.s32.totalorder %s253, %s267
      %p269 = scmp.eq.s32.totalorder %s40, 0
      %p270 = por %p268, %p269
      %s272 = sadd.s32 %s271, 1
      %p275 = scmp.eq.s32.totalorder %s34, 3
      %p276 = scmp.ne.s32.totalorder %s271, %s273
      %p277 = scmp.eq.s32.totalorder %s34, 0
      %p278 = por %p276, %p277
      %p279 = scmp.ne.s32.totalorder %s271, %s273
      %p280 = scmp.eq.s32.totalorder %s39, 3
      %p281 = por %p279, %p280
      %p282 = scmp.ne.s32.totalorder %s273, %s274
      %p283 = scmp.eq.s32.totalorder %s39, 0
      %p284 = por %p282, %p283
      %p285 = scmp.ne.s32.totalorder %s273, %s274
      %p286 = scmp.eq.s32.totalorder %s40, 3
      %p287 = por %p285, %p286
      %p289 = scmp.ne.s32.totalorder %s274, %s288
      %p290 = scmp.eq.s32.totalorder %s40, 0
      %p291 = por %p289, %p290
      %s293 = sadd.s32 %s292, 1
      %p296 = scmp.eq.s32.totalorder %s34, 3
      %p297 = scmp.ne.s32.totalorder %s292, %s294
      %p298 = scmp.eq.s32.totalorder %s34, 0
      %p299 = por %p297, %p298
      %p300 = scmp.ne.s32.totalorder %s292, %s294
      %p301 = scmp.eq.s32.totalorder %s39, 3
      %p302 = por %p300, %p301
      %p303 = scmp.ne.s32.totalorder %s294, %s295
      %p304 = scmp.eq.s32.totalorder %s39, 0
      %p305 = por %p303, %p304
      %p306 = scmp.ne.s32.totalorder %s294, %s295
      %p307 = scmp.eq.s32.totalorder %s40, 3
      %p308 = por %p306, %p307
      %p310 = scmp.ne.s32.totalorder %s295, %s309
      %p311 = scmp.eq.s32.totalorder %s40, 0
      %p312 = por %p310, %p311
      %s314 = sadd.s32 %s313, 1
      %p317 = scmp.eq.s32.totalorder %s34, 3
      %p318 = scmp.ne.s32.totalorder %s313, %s315
      %p319 = scmp.eq.s32.totalorder %s34, 0
      %p320 = por %p318, %p319
      %p321 = scmp.ne.s32.totalorder %s313, %s315
      %p322 = scmp.eq.s32.totalorder %s39, 3
      %p323 = por %p321, %p322
      %p324 = scmp.ne.s32.totalorder %s315, %s316
      %p325 = scmp.eq.s32.totalorder %s39, 0
      %p326 = por %p324, %p325
      %p327 = scmp.ne.s32.totalorder %s315, %s316
      %p328 = scmp.eq.s32.totalorder %s40, 3
      %p329 = por %p327, %p328
      %p331 = scmp.ne.s32.totalorder %s316, %s330
      %p332 = scmp.eq.s32.totalorder %s40, 0
      %p333 = por %p331, %p332
      %s335 = sadd.s32 %s334, 1
      %p338 = scmp.eq.s32.totalorder %s34, 3
      %p339 = scmp.ne.s32.totalorder %s334, %s336
      %p340 = scmp.eq.s32.totalorder %s34, 0
      %p341 = por %p339, %p340
      %p342 = scmp.ne.s32.totalorder %s334, %s336
      %p343 = scmp.eq.s32.totalorder %s39, 3
      %p344 = por %p342, %p343
      %p345 = scmp.ne.s32.totalorder %s336, %s337
      %p346 = scmp.eq.s32.totalorder %s39, 0
      %p347 = por %p345, %p346
      %p348 = scmp.ne.s32.totalorder %s336, %s337
      %p349 = scmp.eq.s32.totalorder %s40, 3
      %p350 = por %p348, %p349
      %p352 = scmp.ne.s32.totalorder %s337, %s351
      %p353 = scmp.eq.s32.totalorder %s40, 0
      %p354 = por %p352, %p353
      %s356 = sadd.s32 %s355, 1
      %p359 = scmp.eq.s32.totalorder %s34, 3
      %p360 = scmp.ne.s32.totalorder %s355, %s357
      %p361 = scmp.eq.s32.totalorder %s34, 0
      %p362 = por %p360, %p361
      %p363 = scmp.ne.s32.totalorder %s355, %s357
      %p364 = scmp.eq.s32.totalorder %s39, 3
      %p365 = por %p363, %p364
      %p366 = scmp.ne.s32.totalorder %s357, %s358
      %p367 = scmp.eq.s32.totalorder %s39, 0
      %p368 = por %p366, %p367
      %p369 = scmp.ne.s32.totalorder %s357, %s358
      %p370 = scmp.eq.s32.totalorder %s40, 3
      %p371 = por %p369, %p370
      %p373 = scmp.ne.s32.totalorder %s358, %s372
      %p374 = scmp.eq.s32.totalorder %s40, 0
      %p375 = por %p373, %p374
      %s377 = sadd.s32 %s376, 1
      %p380 = scmp.eq.s32.totalorder %s34, 3
      %p381 = scmp.ne.s32.totalorder %s376, %s378
      %p382 = scmp.eq.s32.totalorder %s34, 0
      %p383 = por %p381, %p382
      %p384 = scmp.ne.s32.totalorder %s376, %s378
      %p385 = scmp.eq.s32.totalorder %s39, 3
      %p386 = por %p384, %p385
      %p387 = scmp.ne.s32.totalorder %s378, %s379
      %p388 = scmp.eq.s32.totalorder %s39, 0
      %p389 = por %p387, %p388
      %p390 = scmp.ne.s32.totalorder %s378, %s379
      %p391 = scmp.eq.s32.totalorder %s40, 3
      %p392 = por %p390, %p391
      %p394 = scmp.ne.s32.totalorder %s379, %s393
      %p395 = scmp.eq.s32.totalorder %s40, 0
      %p396 = por %p394, %p395
      %s397 = ssub.s32 %s41, %s53
      %p398 = scmp.eq.s32.totalorder %s397, 0
      %s400 = sadd.s32 %s399, 1
      %s401 = scalar_select %p398, %s399, %s400
      %p404 = pneg %p398
      %p405 = scmp.eq.s32.totalorder %s34, 3
      %p406 = por %p404, %p405
      %p407 = scmp.ne.s32.totalorder %s399, %s402
      %p408 = scmp.eq.s32.totalorder %s34, 0
      %p409 = por %p407, %p408
      %p410 = scmp.ne.s32.totalorder %s399, %s402
      %p411 = scmp.eq.s32.totalorder %s39, 3
      %p412 = por %p410, %p411
      %p413 = scmp.ne.s32.totalorder %s402, %s403
      %p414 = scmp.eq.s32.totalorder %s39, 0
      %p415 = por %p413, %p414
      %p416 = scmp.ne.s32.totalorder %s402, %s403
      %p417 = scmp.eq.s32.totalorder %s40, 3
      %p418 = por %p416, %p417
      %p420 = scmp.ne.s32.totalorder %s403, %s419
      %p421 = scmp.eq.s32.totalorder %s40, 0
      %p422 = por %p420, %p421
      %s423 = ssub.s32 %s41, %s53
      %p424 = scmp.eq.s32.totalorder %s423, 0
      %s426 = sadd.s32 %s425, 1
      %s427 = scalar_select %p424, %s425, %s426
      %p430 = pneg %p424
      %p431 = scmp.eq.s32.totalorder %s34, 3
      %p432 = por %p430, %p431
      %p433 = scmp.ne.s32.totalorder %s425, %s428
      %p434 = scmp.eq.s32.totalorder %s34, 0
      %p435 = por %p433, %p434
      %p436 = scmp.ne.s32.totalorder %s425, %s428
      %p437 = scmp.eq.s32.totalorder %s39, 3
      %p438 = por %p436, %p437
      %p439 = scmp.ne.s32.totalorder %s428, %s429
      %p440 = scmp.eq.s32.totalorder %s39, 0
      %p441 = por %p439, %p440
      %p442 = scmp.ne.s32.totalorder %s428, %s429
      %p443 = scmp.eq.s32.totalorder %s40, 3
      %p444 = por %p442, %p443
      %p446 = scmp.ne.s32.totalorder %s429, %s445
      %p447 = scmp.eq.s32.totalorder %s40, 0
      %p448 = por %p446, %p447
      %s449 = ssub.s32 %s41, %s53
      %s450 = ssub.s32 %s42, %s49
      %s451 = sor.u32 %s449, %s450
      %p452 = scmp.eq.s32.totalorder %s451, 0
      %s454 = sadd.s32 %s453, 1
      %s455 = scalar_select %p452, %s453, %s454
      %p458 = pneg %p452
      %p459 = scmp.eq.s32.totalorder %s34, 3
      %p460 = por %p458, %p459
      %p461 = scmp.ne.s32.totalorder %s453, %s456
      %p462 = scmp.eq.s32.totalorder %s34, 0
      %p463 = por %p461, %p462
      %p464 = scmp.ne.s32.totalorder %s453, %s456
      %p465 = scmp.eq.s32.totalorder %s39, 3
      %p466 = por %p464, %p465
      %p467 = scmp.ne.s32.totalorder %s456, %s457
      %p468 = scmp.eq.s32.totalorder %s39, 0
      %p469 = por %p467, %p468
      %p470 = scmp.ne.s32.totalorder %s456, %s457
      %p471 = scmp.eq.s32.totalorder %s40, 3
      %p472 = por %p470, %p471
      %p474 = scmp.ne.s32.totalorder %s457, %s473
      %p475 = scmp.eq.s32.totalorder %s40, 0
      %p476 = por %p474, %p475
      %p477 = scmp.le.s32.totalorder 1, %s34
      %p478 = scmp.lt.s32.totalorder %s34, 5
      %p479 = pnand %p477, %p478
      %p480 = pneg %p479
      // Predicated region
      $region9: #{pointnet_forward.1} parent=5 // pred_check
        _
      $region10: #{pointnet_forward.1} parent=5 // pred_check_branch
        %482 = sbr.rel (%p479) target = $region12
      $region11: #{pointnet_forward.1} parent=5 // pred_region
        %s483 = ssub.s32 %s34, 1
        // Predicated region
        $region13: #{pointnet_forward.1} parent=11 // pred_check
          %p484 = pneg %p95
        $region14: #{pointnet_forward.1} parent=11 // pred_check_branch
          %486 = sbr.rel (%p484) target = $region16
        $region15: #{pointnet_forward.1} parent=11 // pred_region
          _
        $region16: #{pointnet_forward.1} parent=11 // pred_fallthru
          _
        // Predicated region
        $region17: #{pointnet_forward.1} parent=11 // pred_check
          %p487 = pneg %p116
        $region18: #{pointnet_forward.1} parent=11 // pred_check_branch
          %489 = sbr.rel (%p487) target = $region20
        $region19: #{pointnet_forward.1} parent=11 // pred_region
          _
        $region20: #{pointnet_forward.1} parent=11 // pred_fallthru
          _
        // Predicated region
        $region21: #{pointnet_forward.1} parent=11 // pred_check
          %p490 = pneg %p137
        $region22: #{pointnet_forward.1} parent=11 // pred_check_branch
          %492 = sbr.rel (%p490) target = $region24
        $region23: #{pointnet_forward.1} parent=11 // pred_region
          %s494 = ssub.s32 512, 512
          %495 = vsyncadd [#allocation4], %s494
          %s496 = sshll.u32 [#allocation3], 4
          %s497 = int_to_ptr.vmem [resolvable:$true] %s496
          %502 = dma.hbm_to_vmem [thread:$0]  %s3, 512, %s497, [#allocation4], 64, 64, 4
        $region24: #{pointnet_forward.1} parent=11 // pred_fallthru
          _
        // Predicated region
        $region25: #{pointnet_forward.1} parent=11 // pred_check
          %p503 = pneg %p158
        $region26: #{pointnet_forward.1} parent=11 // pred_check_branch
          %505 = sbr.rel (%p503) target = $region28
        $region27: #{pointnet_forward.1} parent=11 // pred_region
          _
        $region28: #{pointnet_forward.1} parent=11 // pred_fallthru
          _
        // Predicated region
        $region29: #{pointnet_forward.1} parent=11 // pred_check
          %p506 = pneg %p179
        $region30: #{pointnet_forward.1} parent=11 // pred_check_branch
          %508 = sbr.rel (%p506) target = $region32
        $region31: #{pointnet_forward.1} parent=11 // pred_region
          %s510 = ssub.s32 2048, 2048
          %511 = vsyncadd [#allocation7], %s510
          %s512 = sshll.u32 [#allocation6], 4
          %s513 = int_to_ptr.vmem [resolvable:$true] %s512
          %518 = dma.hbm_to_vmem [thread:$0]  %s5, 2048, %s513, [#allocation7], 128, 128, 8
        $region32: #{pointnet_forward.1} parent=11 // pred_fallthru
          _
        // Predicated region
        $region33: #{pointnet_forward.1} parent=11 // pred_check
          %p519 = pneg %p200
        $region34: #{pointnet_forward.1} parent=11 // pred_check_branch
          %521 = sbr.rel (%p519) target = $region36
        $region35: #{pointnet_forward.1} parent=11 // pred_region
          _
        $region36: #{pointnet_forward.1} parent=11 // pred_fallthru
          _
        // Predicated region
        $region37: #{pointnet_forward.1} parent=11 // pred_check
          %p522 = pneg %p221
        $region38: #{pointnet_forward.1} parent=11 // pred_check_branch
          %524 = sbr.rel (%p522) target = $region40
        $region39: #{pointnet_forward.1} parent=11 // pred_region
          _
        $region40: #{pointnet_forward.1} parent=11 // pred_fallthru
          _
        // Predicated region
        $region41: #{pointnet_forward.1} parent=11 // pred_check
          %p525 = pneg %p242
        $region42: #{pointnet_forward.1} parent=11 // pred_check_branch
          %527 = sbr.rel (%p525) target = $region44
        $region43: #{pointnet_forward.1} parent=11 // pred_region
          _
        $region44: #{pointnet_forward.1} parent=11 // pred_fallthru
          _
        // Predicated region
        $region45: #{pointnet_forward.1} parent=11 // pred_check
          %p528 = pneg %p263
        $region46: #{pointnet_forward.1} parent=11 // pred_check_branch
          %530 = sbr.rel (%p528) target = $region48
        $region47: #{pointnet_forward.1} parent=11 // pred_region
          %s532 = ssub.s32 8192, 8192
          %533 = vsyncadd [#allocation7], %s532
          %s534 = sshll.u32 [#allocation8], 4
          %s535 = int_to_ptr.vmem [resolvable:$true] %s534
          %540 = dma.hbm_to_vmem [thread:$0]  %s9, 8192, %s535, [#allocation7], 128, 128, 8
        $region48: #{pointnet_forward.1} parent=11 // pred_fallthru
          _
        // Predicated region
        $region49: #{pointnet_forward.1} parent=11 // pred_check
          %p541 = pneg %p284
        $region50: #{pointnet_forward.1} parent=11 // pred_check_branch
          %543 = sbr.rel (%p541) target = $region52
        $region51: #{pointnet_forward.1} parent=11 // pred_region
          _
        $region52: #{pointnet_forward.1} parent=11 // pred_fallthru
          _
        // Predicated region
        $region53: #{pointnet_forward.1} parent=11 // pred_check
          %p544 = pneg %p305
        $region54: #{pointnet_forward.1} parent=11 // pred_check_branch
          %546 = sbr.rel (%p544) target = $region56
        $region55: #{pointnet_forward.1} parent=11 // pred_region
          %s548 = ssub.s32 2048, 2048
          %549 = vsyncadd [#allocation10], %s548
          %s550 = sshll.u32 [#allocation9], 4
          %s551 = int_to_ptr.vmem [resolvable:$true] %s550
          %556 = dma.hbm_to_vmem [thread:$0]  %s11, 2048, %s551, [#allocation10], 64, 64, 4
        $region56: #{pointnet_forward.1} parent=11 // pred_fallthru
          _
        // Predicated region
        $region57: #{pointnet_forward.1} parent=11 // pred_check
          %p557 = pneg %p326
        $region58: #{pointnet_forward.1} parent=11 // pred_check_branch
          %559 = sbr.rel (%p557) target = $region60
        $region59: #{pointnet_forward.1} parent=11 // pred_region
          _
        $region60: #{pointnet_forward.1} parent=11 // pred_fallthru
          _
        // Predicated region
        $region61: #{pointnet_forward.1} parent=11 // pred_check
          %p560 = pneg %p347
        $region62: #{pointnet_forward.1} parent=11 // pred_check_branch
          %562 = sbr.rel (%p560) target = $region64
        $region63: #{pointnet_forward.1} parent=11 // pred_region
          %s564 = ssub.s32 6144, 6144
          %565 = vsyncadd [#allocation10], %s564
          %s566 = sshll.u32 [#allocation11], 4
          %s567 = int_to_ptr.vmem [resolvable:$true] %s566
          %572 = dma.hbm_to_vmem [thread:$0]  %s13, 6144, %s567, [#allocation10], 384, 384, 24
        $region64: #{pointnet_forward.1} parent=11 // pred_fallthru
          _
        // Predicated region
        $region65: #{pointnet_forward.1} parent=11 // pred_check
          %p573 = pneg %p368
        $region66: #{pointnet_forward.1} parent=11 // pred_check_branch
          %575 = sbr.rel (%p573) target = $region68
        $region67: #{pointnet_forward.1} parent=11 // pred_region
          _
        $region68: #{pointnet_forward.1} parent=11 // pred_fallthru
          _
        // Predicated region
        $region69: #{pointnet_forward.1} parent=11 // pred_check
          %p576 = pneg %p389
        $region70: #{pointnet_forward.1} parent=11 // pred_check_branch
          %578 = sbr.rel (%p576) target = $region72
        $region71: #{pointnet_forward.1} parent=11 // pred_region
          _
        $region72: #{pointnet_forward.1} parent=11 // pred_fallthru
          _
      $region12: #{pointnet_forward.1} parent=5 // pred_fallthru
        _
      %p579 = scmp.lt.s32.totalorder %s34, 4
      // Predicated region
      $region73: #{pointnet_forward.1} parent=5 // pred_check
        %p580 = pneg %p579
      $region74: #{pointnet_forward.1} parent=5 // pred_check_branch
        %582 = sbr.rel (%p580) target = $region76
      $region75: #{pointnet_forward.1} parent=5 // pred_region
        // Predicated region
        $region77: #{pointnet_forward.1} parent=75 // pred_check
          %p583 = pneg %p68
        $region78: #{pointnet_forward.1} parent=75 // pred_check_branch
          %585 = sbr.rel (%p583) target = $region80
        $region79: #{pointnet_forward.1} parent=75 // pred_region
          %s586 = smul.u32 2, %s42
          %p587 = scmp.lt.s32.totalorder %s41, 1
          %s588 = scalar_select %p587, %s41, 1
          %p589 = scmp.lt.s32.totalorder %s586, 3
          %s590 = scalar_select %p589, %s586, 3
          %s591 = smul.addr %s588, 4
          %s592 = sadd.s32 %s590, %s591
          %s593 = smul.addr %s592, 4
          %s594 = scalar_lea.vmem %s0, %s593
          %s595 = smul.u32 2, %s42
        $region80: #{pointnet_forward.1} parent=75 // pred_fallthru
          _
      $region76: #{pointnet_forward.1} parent=5 // pred_fallthru
        _
      %p596 = scmp.le.s32.totalorder 1, %s34
      %p597 = scmp.lt.s32.totalorder %s34, 5
      %p598 = pnand %p596, %p597
      %p599 = pneg %p598
      // Predicated region
      $region81: #{pointnet_forward.1} parent=5 // pred_check
        _
      $region82: #{pointnet_forward.1} parent=5 // pred_check_branch
        %601 = sbr.rel (%p598) target = $region84
      $region83: #{pointnet_forward.1} parent=5 // pred_region
        %s602 = ssub.s32 %s34, 1
        // Predicated region
        $region85: #{pointnet_forward.1} parent=83 // pred_check
          %p603 = pneg %p137
        $region86: #{pointnet_forward.1} parent=83 // pred_check_branch
          %605 = sbr.rel (%p603) target = $region88
        $region87: #{pointnet_forward.1} parent=83 // pred_region
          %606 = dma.done [#allocation4], 512
        $region88: #{pointnet_forward.1} parent=83 // pred_fallthru
          _
        // Predicated region
        $region89: #{pointnet_forward.1} parent=83 // pred_check
          %p607 = pneg %p179
        $region90: #{pointnet_forward.1} parent=83 // pred_check_branch
          %609 = sbr.rel (%p607) target = $region92
        $region91: #{pointnet_forward.1} parent=83 // pred_region
          %610 = dma.done [#allocation7], 2048
        $region92: #{pointnet_forward.1} parent=83 // pred_fallthru
          _
        // Predicated region
        $region93: #{pointnet_forward.1} parent=83 // pred_check
          %p611 = pneg %p263
        $region94: #{pointnet_forward.1} parent=83 // pred_check_branch
          %613 = sbr.rel (%p611) target = $region96
        $region95: #{pointnet_forward.1} parent=83 // pred_region
          %614 = dma.done [#allocation7], 8192
        $region96: #{pointnet_forward.1} parent=83 // pred_fallthru
          _
        // Predicated region
        $region97: #{pointnet_forward.1} parent=83 // pred_check
          %p615 = pneg %p305
        $region98: #{pointnet_forward.1} parent=83 // pred_check_branch
          %617 = sbr.rel (%p615) target = $region100
        $region99: #{pointnet_forward.1} parent=83 // pred_region
          %618 = dma.done [#allocation10], 2048
        $region100: #{pointnet_forward.1} parent=83 // pred_fallthru
          _
        // Predicated region
        $region101: #{pointnet_forward.1} parent=83 // pred_check
          %p619 = pneg %p347
        $region102: #{pointnet_forward.1} parent=83 // pred_check_branch
          %621 = sbr.rel (%p619) target = $region104
        $region103: #{pointnet_forward.1} parent=83 // pred_region
          %622 = dma.done [#allocation10], 6144
        $region104: #{pointnet_forward.1} parent=83 // pred_fallthru
          _
        %s623 = smul.u32 2, %s44
        %p624 = scmp.lt.s32.totalorder %s43, 1
        %s625 = scalar_select %p624, %s43, 1
        %p626 = scmp.lt.s32.totalorder %s623, 3
        %s627 = scalar_select %p626, %s623, 3
        %s628 = smul.addr %s625, 4
        %s629 = sadd.s32 %s627, %s628
        %s630 = smul.addr %s629, 4
        %s631 = scalar_lea.vmem %s0, %s630
        %p632 = pneg %p74
        %p633 = pneg %p71
        %p634 = pneg %p95
        %p635 = pneg %p92
        %p636 = pneg %p116
        %p637 = pneg %p113
        %p638 = pneg %p137
        %p639 = pneg %p134
        %p640 = pneg %p158
        %p641 = pneg %p155
        %p642 = pneg %p179
        %p643 = pneg %p176
        %p644 = pneg %p200
        %p645 = pneg %p197
        %p646 = pneg %p221
        %p647 = pneg %p218
        %p648 = pneg %p242
        %p649 = pneg %p239
        %p650 = pneg %p263
        %p651 = pneg %p260
        %p652 = pneg %p284
        %p653 = pneg %p281
        %p654 = pneg %p305
        %p655 = pneg %p302
        %p656 = pneg %p326
        %p657 = pneg %p323
        %p658 = pneg %p347
        %p659 = pneg %p344
        %p660 = pneg %p368
        %p661 = pneg %p365
        %p662 = pneg %p389
        %p663 = pneg %p386
        %p664 = pneg %p415
        %p665 = pneg %p412
        %s666 = sand.u32 %s402, 1
        %s667 = scalar_lea.sflag [#allocation5], %s666
        %s668 = sand.u32 %s402, 1
        %s669 = scalar_lea.vmem [#allocation12], %s668
        %p670 = pneg %p441
        %p671 = pneg %p438
        %s672 = sand.u32 %s428, 1
        %s673 = scalar_lea.sflag [#allocation14], %s672
        %s674 = sand.u32 %s428, 1
        %s675 = scalar_lea.vmem [#allocation13], %s674
        %p676 = pneg %p469
        %p677 = pneg %p466
        %s678 = smul.u32 2, %s44
        %p679 = scmp.lt.s32.totalorder %s43, 1
        %s680 = scalar_select %p679, %s43, 1
        %p681 = scmp.lt.s32.totalorder %s678, 3
        %s682 = scalar_select %p681, %s678, 3
        %s683 = smul.addr %s682, 4
        %s684 = smul.addr %s680, 16
        %s685 = sadd.s32 %s683, %s684
        %s686 = smul.addr %s685, 8
        %s687 = scalar_lea.vmem %s18, %s686
        %s688 = smul.u32 2, %s44
        %p689 = scmp.lt.s32.totalorder %s43, 1
        %s690 = scalar_select %p689, %s43, 1
        %p691 = scmp.lt.s32.totalorder %s688, 3
        %s692 = scalar_select %p691, %s688, 3
        %s693 = smul.addr %s690, 4
        %s694 = sadd.s32 %s692, %s693
        %s695 = smul.addr %s694, 4
        %s696 = scalar_lea.vmem %s0, %s695
        %s697 = smul.u32 2, %s44
        %s698 = smul.u32 2, %s44
        %p699 = scmp.lt.s32.totalorder %s43, 1
        %s700 = scalar_select %p699, %s43, 1
        %p701 = scmp.lt.s32.totalorder %s698, 3
        %s702 = scalar_select %p701, %s698, 3
        %s703 = smul.addr %s702, 4
        %s704 = smul.addr %s700, 16
        %s705 = sadd.s32 %s703, %s704
        %s706 = smul.addr %s705, 8
        %s707 = scalar_lea.vmem %s18, %s706
        %s708 = smul.u32 2, %s44
        %p710 = scmp.eq.s32.totalorder %s44, 0
        // Predicated region
        $region105: #{pointnet_forward.1} parent=83 // pred_check
          %p711 = pneg %p710
        $region106: #{pointnet_forward.1} parent=83 // pred_check_branch
          %713 = sbr.rel (%p711) target = $region108
        $region107: #{pointnet_forward.1} parent=83 // pred_region
          %v714 = vlaneseq
          %vm715 = vcmp.ge.s32.totalorder %v714, 0
          %vm716 = vcmp.lt.s32.totalorder %v714, 512
          %vm717 = vmand %vm715, %vm716
          %718 = vst.msk [vmem:[#allocation2] sm:$0xf] %vm717, -inf
        $region108: #{pointnet_forward.1} parent=83 // pred_fallthru
          _
        %v719 = vld [vmem:[%s696] sm:$0xf]
        %v720 = vld [vmem:[%s696 + $0x4] sm:$0xf]
        %v721 = vld [vmem:[%s1] sm:$0x3]
        %v722 = vld [vmem:[%s2] sm:$0x1]
        %v724 = vlaneseq
        %v725 = vshrl.u32 %v724, 7
        %v726 = vsub.s32 0, %v725
        %v727 = vrot.slane %v722, %v726
        %v731 = vunpack.c.l.b16 %v719
        %v732 = vunpack.c.l.b16 %v720
        %v733 = vpack.c.b16 %v732, %v731
        %vm734 = vcmask 31744
        %v736 = vsel %vm734, %v733, 0
        %vm738 = vcmask 1041408
        %v740 = vsel %vm738, %v721, 0
        %742 = vmatprep.subr.bf16.mxu0 0
        %743 = vmatpush1.bf16.msra.mxu0 0
        %744 = vmatprep.subr.bf16.mxu0 0
        %745 = vmatpush1.bf16.msra.mxu0 0
        %746 = vmatprep.subr.bf16.mxu0 0
        %747 = vmatpush1.bf16.msra.mxu0 0
        %748 = vmatprep.subr.bf16.mxu0 0
        %749 = vmatpush1.bf16.msra.mxu0 0
        %750 = vmatprep.subr.bf16.mxu0 0
        %751 = vmatpush1.bf16.msra.mxu0 0
        %752 = vmatprep.subr.bf16.mxu0 0
        %753 = vmatpush1.bf16.msra.mxu0 0
        %754 = vmatprep.subr.bf16.mxu0 0
        %755 = vmatpush1.bf16.msra.mxu0 0
        %756 = vmatprep.subr.bf16.mxu0 0
        %757 = vmatpush1.bf16.msra.mxu0 %v740
        %758 = vmatprep.subr.bf16.mxu0 0
        %759 = vmatpush2.bf16.msra.mxu0 0
        %760 = vmatprep.subr.bf16.mxu0 0
        %761 = vmatpush2.bf16.msra.mxu0 0
        %762 = vmatprep.subr.bf16.mxu0 0
        %763 = vmatpush2.bf16.msra.mxu0 0
        %764 = vmatprep.subr.bf16.mxu0 0
        %765 = vmatpush2.bf16.msra.mxu0 0
        %766 = vmatprep.subr.bf16.mxu0 0
        %767 = vmatpush2.bf16.msra.mxu0 0
        %768 = vmatprep.subr.bf16.mxu0 0
        %769 = vmatpush2.bf16.msra.mxu0 0
        %770 = vmatprep.subr.bf16.mxu0 0
        %771 = vmatpush2.bf16.msra.mxu0 0
        %772 = vmatprep.subr.bf16.mxu0 0
        %773 = vmatpush2.bf16.msra.mxu0 0
        %774 = vmatprep.mubr.bf16.mxu0 0
        %775 = vmatmul.mubr.bf16.gmra.mxu0 %v736
        %v776 = vpop.f32.mrf.mxu0
        %v777 = vadd.f32 %v727, %v776
        %v778 = vpop.f32.mrf.mxu0
        %v779 = vpop.f32.mrf.mxu0
        %v780 = vadd.f32 %v727, %v779
        %v781 = vpop.f32.mrf.mxu0
        %782 = vdwg.mxu0
        %v783 = vmax.f32 %v777, 0.0
        %v784 = vmax.f32 %v780, 0.0
        %v785 = vpack.c.bf16 %v784, %v783
        %v786 = vld [vmem:[#allocation3] sm:$0xf]
        %v787 = vld [vmem:[#allocation3 + $0x4] sm:$0xf]
        %v788 = vld [vmem:[#allocation3 + $0x8] sm:$0xf]
        %v789 = vld [vmem:[#allocation3 + $0xc] sm:$0xf]
        %v790 = vld [vmem:[#allocation3 + $0x10] sm:$0xf]
        %v791 = vld [vmem:[#allocation3 + $0x14] sm:$0xf]
        %v792 = vld [vmem:[#allocation3 + $0x18] sm:$0xf]
        %v793 = vld [vmem:[#allocation3 + $0x1c] sm:$0xf]
        %v794 = vld [vmem:[%s4] sm:$0x1]
        %v796 = vlaneseq
        %v797 = vshrl.u32 %v796, 7
        %v798 = vsub.s32 0, %v797
        %v799 = vrot.slane %v794, %v798
        %v809 = vunpack.c.l.b16 %v786
        %v810 = vunpack.c.l.b16 %v787
        %v811 = vunpack.c.l.b16 %v788
        %v812 = vunpack.c.l.b16 %v789
        %v813 = vunpack.c.l.b16 %v790
        %v814 = vunpack.c.l.b16 %v791
        %v815 = vunpack.c.l.b16 %v792
        %v816 = vunpack.c.l.b16 %v793
        %v817 = vpack.c.b16 %v810, %v809
        %v818 = vpack.c.b16 %v812, %v811
        %v819 = vpack.c.b16 %v814, %v813
        %v820 = vpack.c.b16 %v816, %v815
        %vm825 = vcmask 523264
        %v827 = vsel %vm825, %v785, 0
        %829 = vmatprep.subr.bf16.mxu0 0
        %830 = vmatpush1.bf16.msra.mxu0 0
        %831 = vmatprep.subr.bf16.mxu0 0
        %832 = vmatpush1.bf16.msra.mxu0 0
        %833 = vmatprep.subr.bf16.mxu0 0
        %834 = vmatpush1.bf16.msra.mxu0 0
        %835 = vmatprep.subr.bf16.mxu0 0
        %836 = vmatpush1.bf16.msra.mxu0 0
        %837 = vmatprep.subr.bf16.mxu0 0
        %838 = vmatpush1.bf16.msra.mxu0 %v820
        %839 = vmatprep.subr.bf16.mxu0 0
        %840 = vmatpush1.bf16.msra.mxu0 %v819
        %841 = vmatprep.subr.bf16.mxu0 0
        %842 = vmatpush1.bf16.msra.mxu0 %v818
        %843 = vmatprep.subr.bf16.mxu0 0
        %844 = vmatpush1.bf16.msra.mxu0 %v817
        %845 = vmatprep.subr.bf16.mxu0 0
        %846 = vmatpush2.bf16.msra.mxu0 0
        %847 = vmatprep.subr.bf16.mxu0 0
        %848 = vmatpush2.bf16.msra.mxu0 0
        %849 = vmatprep.subr.bf16.mxu0 0
        %850 = vmatpush2.bf16.msra.mxu0 0
        %851 = vmatprep.subr.bf16.mxu0 0
        %852 = vmatpush2.bf16.msra.mxu0 0
        %853 = vmatprep.subr.bf16.mxu0 0
        %854 = vmatpush2.bf16.msra.mxu0 0
        %855 = vmatprep.subr.bf16.mxu0 0
        %856 = vmatpush2.bf16.msra.mxu0 0
        %857 = vmatprep.subr.bf16.mxu0 0
        %858 = vmatpush2.bf16.msra.mxu0 0
        %859 = vmatprep.subr.bf16.mxu0 0
        %860 = vmatpush2.bf16.msra.mxu0 0
        %861 = vmatprep.mubr.bf16.mxu0 0
        %862 = vmatmul.mubr.bf16.gmra.mxu0 %v827
        %v863 = vpop.f32.mrf.mxu0
        %v864 = vadd.f32 %v799, %v863
        %v865 = vpop.f32.mrf.mxu0
        %v866 = vpop.f32.mrf.mxu0
        %v867 = vadd.f32 %v799, %v866
        %v868 = vpop.f32.mrf.mxu0
        %869 = vdwg.mxu0
        %v870 = vmax.f32 %v864, 0.0
        %v871 = vmax.f32 %v867, 0.0
        %v872 = vpack.c.bf16 %v871, %v870
        %v873 = vld [vmem:[#allocation6] sm:$0xff]
        %v874 = vld [vmem:[#allocation6 + $0x8] sm:$0xff]
        %v875 = vld [vmem:[#allocation6 + $0x10] sm:$0xff]
        %v876 = vld [vmem:[#allocation6 + $0x18] sm:$0xff]
        %v877 = vld [vmem:[#allocation6 + $0x20] sm:$0xff]
        %v878 = vld [vmem:[#allocation6 + $0x28] sm:$0xff]
        %v879 = vld [vmem:[#allocation6 + $0x30] sm:$0xff]
        %v880 = vld [vmem:[#allocation6 + $0x38] sm:$0xff]
        %v881 = vld [vmem:[#allocation6 + $0x40] sm:$0xff]
        %v882 = vld [vmem:[#allocation6 + $0x48] sm:$0xff]
        %v883 = vld [vmem:[#allocation6 + $0x50] sm:$0xff]
        %v884 = vld [vmem:[#allocation6 + $0x58] sm:$0xff]
        %v885 = vld [vmem:[#allocation6 + $0x60] sm:$0xff]
        %v886 = vld [vmem:[#allocation6 + $0x68] sm:$0xff]
        %v887 = vld [vmem:[#allocation6 + $0x70] sm:$0xff]
        %v888 = vld [vmem:[#allocation6 + $0x78] sm:$0xff]
        %v889 = vld [vmem:[%s6] sm:$0x3]
        %v891 = vlaneseq
        %v892 = vshrl.u32 %v891, 7
        %v893 = vsub.s32 0, %v892
        %v894 = vrot.slane %v889, %v893
        %v895 = vlaneseq
        %v896 = vshrl.u32 %v895, 7
        %v897 = vsub.s32 1, %v896
        %v898 = vrot.slane %v889, %v897
        %v917 = vunpack.c.l.b16 %v873
        %v918 = vunpack.c.h.b16 %v873
        %v919 = vunpack.c.l.b16 %v874
        %v920 = vunpack.c.h.b16 %v874
        %v921 = vunpack.c.l.b16 %v875
        %v922 = vunpack.c.h.b16 %v875
        %v923 = vunpack.c.l.b16 %v876
        %v924 = vunpack.c.h.b16 %v876
        %v925 = vunpack.c.l.b16 %v877
        %v926 = vunpack.c.h.b16 %v877
        %v927 = vunpack.c.l.b16 %v878
        %v928 = vunpack.c.h.b16 %v878
        %v929 = vunpack.c.l.b16 %v879
        %v930 = vunpack.c.h.b16 %v879
        %v931 = vunpack.c.l.b16 %v880
        %v932 = vunpack.c.h.b16 %v880
        %v933 = vunpack.c.l.b16 %v881
        %v934 = vunpack.c.h.b16 %v881
        %v935 = vunpack.c.l.b16 %v882
        %v936 = vunpack.c.h.b16 %v882
        %v937 = vunpack.c.l.b16 %v883
        %v938 = vunpack.c.h.b16 %v883
        %v939 = vunpack.c.l.b16 %v884
        %v940 = vunpack.c.h.b16 %v884
        %v941 = vunpack.c.l.b16 %v885
        %v942 = vunpack.c.h.b16 %v885
        %v943 = vunpack.c.l.b16 %v886
        %v944 = vunpack.c.h.b16 %v886
        %v945 = vunpack.c.l.b16 %v887
        %v946 = vunpack.c.h.b16 %v887
        %v947 = vunpack.c.l.b16 %v888
        %v948 = vunpack.c.h.b16 %v888
        %v949 = vpack.c.b16 %v919, %v917
        %v950 = vpack.c.b16 %v920, %v918
        %v951 = vpack.c.b16 %v923, %v921
        %v952 = vpack.c.b16 %v924, %v922
        %v953 = vpack.c.b16 %v927, %v925
        %v954 = vpack.c.b16 %v928, %v926
        %v955 = vpack.c.b16 %v931, %v929
        %v956 = vpack.c.b16 %v932, %v930
        %v957 = vpack.c.b16 %v935, %v933
        %v958 = vpack.c.b16 %v936, %v934
        %v959 = vpack.c.b16 %v939, %v937
        %v960 = vpack.c.b16 %v940, %v938
        %v961 = vpack.c.b16 %v943, %v941
        %v962 = vpack.c.b16 %v944, %v942
        %v963 = vpack.c.b16 %v947, %v945
        %v964 = vpack.c.b16 %v948, %v946
        %981 = vmatprep.subr.bf16.mxu0 %v964
        %982 = vmatpush1.bf16.msra.mxu0 %v963
        %983 = vmatprep.subr.bf16.mxu0 %v962
        %984 = vmatpush1.bf16.msra.mxu0 %v961
        %985 = vmatprep.subr.bf16.mxu0 %v960
        %986 = vmatpush1.bf16.msra.mxu0 %v959
        %987 = vmatprep.subr.bf16.mxu0 %v958
        %988 = vmatpush1.bf16.msra.mxu0 %v957
        %989 = vmatprep.subr.bf16.mxu0 %v956
        %990 = vmatpush1.bf16.msra.mxu0 %v955
        %991 = vmatprep.subr.bf16.mxu0 %v954
        %992 = vmatpush1.bf16.msra.mxu0 %v953
        %993 = vmatprep.subr.bf16.mxu0 %v952
        %994 = vmatpush1.bf16.msra.mxu0 %v951
        %995 = vmatprep.subr.bf16.mxu0 %v950
        %996 = vmatpush1.bf16.msra.mxu0 %v949
        %997 = vmatprep.subr.bf16.mxu0 0
        %998 = vmatpush2.bf16.msra.mxu0 0
        %999 = vmatprep.subr.bf16.mxu0 0
        %1000 = vmatpush2.bf16.msra.mxu0 0
        %1001 = vmatprep.subr.bf16.mxu0 0
        %1002 = vmatpush2.bf16.msra.mxu0 0
        %1003 = vmatprep.subr.bf16.mxu0 0
        %1004 = vmatpush2.bf16.msra.mxu0 0
        %1005 = vmatprep.subr.bf16.mxu0 0
        %1006 = vmatpush2.bf16.msra.mxu0 0
        %1007 = vmatprep.subr.bf16.mxu0 0
        %1008 = vmatpush2.bf16.msra.mxu0 0
        %1009 = vmatprep.subr.bf16.mxu0 0
        %1010 = vmatpush2.bf16.msra.mxu0 0
        %1011 = vmatprep.subr.bf16.mxu0 0
        %1012 = vmatpush2.bf16.msra.mxu0 0
        %1013 = vmatprep.mubr.bf16.mxu0 0
        %1014 = vmatmul.mubr.bf16.gmra.mxu0 %v872
        %v1015 = vpop.f32.mrf.mxu0
        %v1016 = vadd.f32 %v894, %v1015
        %v1017 = vpop.f32.mrf.mxu0
        %v1018 = vadd.f32 %v898, %v1017
        %v1019 = vpop.f32.mrf.mxu0
        %v1020 = vadd.f32 %v894, %v1019
        %v1021 = vpop.f32.mrf.mxu0
        %v1022 = vadd.f32 %v898, %v1021
        %1023 = vdwg.mxu0
        %v1024 = vmax.f32 %v1016, 0.0
        %v1025 = vmax.f32 %v1018, 0.0
        %v1026 = vmax.f32 %v1020, 0.0
        %v1027 = vmax.f32 %v1022, 0.0
        %v1028 = vpack.c.bf16 %v1026, %v1024
        %v1029 = vpack.c.bf16 %v1027, %v1025
        %v1030 = vld [vmem:[%s7] sm:$0xff]
        %v1031 = vld [vmem:[%s7 + $0x8] sm:$0xff]
        %v1032 = vld [vmem:[%s7 + $0x10] sm:$0xff]
        %v1033 = vld [vmem:[%s7 + $0x18] sm:$0xff]
        %v1034 = vld [vmem:[%s7 + $0x20] sm:$0xff]
        %v1035 = vld [vmem:[%s7 + $0x28] sm:$0xff]
        %v1036 = vld [vmem:[%s7 + $0x30] sm:$0xff]
        %v1037 = vld [vmem:[%s7 + $0x38] sm:$0xff]
        %v1038 = vld [vmem:[%s7 + $0x40] sm:$0xff]
        %v1039 = vld [vmem:[%s7 + $0x48] sm:$0xff]
        %v1040 = vld [vmem:[%s7 + $0x50] sm:$0xff]
        %v1041 = vld [vmem:[%s7 + $0x58] sm:$0xff]
        %v1042 = vld [vmem:[%s7 + $0x60] sm:$0xff]
        %v1043 = vld [vmem:[%s7 + $0x68] sm:$0xff]
        %v1044 = vld [vmem:[%s7 + $0x70] sm:$0xff]
        %v1045 = vld [vmem:[%s7 + $0x78] sm:$0xff]
        %v1046 = vld [vmem:[%s7 + $0x80] sm:$0xff]
        %v1047 = vld [vmem:[%s7 + $0x88] sm:$0xff]
        %v1048 = vld [vmem:[%s7 + $0x90] sm:$0xff]
        %v1049 = vld [vmem:[%s7 + $0x98] sm:$0xff]
        %v1050 = vld [vmem:[%s7 + $0xa0] sm:$0xff]
        %v1051 = vld [vmem:[%s7 + $0xa8] sm:$0xff]
        %v1052 = vld [vmem:[%s7 + $0xb0] sm:$0xff]
        %v1053 = vld [vmem:[%s7 + $0xb8] sm:$0xff]
        %v1054 = vld [vmem:[%s7 + $0xc0] sm:$0xff]
        %v1055 = vld [vmem:[%s7 + $0xc8] sm:$0xff]
        %v1056 = vld [vmem:[%s7 + $0xd0] sm:$0xff]
        %v1057 = vld [vmem:[%s7 + $0xd8] sm:$0xff]
        %v1058 = vld [vmem:[%s7 + $0xe0] sm:$0xff]
        %v1059 = vld [vmem:[%s7 + $0xe8] sm:$0xff]
        %v1060 = vld [vmem:[%s7 + $0xf0] sm:$0xff]
        %v1061 = vld [vmem:[%s7 + $0xf8] sm:$0xff]
        %v1062 = vld [vmem:[%s7 + $0x100] sm:$0xff]
        %v1063 = vld [vmem:[%s7 + $0x108] sm:$0xff]
        %v1064 = vld [vmem:[%s7 + $0x110] sm:$0xff]
        %v1065 = vld [vmem:[%s7 + $0x118] sm:$0xff]
        %v1066 = vld [vmem:[%s7 + $0x120] sm:$0xff]
        %v1067 = vld [vmem:[%s7 + $0x128] sm:$0xff]
        %v1068 = vld [vmem:[%s7 + $0x130] sm:$0xff]
        %v1069 = vld [vmem:[%s7 + $0x138] sm:$0xff]
        %v1070 = vld [vmem:[%s7 + $0x140] sm:$0xff]
        %v1071 = vld [vmem:[%s7 + $0x148] sm:$0xff]
        %v1072 = vld [vmem:[%s7 + $0x150] sm:$0xff]
        %v1073 = vld [vmem:[%s7 + $0x158] sm:$0xff]
        %v1074 = vld [vmem:[%s7 + $0x160] sm:$0xff]
        %v1075 = vld [vmem:[%s7 + $0x168] sm:$0xff]
        %v1076 = vld [vmem:[%s7 + $0x170] sm:$0xff]
        %v1077 = vld [vmem:[%s7 + $0x178] sm:$0xff]
        %v1078 = vld [vmem:[%s7 + $0x180] sm:$0xff]
        %v1079 = vld [vmem:[%s7 + $0x188] sm:$0xff]
        %v1080 = vld [vmem:[%s7 + $0x190] sm:$0xff]
        %v1081 = vld [vmem:[%s7 + $0x198] sm:$0xff]
        %v1082 = vld [vmem:[%s7 + $0x1a0] sm:$0xff]
        %v1083 = vld [vmem:[%s7 + $0x1a8] sm:$0xff]
        %v1084 = vld [vmem:[%s7 + $0x1b0] sm:$0xff]
        %v1085 = vld [vmem:[%s7 + $0x1b8] sm:$0xff]
        %v1086 = vld [vmem:[%s7 + $0x1c0] sm:$0xff]
        %v1087 = vld [vmem:[%s7 + $0x1c8] sm:$0xff]
        %v1088 = vld [vmem:[%s7 + $0x1d0] sm:$0xff]
        %v1089 = vld [vmem:[%s7 + $0x1d8] sm:$0xff]
        %v1090 = vld [vmem:[%s7 + $0x1e0] sm:$0xff]
        %v1091 = vld [vmem:[%s7 + $0x1e8] sm:$0xff]
        %v1092 = vld [vmem:[%s7 + $0x1f0] sm:$0xff]
        %v1093 = vld [vmem:[%s7 + $0x1f8] sm:$0xff]
        %v1094 = vld [vmem:[%s8] sm:$0xf]
        %v1096 = vlaneseq
        %v1097 = vshrl.u32 %v1096, 7
        %v1098 = vsub.s32 0, %v1097
        %v1099 = vrot.slane %v1094, %v1098
        %v1100 = vlaneseq
        %v1101 = vshrl.u32 %v1100, 7
        %v1102 = vsub.s32 1, %v1101
        %v1103 = vrot.slane %v1094, %v1102
        %v1104 = vlaneseq
        %v1105 = vshrl.u32 %v1104, 7
        %v1106 = vsub.s32 2, %v1105
        %v1107 = vrot.slane %v1094, %v1106
        %v1108 = vlaneseq
        %v1109 = vshrl.u32 %v1108, 7
        %v1110 = vsub.s32 3, %v1109
        %v1111 = vrot.slane %v1094, %v1110
        %v1180 = vunpack.c.l.b16 %v1030
        %v1181 = vunpack.c.h.b16 %v1030
        %v1182 = vunpack.c.l.b16 %v1031
        %v1183 = vunpack.c.h.b16 %v1031
        %v1184 = vunpack.c.l.b16 %v1032
        %v1185 = vunpack.c.h.b16 %v1032
        %v1186 = vunpack.c.l.b16 %v1033
        %v1187 = vunpack.c.h.b16 %v1033
        %v1188 = vunpack.c.l.b16 %v1034
        %v1189 = vunpack.c.h.b16 %v1034
        %v1190 = vunpack.c.l.b16 %v1035
        %v1191 = vunpack.c.h.b16 %v1035
        %v1192 = vunpack.c.l.b16 %v1036
        %v1193 = vunpack.c.h.b16 %v1036
        %v1194 = vunpack.c.l.b16 %v1037
        %v1195 = vunpack.c.h.b16 %v1037
        %v1196 = vunpack.c.l.b16 %v1038
        %v1197 = vunpack.c.h.b16 %v1038
        %v1198 = vunpack.c.l.b16 %v1039
        %v1199 = vunpack.c.h.b16 %v1039
        %v1200 = vunpack.c.l.b16 %v1040
        %v1201 = vunpack.c.h.b16 %v1040
        %v1202 = vunpack.c.l.b16 %v1041
        %v1203 = vunpack.c.h.b16 %v1041
        %v1204 = vunpack.c.l.b16 %v1042
        %v1205 = vunpack.c.h.b16 %v1042
        %v1206 = vunpack.c.l.b16 %v1043
        %v1207 = vunpack.c.h.b16 %v1043
        %v1208 = vunpack.c.l.b16 %v1044
        %v1209 = vunpack.c.h.b16 %v1044
        %v1210 = vunpack.c.l.b16 %v1045
        %v1211 = vunpack.c.h.b16 %v1045
        %v1212 = vunpack.c.l.b16 %v1046
        %v1213 = vunpack.c.h.b16 %v1046
        %v1214 = vunpack.c.l.b16 %v1047
        %v1215 = vunpack.c.h.b16 %v1047
        %v1216 = vunpack.c.l.b16 %v1048
        %v1217 = vunpack.c.h.b16 %v1048
        %v1218 = vunpack.c.l.b16 %v1049
        %v1219 = vunpack.c.h.b16 %v1049
        %v1220 = vunpack.c.l.b16 %v1050
        %v1221 = vunpack.c.h.b16 %v1050
        %v1222 = vunpack.c.l.b16 %v1051
        %v1223 = vunpack.c.h.b16 %v1051
        %v1224 = vunpack.c.l.b16 %v1052
        %v1225 = vunpack.c.h.b16 %v1052
        %v1226 = vunpack.c.l.b16 %v1053
        %v1227 = vunpack.c.h.b16 %v1053
        %v1228 = vunpack.c.l.b16 %v1054
        %v1229 = vunpack.c.h.b16 %v1054
        %v1230 = vunpack.c.l.b16 %v1055
        %v1231 = vunpack.c.h.b16 %v1055
        %v1232 = vunpack.c.l.b16 %v1056
        %v1233 = vunpack.c.h.b16 %v1056
        %v1234 = vunpack.c.l.b16 %v1057
        %v1235 = vunpack.c.h.b16 %v1057
        %v1236 = vunpack.c.l.b16 %v1058
        %v1237 = vunpack.c.h.b16 %v1058
        %v1238 = vunpack.c.l.b16 %v1059
        %v1239 = vunpack.c.h.b16 %v1059
        %v1240 = vunpack.c.l.b16 %v1060
        %v1241 = vunpack.c.h.b16 %v1060
        %v1242 = vunpack.c.l.b16 %v1061
        %v1243 = vunpack.c.h.b16 %v1061
        %v1244 = vunpack.c.l.b16 %v1062
        %v1245 = vunpack.c.h.b16 %v1062
        %v1246 = vunpack.c.l.b16 %v1063
        %v1247 = vunpack.c.h.b16 %v1063
        %v1248 = vunpack.c.l.b16 %v1064
        %v1249 = vunpack.c.h.b16 %v1064
        %v1250 = vunpack.c.l.b16 %v1065
        %v1251 = vunpack.c.h.b16 %v1065
        %v1252 = vunpack.c.l.b16 %v1066
        %v1253 = vunpack.c.h.b16 %v1066
        %v1254 = vunpack.c.l.b16 %v1067
        %v1255 = vunpack.c.h.b16 %v1067
        %v1256 = vunpack.c.l.b16 %v1068
        %v1257 = vunpack.c.h.b16 %v1068
        %v1258 = vunpack.c.l.b16 %v1069
        %v1259 = vunpack.c.h.b16 %v1069
        %v1260 = vunpack.c.l.b16 %v1070
        %v1261 = vunpack.c.h.b16 %v1070
        %v1262 = vunpack.c.l.b16 %v1071
        %v1263 = vunpack.c.h.b16 %v1071
        %v1264 = vunpack.c.l.b16 %v1072
        %v1265 = vunpack.c.h.b16 %v1072
        %v1266 = vunpack.c.l.b16 %v1073
        %v1267 = vunpack.c.h.b16 %v1073
        %v1268 = vunpack.c.l.b16 %v1074
        %v1269 = vunpack.c.h.b16 %v1074
        %v1270 = vunpack.c.l.b16 %v1075
        %v1271 = vunpack.c.h.b16 %v1075
        %v1272 = vunpack.c.l.b16 %v1076
        %v1273 = vunpack.c.h.b16 %v1076
        %v1274 = vunpack.c.l.b16 %v1077
        %v1275 = vunpack.c.h.b16 %v1077
        %v1276 = vunpack.c.l.b16 %v1078
        %v1277 = vunpack.c.h.b16 %v1078
        %v1278 = vunpack.c.l.b16 %v1079
        %v1279 = vunpack.c.h.b16 %v1079
        %v1280 = vunpack.c.l.b16 %v1080
        %v1281 = vunpack.c.h.b16 %v1080
        %v1282 = vunpack.c.l.b16 %v1081
        %v1283 = vunpack.c.h.b16 %v1081
        %v1284 = vunpack.c.l.b16 %v1082
        %v1285 = vunpack.c.h.b16 %v1082
        %v1286 = vunpack.c.l.b16 %v1083
        %v1287 = vunpack.c.h.b16 %v1083
        %v1288 = vunpack.c.l.b16 %v1084
        %v1289 = vunpack.c.h.b16 %v1084
        %v1290 = vunpack.c.l.b16 %v1085
        %v1291 = vunpack.c.h.b16 %v1085
        %v1292 = vunpack.c.l.b16 %v1086
        %v1293 = vunpack.c.h.b16 %v1086
        %v1294 = vunpack.c.l.b16 %v1087
        %v1295 = vunpack.c.h.b16 %v1087
        %v1296 = vunpack.c.l.b16 %v1088
        %v1297 = vunpack.c.h.b16 %v1088
        %v1298 = vunpack.c.l.b16 %v1089
        %v1299 = vunpack.c.h.b16 %v1089
        %v1300 = vunpack.c.l.b16 %v1090
        %v1301 = vunpack.c.h.b16 %v1090
        %v1302 = vunpack.c.l.b16 %v1091
        %v1303 = vunpack.c.h.b16 %v1091
        %v1304 = vunpack.c.l.b16 %v1092
        %v1305 = vunpack.c.h.b16 %v1092
        %v1306 = vunpack.c.l.b16 %v1093
        %v1307 = vunpack.c.h.b16 %v1093
        %v1308 = vpack.c.b16 %v1184, %v1180
        %v1309 = vpack.c.b16 %v1185, %v1181
        %v1310 = vpack.c.b16 %v1186, %v1182
        %v1311 = vpack.c.b16 %v1187, %v1183
        %v1312 = vpack.c.b16 %v1192, %v1188
        %v1313 = vpack.c.b16 %v1193, %v1189
        %v1314 = vpack.c.b16 %v1194, %v1190
        %v1315 = vpack.c.b16 %v1195, %v1191
        %v1316 = vpack.c.b16 %v1200, %v1196
        %v1317 = vpack.c.b16 %v1201, %v1197
        %v1318 = vpack.c.b16 %v1202, %v1198
        %v1319 = vpack.c.b16 %v1203, %v1199
        %v1320 = vpack.c.b16 %v1208, %v1204
        %v1321 = vpack.c.b16 %v1209, %v1205
        %v1322 = vpack.c.b16 %v1210, %v1206
        %v1323 = vpack.c.b16 %v1211, %v1207
        %v1324 = vpack.c.b16 %v1216, %v1212
        %v1325 = vpack.c.b16 %v1217, %v1213
        %v1326 = vpack.c.b16 %v1218, %v1214
        %v1327 = vpack.c.b16 %v1219, %v1215
        %v1328 = vpack.c.b16 %v1224, %v1220
        %v1329 = vpack.c.b16 %v1225, %v1221
        %v1330 = vpack.c.b16 %v1226, %v1222
        %v1331 = vpack.c.b16 %v1227, %v1223
        %v1332 = vpack.c.b16 %v1232, %v1228
        %v1333 = vpack.c.b16 %v1233, %v1229
        %v1334 = vpack.c.b16 %v1234, %v1230
        %v1335 = vpack.c.b16 %v1235, %v1231
        %v1336 = vpack.c.b16 %v1240, %v1236
        %v1337 = vpack.c.b16 %v1241, %v1237
        %v1338 = vpack.c.b16 %v1242, %v1238
        %v1339 = vpack.c.b16 %v1243, %v1239
        %v1340 = vpack.c.b16 %v1248, %v1244
        %v1341 = vpack.c.b16 %v1249, %v1245
        %v1342 = vpack.c.b16 %v1250, %v1246
        %v1343 = vpack.c.b16 %v1251, %v1247
        %v1344 = vpack.c.b16 %v1256, %v1252
        %v1345 = vpack.c.b16 %v1257, %v1253
        %v1346 = vpack.c.b16 %v1258, %v1254
        %v1347 = vpack.c.b16 %v1259, %v1255
        %v1348 = vpack.c.b16 %v1264, %v1260
        %v1349 = vpack.c.b16 %v1265, %v1261
        %v1350 = vpack.c.b16 %v1266, %v1262
        %v1351 = vpack.c.b16 %v1267, %v1263
        %v1352 = vpack.c.b16 %v1272, %v1268
        %v1353 = vpack.c.b16 %v1273, %v1269
        %v1354 = vpack.c.b16 %v1274, %v1270
        %v1355 = vpack.c.b16 %v1275, %v1271
        %v1356 = vpack.c.b16 %v1280, %v1276
        %v1357 = vpack.c.b16 %v1281, %v1277
        %v1358 = vpack.c.b16 %v1282, %v1278
        %v1359 = vpack.c.b16 %v1283, %v1279
        %v1360 = vpack.c.b16 %v1288, %v1284
        %v1361 = vpack.c.b16 %v1289, %v1285
        %v1362 = vpack.c.b16 %v1290, %v1286
        %v1363 = vpack.c.b16 %v1291, %v1287
        %v1364 = vpack.c.b16 %v1296, %v1292
        %v1365 = vpack.c.b16 %v1297, %v1293
        %v1366 = vpack.c.b16 %v1298, %v1294
        %v1367 = vpack.c.b16 %v1299, %v1295
        %v1368 = vpack.c.b16 %v1304, %v1300
        %v1369 = vpack.c.b16 %v1305, %v1301
        %v1370 = vpack.c.b16 %v1306, %v1302
        %v1371 = vpack.c.b16 %v1307, %v1303
        %1436 = vmatprep.subr.bf16.mxu0 %v1337
        %1437 = vmatpush1.bf16.msra.mxu0 %v1336
        %1438 = vmatprep.subr.bf16.mxu0 %v1333
        %1439 = vmatpush1.bf16.msra.mxu0 %v1332
        %1440 = vmatprep.subr.bf16.mxu0 %v1329
        %1441 = vmatpush1.bf16.msra.mxu0 %v1328
        %1442 = vmatprep.subr.bf16.mxu0 %v1325
        %1443 = vmatpush1.bf16.msra.mxu0 %v1324
        %1444 = vmatprep.subr.bf16.mxu0 %v1321
        %1445 = vmatpush1.bf16.msra.mxu0 %v1320
        %1446 = vmatprep.subr.bf16.mxu0 %v1317
        %1447 = vmatpush1.bf16.msra.mxu0 %v1316
        %1448 = vmatprep.subr.bf16.mxu0 %v1313
        %1449 = vmatpush1.bf16.msra.mxu0 %v1312
        %1450 = vmatprep.subr.bf16.mxu0 %v1309
        %1451 = vmatpush1.bf16.msra.mxu0 %v1308
        %1452 = vmatprep.subr.bf16.mxu0 %v1369
        %1453 = vmatpush2.bf16.msra.mxu0 %v1368
        %1454 = vmatprep.subr.bf16.mxu0 %v1365
        %1455 = vmatpush2.bf16.msra.mxu0 %v1364
        %1456 = vmatprep.subr.bf16.mxu0 %v1361
        %1457 = vmatpush2.bf16.msra.mxu0 %v1360
        %1458 = vmatprep.subr.bf16.mxu0 %v1357
        %1459 = vmatpush2.bf16.msra.mxu0 %v1356
        %1460 = vmatprep.subr.bf16.mxu0 %v1353
        %1461 = vmatpush2.bf16.msra.mxu0 %v1352
        %1462 = vmatprep.subr.bf16.mxu0 %v1349
        %1463 = vmatpush2.bf16.msra.mxu0 %v1348
        %1464 = vmatprep.subr.bf16.mxu0 %v1345
        %1465 = vmatpush2.bf16.msra.mxu0 %v1344
        %1466 = vmatprep.subr.bf16.mxu0 %v1341
        %1467 = vmatpush2.bf16.msra.mxu0 %v1340
        %1468 = vmatprep.mubr.bf16.mxu0 %v1029
        %1469 = vmatmul.mubr.bf16.gmra.mxu0 %v1028
        %v1470 = vpop.f32.mrf.mxu0
        %v1471 = vadd.f32 %v1099, %v1470
        %v1472 = vpop.f32.mrf.mxu0
        %v1473 = vadd.f32 %v1103, %v1472
        %v1474 = vpop.f32.mrf.mxu0
        %v1475 = vadd.f32 %v1099, %v1474
        %v1476 = vpop.f32.mrf.mxu0
        %v1477 = vadd.f32 %v1103, %v1476
        %1478 = vdwg.mxu0
        %1479 = vmatprep.subr.bf16.mxu0 %v1339
        %1480 = vmatpush1.bf16.msra.mxu0 %v1338
        %1481 = vmatprep.subr.bf16.mxu0 %v1335
        %1482 = vmatpush1.bf16.msra.mxu0 %v1334
        %1483 = vmatprep.subr.bf16.mxu0 %v1331
        %1484 = vmatpush1.bf16.msra.mxu0 %v1330
        %1485 = vmatprep.subr.bf16.mxu0 %v1327
        %1486 = vmatpush1.bf16.msra.mxu0 %v1326
        %1487 = vmatprep.subr.bf16.mxu0 %v1323
        %1488 = vmatpush1.bf16.msra.mxu0 %v1322
        %1489 = vmatprep.subr.bf16.mxu0 %v1319
        %1490 = vmatpush1.bf16.msra.mxu0 %v1318
        %1491 = vmatprep.subr.bf16.mxu0 %v1315
        %1492 = vmatpush1.bf16.msra.mxu0 %v1314
        %1493 = vmatprep.subr.bf16.mxu0 %v1311
        %1494 = vmatpush1.bf16.msra.mxu0 %v1310
        %1495 = vmatprep.subr.bf16.mxu0 %v1371
        %1496 = vmatpush2.bf16.msra.mxu0 %v1370
        %1497 = vmatprep.subr.bf16.mxu0 %v1367
        %1498 = vmatpush2.bf16.msra.mxu0 %v1366
        %1499 = vmatprep.subr.bf16.mxu0 %v1363
        %1500 = vmatpush2.bf16.msra.mxu0 %v1362
        %1501 = vmatprep.subr.bf16.mxu0 %v1359
        %1502 = vmatpush2.bf16.msra.mxu0 %v1358
        %1503 = vmatprep.subr.bf16.mxu0 %v1355
        %1504 = vmatpush2.bf16.msra.mxu0 %v1354
        %1505 = vmatprep.subr.bf16.mxu0 %v1351
        %1506 = vmatpush2.bf16.msra.mxu0 %v1350
        %1507 = vmatprep.subr.bf16.mxu0 %v1347
        %1508 = vmatpush2.bf16.msra.mxu0 %v1346
        %1509 = vmatprep.subr.bf16.mxu0 %v1343
        %1510 = vmatpush2.bf16.msra.mxu0 %v1342
        %1511 = vmatprep.mubr.bf16.mxu0 %v1029
        %1512 = vmatmul.mubr.bf16.gmra.mxu0 %v1028
        %v1513 = vpop.f32.mrf.mxu0
        %v1514 = vadd.f32 %v1107, %v1513
        %v1515 = vpop.f32.mrf.mxu0
        %v1516 = vadd.f32 %v1111, %v1515
        %v1517 = vpop.f32.mrf.mxu0
        %v1518 = vadd.f32 %v1107, %v1517
        %v1519 = vpop.f32.mrf.mxu0
        %v1520 = vadd.f32 %v1111, %v1519
        %1521 = vdwg.mxu0
        %1522 = vst [vmem:[%s707] sm:$0xff] %v1471
        %1523 = vst [vmem:[%s707 + $0x8] sm:$0xff] %v1473
        %1524 = vst [vmem:[%s707 + $0x10] sm:$0xff] %v1514
        %1525 = vst [vmem:[%s707 + $0x18] sm:$0xff] %v1516
        %1526 = vst [vmem:[%s707 + $0x20] sm:$0xff] %v1475
        %1527 = vst [vmem:[%s707 + $0x28] sm:$0xff] %v1477
        %1528 = vst [vmem:[%s707 + $0x30] sm:$0xff] %v1518
        %1529 = vst [vmem:[%s707 + $0x38] sm:$0xff] %v1520
        %s1530 = smul.u32 %s44, 16
        %v1531 = vlaneseq
        %v1532 = vshrl.u32 %v1531, 7
        %v1533 = vadd.s32 %v1532, 8
        %v1534 = vstv %s1530
        %v1535 = vadd.s32 %v1534, %v1532
        %v1536 = vadd.s32 %v1534, %v1533
        %vm1537 = vcmp.lt.s32.totalorder %v1535, 20
        %vm1538 = vcmp.lt.s32.totalorder %v1536, 20
        %v1539 = vsel %vm1537, 1, 0
        %v1540 = vsel %vm1538, 1, 0
        %vm1541 = vcmp.eq.s32.totalorder %v1539, 1
        %vm1542 = vcmp.eq.s32.totalorder %v1540, 1
        %v1543 = vsel %vm1541, %v1471, -inf
        %v1544 = vsel %vm1541, %v1473, -inf
        %v1545 = vsel %vm1541, %v1514, -inf
        %v1546 = vsel %vm1541, %v1516, -inf
        %v1547 = vsel %vm1542, %v1475, -inf
        %v1548 = vsel %vm1542, %v1477, -inf
        %v1549 = vsel %vm1542, %v1518, -inf
        %v1550 = vsel %vm1542, %v1520, -inf
        %v1551 = vld [vmem:[#allocation2] sm:$0xf]
        %v1552 = vmax.f32 %v1543, %v1547
        %v1553 = vrot.slane %v1552, 4
        %v1554 = vmax.f32 %v1552, %v1553
        %v1555 = vrot.slane %v1554, 2
        %v1556 = vmax.f32 %v1554, %v1555
        %v1557 = vrot.slane %v1556, 1
        %v1558 = vmax.f32 %v1556, %v1557
        %v1559 = vmax.f32 %v1544, %v1548
        %v1560 = vrot.slane %v1559, 4
        %v1561 = vmax.f32 %v1559, %v1560
        %v1562 = vrot.slane %v1561, 2
        %v1563 = vmax.f32 %v1561, %v1562
        %v1564 = vrot.slane %v1563, 1
        %v1565 = vmax.f32 %v1563, %v1564
        %v1566 = vmax.f32 %v1545, %v1549
        %v1567 = vrot.slane %v1566, 4
        %v1568 = vmax.f32 %v1566, %v1567
        %v1569 = vrot.slane %v1568, 2
        %v1570 = vmax.f32 %v1568, %v1569
        %v1571 = vrot.slane %v1570, 1
        %v1572 = vmax.f32 %v1570, %v1571
        %v1573 = vmax.f32 %v1546, %v1550
        %v1574 = vrot.slane %v1573, 4
        %v1575 = vmax.f32 %v1573, %v1574
        %v1576 = vrot.slane %v1575, 2
        %v1577 = vmax.f32 %v1575, %v1576
        %v1578 = vrot.slane %v1577, 1
        %v1579 = vmax.f32 %v1577, %v1578
        %v1584 = vcombine.low %v1558, %v1565
        %v1585 = vcombine.low %v1572, %v1579
        %v1587 = vunpack.c.l.s4 1966171168
        %v1588 = vunpack.c.0.s8 %v1587
        %v1589 = vlaneseq
        %v1590 = vshrl.u32 %v1589, 7
        %v1591 = vsub.s32 %v1588, %v1590
        %v1592 = vrot.slane %v1584, %v1591
        %v1594 = vunpack.c.l.s4 1966171168
        %v1595 = vunpack.c.0.s8 %v1594
        %v1596 = vlaneseq
        %v1597 = vshrl.u32 %v1596, 7
        %v1598 = vsub.s32 %v1595, %v1597
        %v1599 = vrot.slane %v1585, %v1598
        %v1600 = vcombine.low %v1592, %v1599
        %v1602 = vunpack.c.l.s4 1966171168
        %v1603 = vunpack.c.0.s8 %v1602
        %v1604 = vlaneseq
        %v1605 = vshrl.u32 %v1604, 7
        %v1606 = vsub.s32 %v1603, %v1605
        %v1607 = vrot.slane %v1600, %v1606
        %v1609 = vmax.f32 %v1551, %v1607
        %v1610 = vlaneseq
        %vm1611 = vcmp.ge.s32.totalorder %v1610, 0
        %vm1612 = vcmp.lt.s32.totalorder %v1610, 512
        %vm1613 = vmand %vm1611, %vm1612
        %1614 = vst.msk [vmem:[#allocation2] sm:$0xf] %vm1613, %v1609
        %p1615 = scmp.eq.s32.totalorder %s44, 1
        // Predicated region
        $region109: #{pointnet_forward.1} parent=83 // pred_check
          %p1616 = pneg %p1615
        $region110: #{pointnet_forward.1} parent=83 // pred_check_branch
          %1618 = sbr.rel (%p1616) target = $region112
        $region111: #{pointnet_forward.1} parent=83 // pred_region
          %v1619 = vld [vmem:[#allocation2] sm:$0xf]
          %v1621 = vlaneseq
          %v1622 = vshrl.u32 %v1621, 7
          %v1623 = vsub.s32 0, %v1622
          %v1624 = vrot.slane %v1619, %v1623
          %v1625 = vlaneseq
          %v1626 = vshrl.u32 %v1625, 7
          %v1627 = vsub.s32 1, %v1626
          %v1628 = vrot.slane %v1619, %v1627
          %v1629 = vlaneseq
          %v1630 = vshrl.u32 %v1629, 7
          %v1631 = vsub.s32 2, %v1630
          %v1632 = vrot.slane %v1619, %v1631
          %v1633 = vlaneseq
          %v1634 = vshrl.u32 %v1633, 7
          %v1635 = vsub.s32 3, %v1634
          %v1636 = vrot.slane %v1619, %v1635
          %v1641 = vpack.c.bf16 %v1624, %v1624
          %v1642 = vpack.c.bf16 %v1628, %v1628
          %v1643 = vpack.c.bf16 %v1632, %v1632
          %v1644 = vpack.c.bf16 %v1636, %v1636
          %v1645 = vld [vmem:[#allocation8] sm:$0xff]
          %v1646 = vld [vmem:[#allocation8 + $0x8] sm:$0xff]
          %v1647 = vld [vmem:[#allocation8 + $0x10] sm:$0xff]
          %v1648 = vld [vmem:[#allocation8 + $0x18] sm:$0xff]
          %v1649 = vld [vmem:[#allocation8 + $0x20] sm:$0xff]
          %v1650 = vld [vmem:[#allocation8 + $0x28] sm:$0xff]
          %v1651 = vld [vmem:[#allocation8 + $0x30] sm:$0xff]
          %v1652 = vld [vmem:[#allocation8 + $0x38] sm:$0xff]
          %v1653 = vld [vmem:[#allocation8 + $0x40] sm:$0xff]
          %v1654 = vld [vmem:[#allocation8 + $0x48] sm:$0xff]
          %v1655 = vld [vmem:[#allocation8 + $0x50] sm:$0xff]
          %v1656 = vld [vmem:[#allocation8 + $0x58] sm:$0xff]
          %v1657 = vld [vmem:[#allocation8 + $0x60] sm:$0xff]
          %v1658 = vld [vmem:[#allocation8 + $0x68] sm:$0xff]
          %v1659 = vld [vmem:[#allocation8 + $0x70] sm:$0xff]
          %v1660 = vld [vmem:[#allocation8 + $0x78] sm:$0xff]
          %v1661 = vld [vmem:[#allocation8 + $0x80] sm:$0xff]
          %v1662 = vld [vmem:[#allocation8 + $0x88] sm:$0xff]
          %v1663 = vld [vmem:[#allocation8 + $0x90] sm:$0xff]
          %v1664 = vld [vmem:[#allocation8 + $0x98] sm:$0xff]
          %v1665 = vld [vmem:[#allocation8 + $0xa0] sm:$0xff]
          %v1666 = vld [vmem:[#allocation8 + $0xa8] sm:$0xff]
          %v1667 = vld [vmem:[#allocation8 + $0xb0] sm:$0xff]
          %v1668 = vld [vmem:[#allocation8 + $0xb8] sm:$0xff]
          %v1669 = vld [vmem:[#allocation8 + $0xc0] sm:$0xff]
          %v1670 = vld [vmem:[#allocation8 + $0xc8] sm:$0xff]
          %v1671 = vld [vmem:[#allocation8 + $0xd0] sm:$0xff]
          %v1672 = vld [vmem:[#allocation8 + $0xd8] sm:$0xff]
          %v1673 = vld [vmem:[#allocation8 + $0xe0] sm:$0xff]
          %v1674 = vld [vmem:[#allocation8 + $0xe8] sm:$0xff]
          %v1675 = vld [vmem:[#allocation8 + $0xf0] sm:$0xff]
          %v1676 = vld [vmem:[#allocation8 + $0xf8] sm:$0xff]
          %v1677 = vld [vmem:[#allocation8 + $0x100] sm:$0xff]
          %v1678 = vld [vmem:[#allocation8 + $0x108] sm:$0xff]
          %v1679 = vld [vmem:[#allocation8 + $0x110] sm:$0xff]
          %v1680 = vld [vmem:[#allocation8 + $0x118] sm:$0xff]
          %v1681 = vld [vmem:[#allocation8 + $0x120] sm:$0xff]
          %v1682 = vld [vmem:[#allocation8 + $0x128] sm:$0xff]
          %v1683 = vld [vmem:[#allocation8 + $0x130] sm:$0xff]
          %v1684 = vld [vmem:[#allocation8 + $0x138] sm:$0xff]
          %v1685 = vld [vmem:[#allocation8 + $0x140] sm:$0xff]
          %v1686 = vld [vmem:[#allocation8 + $0x148] sm:$0xff]
          %v1687 = vld [vmem:[#allocation8 + $0x150] sm:$0xff]
          %v1688 = vld [vmem:[#allocation8 + $0x158] sm:$0xff]
          %v1689 = vld [vmem:[#allocation8 + $0x160] sm:$0xff]
          %v1690 = vld [vmem:[#allocation8 + $0x168] sm:$0xff]
          %v1691 = vld [vmem:[#allocation8 + $0x170] sm:$0xff]
          %v1692 = vld [vmem:[#allocation8 + $0x178] sm:$0xff]
          %v1693 = vld [vmem:[#allocation8 + $0x180] sm:$0xff]
          %v1694 = vld [vmem:[#allocation8 + $0x188] sm:$0xff]
          %v1695 = vld [vmem:[#allocation8 + $0x190] sm:$0xff]
          %v1696 = vld [vmem:[#allocation8 + $0x198] sm:$0xff]
          %v1697 = vld [vmem:[#allocation8 + $0x1a0] sm:$0xff]
          %v1698 = vld [vmem:[#allocation8 + $0x1a8] sm:$0xff]
          %v1699 = vld [vmem:[#allocation8 + $0x1b0] sm:$0xff]
          %v1700 = vld [vmem:[#allocation8 + $0x1b8] sm:$0xff]
          %v1701 = vld [vmem:[#allocation8 + $0x1c0] sm:$0xff]
          %v1702 = vld [vmem:[#allocation8 + $0x1c8] sm:$0xff]
          %v1703 = vld [vmem:[#allocation8 + $0x1d0] sm:$0xff]
          %v1704 = vld [vmem:[#allocation8 + $0x1d8] sm:$0xff]
          %v1705 = vld [vmem:[#allocation8 + $0x1e0] sm:$0xff]
          %v1706 = vld [vmem:[#allocation8 + $0x1e8] sm:$0xff]
          %v1707 = vld [vmem:[#allocation8 + $0x1f0] sm:$0xff]
          %v1708 = vld [vmem:[#allocation8 + $0x1f8] sm:$0xff]
          %v1709 = vld [vmem:[%s10] sm:$0x3]
          %v1774 = vunpack.c.l.b16 %v1645
          %v1775 = vunpack.c.h.b16 %v1645
          %v1776 = vunpack.c.l.b16 %v1646
          %v1777 = vunpack.c.h.b16 %v1646
          %v1778 = vunpack.c.l.b16 %v1647
          %v1779 = vunpack.c.h.b16 %v1647
          %v1780 = vunpack.c.l.b16 %v1648
          %v1781 = vunpack.c.h.b16 %v1648
          %v1782 = vunpack.c.l.b16 %v1649
          %v1783 = vunpack.c.h.b16 %v1649
          %v1784 = vunpack.c.l.b16 %v1650
          %v1785 = vunpack.c.h.b16 %v1650
          %v1786 = vunpack.c.l.b16 %v1651
          %v1787 = vunpack.c.h.b16 %v1651
          %v1788 = vunpack.c.l.b16 %v1652
          %v1789 = vunpack.c.h.b16 %v1652
          %v1790 = vunpack.c.l.b16 %v1653
          %v1791 = vunpack.c.h.b16 %v1653
          %v1792 = vunpack.c.l.b16 %v1654
          %v1793 = vunpack.c.h.b16 %v1654
          %v1794 = vunpack.c.l.b16 %v1655
          %v1795 = vunpack.c.h.b16 %v1655
          %v1796 = vunpack.c.l.b16 %v1656
          %v1797 = vunpack.c.h.b16 %v1656
          %v1798 = vunpack.c.l.b16 %v1657
          %v1799 = vunpack.c.h.b16 %v1657
          %v1800 = vunpack.c.l.b16 %v1658
          %v1801 = vunpack.c.h.b16 %v1658
          %v1802 = vunpack.c.l.b16 %v1659
          %v1803 = vunpack.c.h.b16 %v1659
          %v1804 = vunpack.c.l.b16 %v1660
          %v1805 = vunpack.c.h.b16 %v1660
          %v1806 = vunpack.c.l.b16 %v1661
          %v1807 = vunpack.c.h.b16 %v1661
          %v1808 = vunpack.c.l.b16 %v1662
          %v1809 = vunpack.c.h.b16 %v1662
          %v1810 = vunpack.c.l.b16 %v1663
          %v1811 = vunpack.c.h.b16 %v1663
          %v1812 = vunpack.c.l.b16 %v1664
          %v1813 = vunpack.c.h.b16 %v1664
          %v1814 = vunpack.c.l.b16 %v1665
          %v1815 = vunpack.c.h.b16 %v1665
          %v1816 = vunpack.c.l.b16 %v1666
          %v1817 = vunpack.c.h.b16 %v1666
          %v1818 = vunpack.c.l.b16 %v1667
          %v1819 = vunpack.c.h.b16 %v1667
          %v1820 = vunpack.c.l.b16 %v1668
          %v1821 = vunpack.c.h.b16 %v1668
          %v1822 = vunpack.c.l.b16 %v1669
          %v1823 = vunpack.c.h.b16 %v1669
          %v1824 = vunpack.c.l.b16 %v1670
          %v1825 = vunpack.c.h.b16 %v1670
          %v1826 = vunpack.c.l.b16 %v1671
          %v1827 = vunpack.c.h.b16 %v1671
          %v1828 = vunpack.c.l.b16 %v1672
          %v1829 = vunpack.c.h.b16 %v1672
          %v1830 = vunpack.c.l.b16 %v1673
          %v1831 = vunpack.c.h.b16 %v1673
          %v1832 = vunpack.c.l.b16 %v1674
          %v1833 = vunpack.c.h.b16 %v1674
          %v1834 = vunpack.c.l.b16 %v1675
          %v1835 = vunpack.c.h.b16 %v1675
          %v1836 = vunpack.c.l.b16 %v1676
          %v1837 = vunpack.c.h.b16 %v1676
          %v1838 = vunpack.c.l.b16 %v1677
          %v1839 = vunpack.c.h.b16 %v1677
          %v1840 = vunpack.c.l.b16 %v1678
          %v1841 = vunpack.c.h.b16 %v1678
          %v1842 = vunpack.c.l.b16 %v1679
          %v1843 = vunpack.c.h.b16 %v1679
          %v1844 = vunpack.c.l.b16 %v1680
          %v1845 = vunpack.c.h.b16 %v1680
          %v1846 = vunpack.c.l.b16 %v1681
          %v1847 = vunpack.c.h.b16 %v1681
          %v1848 = vunpack.c.l.b16 %v1682
          %v1849 = vunpack.c.h.b16 %v1682
          %v1850 = vunpack.c.l.b16 %v1683
          %v1851 = vunpack.c.h.b16 %v1683
          %v1852 = vunpack.c.l.b16 %v1684
          %v1853 = vunpack.c.h.b16 %v1684
          %v1854 = vunpack.c.l.b16 %v1685
          %v1855 = vunpack.c.h.b16 %v1685
          %v1856 = vunpack.c.l.b16 %v1686
          %v1857 = vunpack.c.h.b16 %v1686
          %v1858 = vunpack.c.l.b16 %v1687
          %v1859 = vunpack.c.h.b16 %v1687
          %v1860 = vunpack.c.l.b16 %v1688
          %v1861 = vunpack.c.h.b16 %v1688
          %v1862 = vunpack.c.l.b16 %v1689
          %v1863 = vunpack.c.h.b16 %v1689
          %v1864 = vunpack.c.l.b16 %v1690
          %v1865 = vunpack.c.h.b16 %v1690
          %v1866 = vunpack.c.l.b16 %v1691
          %v1867 = vunpack.c.h.b16 %v1691
          %v1868 = vunpack.c.l.b16 %v1692
          %v1869 = vunpack.c.h.b16 %v1692
          %v1870 = vunpack.c.l.b16 %v1693
          %v1871 = vunpack.c.h.b16 %v1693
          %v1872 = vunpack.c.l.b16 %v1694
          %v1873 = vunpack.c.h.b16 %v1694
          %v1874 = vunpack.c.l.b16 %v1695
          %v1875 = vunpack.c.h.b16 %v1695
          %v1876 = vunpack.c.l.b16 %v1696
          %v1877 = vunpack.c.h.b16 %v1696
          %v1878 = vunpack.c.l.b16 %v1697
          %v1879 = vunpack.c.h.b16 %v1697
          %v1880 = vunpack.c.l.b16 %v1698
          %v1881 = vunpack.c.h.b16 %v1698
          %v1882 = vunpack.c.l.b16 %v1699
          %v1883 = vunpack.c.h.b16 %v1699
          %v1884 = vunpack.c.l.b16 %v1700
          %v1885 = vunpack.c.h.b16 %v1700
          %v1886 = vunpack.c.l.b16 %v1701
          %v1887 = vunpack.c.h.b16 %v1701
          %v1888 = vunpack.c.l.b16 %v1702
          %v1889 = vunpack.c.h.b16 %v1702
          %v1890 = vunpack.c.l.b16 %v1703
          %v1891 = vunpack.c.h.b16 %v1703
          %v1892 = vunpack.c.l.b16 %v1704
          %v1893 = vunpack.c.h.b16 %v1704
          %v1894 = vunpack.c.l.b16 %v1705
          %v1895 = vunpack.c.h.b16 %v1705
          %v1896 = vunpack.c.l.b16 %v1706
          %v1897 = vunpack.c.h.b16 %v1706
          %v1898 = vunpack.c.l.b16 %v1707
          %v1899 = vunpack.c.h.b16 %v1707
          %v1900 = vunpack.c.l.b16 %v1708
          %v1901 = vunpack.c.h.b16 %v1708
          %v1902 = vpack.c.b16 %v1776, %v1774
          %v1903 = vpack.c.b16 %v1777, %v1775
          %v1904 = vpack.c.b16 %v1780, %v1778
          %v1905 = vpack.c.b16 %v1781, %v1779
          %v1906 = vpack.c.b16 %v1784, %v1782
          %v1907 = vpack.c.b16 %v1785, %v1783
          %v1908 = vpack.c.b16 %v1788, %v1786
          %v1909 = vpack.c.b16 %v1789, %v1787
          %v1910 = vpack.c.b16 %v1792, %v1790
          %v1911 = vpack.c.b16 %v1793, %v1791
          %v1912 = vpack.c.b16 %v1796, %v1794
          %v1913 = vpack.c.b16 %v1797, %v1795
          %v1914 = vpack.c.b16 %v1800, %v1798
          %v1915 = vpack.c.b16 %v1801, %v1799
          %v1916 = vpack.c.b16 %v1804, %v1802
          %v1917 = vpack.c.b16 %v1805, %v1803
          %v1918 = vpack.c.b16 %v1808, %v1806
          %v1919 = vpack.c.b16 %v1809, %v1807
          %v1920 = vpack.c.b16 %v1812, %v1810
          %v1921 = vpack.c.b16 %v1813, %v1811
          %v1922 = vpack.c.b16 %v1816, %v1814
          %v1923 = vpack.c.b16 %v1817, %v1815
          %v1924 = vpack.c.b16 %v1820, %v1818
          %v1925 = vpack.c.b16 %v1821, %v1819
          %v1926 = vpack.c.b16 %v1824, %v1822
          %v1927 = vpack.c.b16 %v1825, %v1823
          %v1928 = vpack.c.b16 %v1828, %v1826
          %v1929 = vpack.c.b16 %v1829, %v1827
          %v1930 = vpack.c.b16 %v1832, %v1830
          %v1931 = vpack.c.b16 %v1833, %v1831
          %v1932 = vpack.c.b16 %v1836, %v1834
          %v1933 = vpack.c.b16 %v1837, %v1835
          %v1934 = vpack.c.b16 %v1840, %v1838
          %v1935 = vpack.c.b16 %v1841, %v1839
          %v1936 = vpack.c.b16 %v1844, %v1842
          %v1937 = vpack.c.b16 %v1845, %v1843
          %v1938 = vpack.c.b16 %v1848, %v1846
          %v1939 = vpack.c.b16 %v1849, %v1847
          %v1940 = vpack.c.b16 %v1852, %v1850
          %v1941 = vpack.c.b16 %v1853, %v1851
          %v1942 = vpack.c.b16 %v1856, %v1854
          %v1943 = vpack.c.b16 %v1857, %v1855
          %v1944 = vpack.c.b16 %v1860, %v1858
          %v1945 = vpack.c.b16 %v1861, %v1859
          %v1946 = vpack.c.b16 %v1864, %v1862
          %v1947 = vpack.c.b16 %v1865, %v1863
          %v1948 = vpack.c.b16 %v1868, %v1866
          %v1949 = vpack.c.b16 %v1869, %v1867
          %v1950 = vpack.c.b16 %v1872, %v1870
          %v1951 = vpack.c.b16 %v1873, %v1871
          %v1952 = vpack.c.b16 %v1876, %v1874
          %v1953 = vpack.c.b16 %v1877, %v1875
          %v1954 = vpack.c.b16 %v1880, %v1878
          %v1955 = vpack.c.b16 %v1881, %v1879
          %v1956 = vpack.c.b16 %v1884, %v1882
          %v1957 = vpack.c.b16 %v1885, %v1883
          %v1958 = vpack.c.b16 %v1888, %v1886
          %v1959 = vpack.c.b16 %v1889, %v1887
          %v1960 = vpack.c.b16 %v1892, %v1890
          %v1961 = vpack.c.b16 %v1893, %v1891
          %v1962 = vpack.c.b16 %v1896, %v1894
          %v1963 = vpack.c.b16 %v1897, %v1895
          %v1964 = vpack.c.b16 %v1900, %v1898
          %v1965 = vpack.c.b16 %v1901, %v1899
          %v2031 = vlaneseq
          %v2032 = vshrl.u32 %v2031, 7
          %v2033 = vsub.s32 0, %v2032
          %v2034 = vrot.slane %v1709, %v2033
          %v2035 = vlaneseq
          %v2036 = vshrl.u32 %v2035, 7
          %v2037 = vsub.s32 1, %v2036
          %v2038 = vrot.slane %v1709, %v2037
          %2041 = vmatprep.subr.bf16.mxu0 %v1917
          %2042 = vmatpush1.bf16.msra.mxu0 %v1916
          %2043 = vmatprep.subr.bf16.mxu0 %v1915
          %2044 = vmatpush1.bf16.msra.mxu0 %v1914
          %2045 = vmatprep.subr.bf16.mxu0 %v1913
          %2046 = vmatpush1.bf16.msra.mxu0 %v1912
          %2047 = vmatprep.subr.bf16.mxu0 %v1911
          %2048 = vmatpush1.bf16.msra.mxu0 %v1910
          %2049 = vmatprep.subr.bf16.mxu0 %v1909
          %2050 = vmatpush1.bf16.msra.mxu0 %v1908
          %2051 = vmatprep.subr.bf16.mxu0 %v1907
          %2052 = vmatpush1.bf16.msra.mxu0 %v1906
          %2053 = vmatprep.subr.bf16.mxu0 %v1905
          %2054 = vmatpush1.bf16.msra.mxu0 %v1904
          %2055 = vmatprep.subr.bf16.mxu0 %v1903
          %2056 = vmatpush1.bf16.msra.mxu0 %v1902
          %2057 = vmatprep.subr.bf16.mxu0 %v1933
          %2058 = vmatpush2.bf16.msra.mxu0 %v1932
          %2059 = vmatprep.subr.bf16.mxu0 %v1931
          %2060 = vmatpush2.bf16.msra.mxu0 %v1930
          %2061 = vmatprep.subr.bf16.mxu0 %v1929
          %2062 = vmatpush2.bf16.msra.mxu0 %v1928
          %2063 = vmatprep.subr.bf16.mxu0 %v1927
          %2064 = vmatpush2.bf16.msra.mxu0 %v1926
          %2065 = vmatprep.subr.bf16.mxu0 %v1925
          %2066 = vmatpush2.bf16.msra.mxu0 %v1924
          %2067 = vmatprep.subr.bf16.mxu0 %v1923
          %2068 = vmatpush2.bf16.msra.mxu0 %v1922
          %2069 = vmatprep.subr.bf16.mxu0 %v1921
          %2070 = vmatpush2.bf16.msra.mxu0 %v1920
          %2071 = vmatprep.subr.bf16.mxu0 %v1919
          %2072 = vmatpush2.bf16.msra.mxu0 %v1918
          %2073 = vmatprep.mubr.bf16.mxu0 %v1642
          %2074 = vmatmul.mubr.bf16.gmra.mxu0 %v1641
          %v2075 = vpop.f32.mrf.mxu0
          %v2076 = vadd.f32 %v2034, %v2075
          %v2077 = vpop.f32.mrf.mxu0
          %v2078 = vadd.f32 %v2038, %v2077
          %v2079 = vpop.f32.mrf.mxu0
          %v2080 = vpop.f32.mrf.mxu0
          %2081 = vdwg.mxu0
          %2082 = vmatprep.subr.bf16.mxu0 %v1949
          %2083 = vmatpush1.bf16.msra.mxu0 %v1948
          %2084 = vmatprep.subr.bf16.mxu0 %v1947
          %2085 = vmatpush1.bf16.msra.mxu0 %v1946
          %2086 = vmatprep.subr.bf16.mxu0 %v1945
          %2087 = vmatpush1.bf16.msra.mxu0 %v1944
          %2088 = vmatprep.subr.bf16.mxu0 %v1943
          %2089 = vmatpush1.bf16.msra.mxu0 %v1942
          %2090 = vmatprep.subr.bf16.mxu0 %v1941
          %2091 = vmatpush1.bf16.msra.mxu0 %v1940
          %2092 = vmatprep.subr.bf16.mxu0 %v1939
          %2093 = vmatpush1.bf16.msra.mxu0 %v1938
          %2094 = vmatprep.subr.bf16.mxu0 %v1937
          %2095 = vmatpush1.bf16.msra.mxu0 %v1936
          %2096 = vmatprep.subr.bf16.mxu0 %v1935
          %2097 = vmatpush1.bf16.msra.mxu0 %v1934
          %2098 = vmatprep.subr.bf16.mxu0 %v1965
          %2099 = vmatpush2.bf16.msra.mxu0 %v1964
          %2100 = vmatprep.subr.bf16.mxu0 %v1963
          %2101 = vmatpush2.bf16.msra.mxu0 %v1962
          %2102 = vmatprep.subr.bf16.mxu0 %v1961
          %2103 = vmatpush2.bf16.msra.mxu0 %v1960
          %2104 = vmatprep.subr.bf16.mxu0 %v1959
          %2105 = vmatpush2.bf16.msra.mxu0 %v1958
          %2106 = vmatprep.subr.bf16.mxu0 %v1957
          %2107 = vmatpush2.bf16.msra.mxu0 %v1956
          %2108 = vmatprep.subr.bf16.mxu0 %v1955
          %2109 = vmatpush2.bf16.msra.mxu0 %v1954
          %2110 = vmatprep.subr.bf16.mxu0 %v1953
          %2111 = vmatpush2.bf16.msra.mxu0 %v1952
          %2112 = vmatprep.subr.bf16.mxu0 %v1951
          %2113 = vmatpush2.bf16.msra.mxu0 %v1950
          %2114 = vmatprep.mubr.bf16.mxu0 %v1644
          %2115 = vmatmul.mubr.bf16.gmra.mxu0 %v1643
          %v2116 = vpop.f32.mrf.mxu0
          %v2117 = vadd.f32 %v2076, %v2116
          %v2118 = vpop.f32.mrf.mxu0
          %v2119 = vadd.f32 %v2078, %v2118
          %v2120 = vpop.f32.mrf.mxu0
          %v2121 = vpop.f32.mrf.mxu0
          %2122 = vdwg.mxu0
          %v2123 = vmax.f32 %v2117, 0.0
          %v2124 = vmax.f32 %v2119, 0.0
          %v2125 = vpack.c.bf16 %v2123, %v2123
          %v2126 = vpack.c.bf16 %v2124, %v2124
          %v2127 = vld [vmem:[#allocation9] sm:$0xf]
          %v2128 = vld [vmem:[#allocation9 + $0x4] sm:$0xf]
          %v2129 = vld [vmem:[#allocation9 + $0x8] sm:$0xf]
          %v2130 = vld [vmem:[#allocation9 + $0xc] sm:$0xf]
          %v2131 = vld [vmem:[#allocation9 + $0x10] sm:$0xf]
          %v2132 = vld [vmem:[#allocation9 + $0x14] sm:$0xf]
          %v2133 = vld [vmem:[#allocation9 + $0x18] sm:$0xf]
          %v2134 = vld [vmem:[#allocation9 + $0x1c] sm:$0xf]
          %v2135 = vld [vmem:[#allocation9 + $0x20] sm:$0xf]
          %v2136 = vld [vmem:[#allocation9 + $0x24] sm:$0xf]
          %v2137 = vld [vmem:[#allocation9 + $0x28] sm:$0xf]
          %v2138 = vld [vmem:[#allocation9 + $0x2c] sm:$0xf]
          %v2139 = vld [vmem:[#allocation9 + $0x30] sm:$0xf]
          %v2140 = vld [vmem:[#allocation9 + $0x34] sm:$0xf]
          %v2141 = vld [vmem:[#allocation9 + $0x38] sm:$0xf]
          %v2142 = vld [vmem:[#allocation9 + $0x3c] sm:$0xf]
          %v2143 = vld [vmem:[#allocation9 + $0x40] sm:$0xf]
          %v2144 = vld [vmem:[#allocation9 + $0x44] sm:$0xf]
          %v2145 = vld [vmem:[#allocation9 + $0x48] sm:$0xf]
          %v2146 = vld [vmem:[#allocation9 + $0x4c] sm:$0xf]
          %v2147 = vld [vmem:[#allocation9 + $0x50] sm:$0xf]
          %v2148 = vld [vmem:[#allocation9 + $0x54] sm:$0xf]
          %v2149 = vld [vmem:[#allocation9 + $0x58] sm:$0xf]
          %v2150 = vld [vmem:[#allocation9 + $0x5c] sm:$0xf]
          %v2151 = vld [vmem:[#allocation9 + $0x60] sm:$0xf]
          %v2152 = vld [vmem:[#allocation9 + $0x64] sm:$0xf]
          %v2153 = vld [vmem:[#allocation9 + $0x68] sm:$0xf]
          %v2154 = vld [vmem:[#allocation9 + $0x6c] sm:$0xf]
          %v2155 = vld [vmem:[#allocation9 + $0x70] sm:$0xf]
          %v2156 = vld [vmem:[#allocation9 + $0x74] sm:$0xf]
          %v2157 = vld [vmem:[#allocation9 + $0x78] sm:$0xf]
          %v2158 = vld [vmem:[#allocation9 + $0x7c] sm:$0xf]
          %v2159 = vld [vmem:[%s12] sm:$0x1]
          %v2192 = vunpack.c.l.b16 %v2127
          %v2193 = vunpack.c.l.b16 %v2128
          %v2194 = vunpack.c.l.b16 %v2129
          %v2195 = vunpack.c.l.b16 %v2130
          %v2196 = vunpack.c.l.b16 %v2131
          %v2197 = vunpack.c.l.b16 %v2132
          %v2198 = vunpack.c.l.b16 %v2133
          %v2199 = vunpack.c.l.b16 %v2134
          %v2200 = vunpack.c.l.b16 %v2135
          %v2201 = vunpack.c.l.b16 %v2136
          %v2202 = vunpack.c.l.b16 %v2137
          %v2203 = vunpack.c.l.b16 %v2138
          %v2204 = vunpack.c.l.b16 %v2139
          %v2205 = vunpack.c.l.b16 %v2140
          %v2206 = vunpack.c.l.b16 %v2141
          %v2207 = vunpack.c.l.b16 %v2142
          %v2208 = vunpack.c.l.b16 %v2143
          %v2209 = vunpack.c.l.b16 %v2144
          %v2210 = vunpack.c.l.b16 %v2145
          %v2211 = vunpack.c.l.b16 %v2146
          %v2212 = vunpack.c.l.b16 %v2147
          %v2213 = vunpack.c.l.b16 %v2148
          %v2214 = vunpack.c.l.b16 %v2149
          %v2215 = vunpack.c.l.b16 %v2150
          %v2216 = vunpack.c.l.b16 %v2151
          %v2217 = vunpack.c.l.b16 %v2152
          %v2218 = vunpack.c.l.b16 %v2153
          %v2219 = vunpack.c.l.b16 %v2154
          %v2220 = vunpack.c.l.b16 %v2155
          %v2221 = vunpack.c.l.b16 %v2156
          %v2222 = vunpack.c.l.b16 %v2157
          %v2223 = vunpack.c.l.b16 %v2158
          %v2224 = vpack.c.b16 %v2193, %v2192
          %v2225 = vpack.c.b16 %v2195, %v2194
          %v2226 = vpack.c.b16 %v2197, %v2196
          %v2227 = vpack.c.b16 %v2199, %v2198
          %v2228 = vpack.c.b16 %v2201, %v2200
          %v2229 = vpack.c.b16 %v2203, %v2202
          %v2230 = vpack.c.b16 %v2205, %v2204
          %v2231 = vpack.c.b16 %v2207, %v2206
          %v2232 = vpack.c.b16 %v2209, %v2208
          %v2233 = vpack.c.b16 %v2211, %v2210
          %v2234 = vpack.c.b16 %v2213, %v2212
          %v2235 = vpack.c.b16 %v2215, %v2214
          %v2236 = vpack.c.b16 %v2217, %v2216
          %v2237 = vpack.c.b16 %v2219, %v2218
          %v2238 = vpack.c.b16 %v2221, %v2220
          %v2239 = vpack.c.b16 %v2223, %v2222
          %2256 = vmatprep.subr.bf16.mxu0 0
          %2257 = vmatpush1.bf16.msra.mxu0 %v2231
          %2258 = vmatprep.subr.bf16.mxu0 0
          %2259 = vmatpush1.bf16.msra.mxu0 %v2230
          %2260 = vmatprep.subr.bf16.mxu0 0
          %2261 = vmatpush1.bf16.msra.mxu0 %v2229
          %2262 = vmatprep.subr.bf16.mxu0 0
          %2263 = vmatpush1.bf16.msra.mxu0 %v2228
          %2264 = vmatprep.subr.bf16.mxu0 0
          %2265 = vmatpush1.bf16.msra.mxu0 %v2227
          %2266 = vmatprep.subr.bf16.mxu0 0
          %2267 = vmatpush1.bf16.msra.mxu0 %v2226
          %2268 = vmatprep.subr.bf16.mxu0 0
          %2269 = vmatpush1.bf16.msra.mxu0 %v2225
          %2270 = vmatprep.subr.bf16.mxu0 0
          %2271 = vmatpush1.bf16.msra.mxu0 %v2224
          %2272 = vmatprep.subr.bf16.mxu0 0
          %2273 = vmatpush2.bf16.msra.mxu0 %v2239
          %2274 = vmatprep.subr.bf16.mxu0 0
          %2275 = vmatpush2.bf16.msra.mxu0 %v2238
          %2276 = vmatprep.subr.bf16.mxu0 0
          %2277 = vmatpush2.bf16.msra.mxu0 %v2237
          %2278 = vmatprep.subr.bf16.mxu0 0
          %2279 = vmatpush2.bf16.msra.mxu0 %v2236
          %2280 = vmatprep.subr.bf16.mxu0 0
          %2281 = vmatpush2.bf16.msra.mxu0 %v2235
          %2282 = vmatprep.subr.bf16.mxu0 0
          %2283 = vmatpush2.bf16.msra.mxu0 %v2234
          %2284 = vmatprep.subr.bf16.mxu0 0
          %2285 = vmatpush2.bf16.msra.mxu0 %v2233
          %2286 = vmatprep.subr.bf16.mxu0 0
          %2287 = vmatpush2.bf16.msra.mxu0 %v2232
          %2288 = vmatprep.mubr.bf16.mxu0 %v2126
          %2289 = vmatmul.mubr.bf16.gmra.mxu0 %v2125
          %v2290 = vpop.f32.mrf.mxu0
          %v2291 = vadd.f32 %v2159, %v2290
          %v2292 = vpop.f32.mrf.mxu0
          %v2293 = vpop.f32.mrf.mxu0
          %v2294 = vpop.f32.mrf.mxu0
          %2295 = vdwg.mxu0
          %v2296 = vmax.f32 %v2291, 0.0
          %2297 = vst [vmem:[%s675] sm:$0x1] %v2296
          %v2298 = vpack.c.bf16 %v2296, %v2296
          %v2299 = vld [vmem:[#allocation11] sm:$0xff]
          %v2300 = vld [vmem:[#allocation11 + $0x8] sm:$0xff]
          %v2301 = vld [vmem:[#allocation11 + $0x10] sm:$0xff]
          %v2302 = vld [vmem:[#allocation11 + $0x18] sm:$0xff]
          %v2303 = vld [vmem:[#allocation11 + $0x20] sm:$0xff]
          %v2304 = vld [vmem:[#allocation11 + $0x28] sm:$0xff]
          %v2305 = vld [vmem:[#allocation11 + $0x30] sm:$0xff]
          %v2306 = vld [vmem:[#allocation11 + $0x38] sm:$0xff]
          %v2307 = vld [vmem:[#allocation11 + $0x40] sm:$0xff]
          %v2308 = vld [vmem:[#allocation11 + $0x48] sm:$0xff]
          %v2309 = vld [vmem:[#allocation11 + $0x50] sm:$0xff]
          %v2310 = vld [vmem:[#allocation11 + $0x58] sm:$0xff]
          %v2311 = vld [vmem:[#allocation11 + $0x60] sm:$0xff]
          %v2312 = vld [vmem:[#allocation11 + $0x68] sm:$0xff]
          %v2313 = vld [vmem:[#allocation11 + $0x70] sm:$0xff]
          %v2314 = vld [vmem:[#allocation11 + $0x78] sm:$0xff]
          %v2315 = vld [vmem:[#allocation11 + $0x80] sm:$0xff]
          %v2316 = vld [vmem:[#allocation11 + $0x88] sm:$0xff]
          %v2317 = vld [vmem:[#allocation11 + $0x90] sm:$0xff]
          %v2318 = vld [vmem:[#allocation11 + $0x98] sm:$0xff]
          %v2319 = vld [vmem:[#allocation11 + $0xa0] sm:$0xff]
          %v2320 = vld [vmem:[#allocation11 + $0xa8] sm:$0xff]
          %v2321 = vld [vmem:[#allocation11 + $0xb0] sm:$0xff]
          %v2322 = vld [vmem:[#allocation11 + $0xb8] sm:$0xff]
          %v2323 = vld [vmem:[#allocation11 + $0xc0] sm:$0xff]
          %v2324 = vld [vmem:[#allocation11 + $0xc8] sm:$0xff]
          %v2325 = vld [vmem:[#allocation11 + $0xd0] sm:$0xff]
          %v2326 = vld [vmem:[#allocation11 + $0xd8] sm:$0xff]
          %v2327 = vld [vmem:[#allocation11 + $0xe0] sm:$0xff]
          %v2328 = vld [vmem:[#allocation11 + $0xe8] sm:$0xff]
          %v2329 = vld [vmem:[#allocation11 + $0xf0] sm:$0xff]
          %v2330 = vld [vmem:[#allocation11 + $0xf8] sm:$0xff]
          %v2331 = vld [vmem:[#allocation11 + $0x100] sm:$0xff]
          %v2332 = vld [vmem:[#allocation11 + $0x108] sm:$0xff]
          %v2333 = vld [vmem:[#allocation11 + $0x110] sm:$0xff]
          %v2334 = vld [vmem:[#allocation11 + $0x118] sm:$0xff]
          %v2335 = vld [vmem:[#allocation11 + $0x120] sm:$0xff]
          %v2336 = vld [vmem:[#allocation11 + $0x128] sm:$0xff]
          %v2337 = vld [vmem:[#allocation11 + $0x130] sm:$0xff]
          %v2338 = vld [vmem:[#allocation11 + $0x138] sm:$0xff]
          %v2339 = vld [vmem:[#allocation11 + $0x140] sm:$0xff]
          %v2340 = vld [vmem:[#allocation11 + $0x148] sm:$0xff]
          %v2341 = vld [vmem:[#allocation11 + $0x150] sm:$0xff]
          %v2342 = vld [vmem:[#allocation11 + $0x158] sm:$0xff]
          %v2343 = vld [vmem:[#allocation11 + $0x160] sm:$0xff]
          %v2344 = vld [vmem:[#allocation11 + $0x168] sm:$0xff]
          %v2345 = vld [vmem:[#allocation11 + $0x170] sm:$0xff]
          %v2346 = vld [vmem:[#allocation11 + $0x178] sm:$0xff]
          %v2347 = vld [vmem:[%s14] sm:$0x3f]
          %v2396 = vunpack.c.l.b16 %v2299
          %v2397 = vunpack.c.h.b16 %v2299
          %v2398 = vunpack.c.l.b16 %v2300
          %v2399 = vunpack.c.h.b16 %v2300
          %v2400 = vunpack.c.l.b16 %v2301
          %v2401 = vunpack.c.h.b16 %v2301
          %v2402 = vunpack.c.l.b16 %v2302
          %v2403 = vunpack.c.h.b16 %v2302
          %v2404 = vunpack.c.l.b16 %v2303
          %v2405 = vunpack.c.h.b16 %v2303
          %v2406 = vunpack.c.l.b16 %v2304
          %v2407 = vunpack.c.h.b16 %v2304
          %v2408 = vunpack.c.l.b16 %v2305
          %v2409 = vunpack.c.h.b16 %v2305
          %v2410 = vunpack.c.l.b16 %v2306
          %v2411 = vunpack.c.h.b16 %v2306
          %v2412 = vunpack.c.l.b16 %v2307
          %v2413 = vunpack.c.h.b16 %v2307
          %v2414 = vunpack.c.l.b16 %v2308
          %v2415 = vunpack.c.h.b16 %v2308
          %v2416 = vunpack.c.l.b16 %v2309
          %v2417 = vunpack.c.h.b16 %v2309
          %v2418 = vunpack.c.l.b16 %v2310
          %v2419 = vunpack.c.h.b16 %v2310
          %v2420 = vunpack.c.l.b16 %v2311
          %v2421 = vunpack.c.h.b16 %v2311
          %v2422 = vunpack.c.l.b16 %v2312
          %v2423 = vunpack.c.h.b16 %v2312
          %v2424 = vunpack.c.l.b16 %v2313
          %v2425 = vunpack.c.h.b16 %v2313
          %v2426 = vunpack.c.l.b16 %v2314
          %v2427 = vunpack.c.h.b16 %v2314
          %v2428 = vunpack.c.l.b16 %v2315
          %v2429 = vunpack.c.h.b16 %v2315
          %v2430 = vunpack.c.l.b16 %v2316
          %v2431 = vunpack.c.h.b16 %v2316
          %v2432 = vunpack.c.l.b16 %v2317
          %v2433 = vunpack.c.h.b16 %v2317
          %v2434 = vunpack.c.l.b16 %v2318
          %v2435 = vunpack.c.h.b16 %v2318
          %v2436 = vunpack.c.l.b16 %v2319
          %v2437 = vunpack.c.h.b16 %v2319
          %v2438 = vunpack.c.l.b16 %v2320
          %v2439 = vunpack.c.h.b16 %v2320
          %v2440 = vunpack.c.l.b16 %v2321
          %v2441 = vunpack.c.h.b16 %v2321
          %v2442 = vunpack.c.l.b16 %v2322
          %v2443 = vunpack.c.h.b16 %v2322
          %v2444 = vunpack.c.l.b16 %v2323
          %v2445 = vunpack.c.h.b16 %v2323
          %v2446 = vunpack.c.l.b16 %v2324
          %v2447 = vunpack.c.h.b16 %v2324
          %v2448 = vunpack.c.l.b16 %v2325
          %v2449 = vunpack.c.h.b16 %v2325
          %v2450 = vunpack.c.l.b16 %v2326
          %v2451 = vunpack.c.h.b16 %v2326
          %v2452 = vunpack.c.l.b16 %v2327
          %v2453 = vunpack.c.h.b16 %v2327
          %v2454 = vunpack.c.l.b16 %v2328
          %v2455 = vunpack.c.h.b16 %v2328
          %v2456 = vunpack.c.l.b16 %v2329
          %v2457 = vunpack.c.h.b16 %v2329
          %v2458 = vunpack.c.l.b16 %v2330
          %v2459 = vunpack.c.h.b16 %v2330
          %v2460 = vunpack.c.l.b16 %v2331
          %v2461 = vunpack.c.h.b16 %v2331
          %v2462 = vunpack.c.l.b16 %v2332
          %v2463 = vunpack.c.h.b16 %v2332
          %v2464 = vunpack.c.l.b16 %v2333
          %v2465 = vunpack.c.h.b16 %v2333
          %v2466 = vunpack.c.l.b16 %v2334
          %v2467 = vunpack.c.h.b16 %v2334
          %v2468 = vunpack.c.l.b16 %v2335
          %v2469 = vunpack.c.h.b16 %v2335
          %v2470 = vunpack.c.l.b16 %v2336
          %v2471 = vunpack.c.h.b16 %v2336
          %v2472 = vunpack.c.l.b16 %v2337
          %v2473 = vunpack.c.h.b16 %v2337
          %v2474 = vunpack.c.l.b16 %v2338
          %v2475 = vunpack.c.h.b16 %v2338
          %v2476 = vunpack.c.l.b16 %v2339
          %v2477 = vunpack.c.h.b16 %v2339
          %v2478 = vunpack.c.l.b16 %v2340
          %v2479 = vunpack.c.h.b16 %v2340
          %v2480 = vunpack.c.l.b16 %v2341
          %v2481 = vunpack.c.h.b16 %v2341
          %v2482 = vunpack.c.l.b16 %v2342
          %v2483 = vunpack.c.h.b16 %v2342
          %v2484 = vunpack.c.l.b16 %v2343
          %v2485 = vunpack.c.h.b16 %v2343
          %v2486 = vunpack.c.l.b16 %v2344
          %v2487 = vunpack.c.h.b16 %v2344
          %v2488 = vunpack.c.l.b16 %v2345
          %v2489 = vunpack.c.h.b16 %v2345
          %v2490 = vunpack.c.l.b16 %v2346
          %v2491 = vunpack.c.h.b16 %v2346
          %v2492 = vpack.c.b16 %v2402, %v2396
          %v2493 = vpack.c.b16 %v2403, %v2397
          %v2494 = vpack.c.b16 %v2404, %v2398
          %v2495 = vpack.c.b16 %v2405, %v2399
          %v2496 = vpack.c.b16 %v2406, %v2400
          %v2497 = vpack.c.b16 %v2407, %v2401
          %v2498 = vpack.c.b16 %v2414, %v2408
          %v2499 = vpack.c.b16 %v2415, %v2409
          %v2500 = vpack.c.b16 %v2416, %v2410
          %v2501 = vpack.c.b16 %v2417, %v2411
          %v2502 = vpack.c.b16 %v2418, %v2412
          %v2503 = vpack.c.b16 %v2419, %v2413
          %v2504 = vpack.c.b16 %v2426, %v2420
          %v2505 = vpack.c.b16 %v2427, %v2421
          %v2506 = vpack.c.b16 %v2428, %v2422
          %v2507 = vpack.c.b16 %v2429, %v2423
          %v2508 = vpack.c.b16 %v2430, %v2424
          %v2509 = vpack.c.b16 %v2431, %v2425
          %v2510 = vpack.c.b16 %v2438, %v2432
          %v2511 = vpack.c.b16 %v2439, %v2433
          %v2512 = vpack.c.b16 %v2440, %v2434
          %v2513 = vpack.c.b16 %v2441, %v2435
          %v2514 = vpack.c.b16 %v2442, %v2436
          %v2515 = vpack.c.b16 %v2443, %v2437
          %v2516 = vpack.c.b16 %v2450, %v2444
          %v2517 = vpack.c.b16 %v2451, %v2445
          %v2518 = vpack.c.b16 %v2452, %v2446
          %v2519 = vpack.c.b16 %v2453, %v2447
          %v2520 = vpack.c.b16 %v2454, %v2448
          %v2521 = vpack.c.b16 %v2455, %v2449
          %v2522 = vpack.c.b16 %v2462, %v2456
          %v2523 = vpack.c.b16 %v2463, %v2457
          %v2524 = vpack.c.b16 %v2464, %v2458
          %v2525 = vpack.c.b16 %v2465, %v2459
          %v2526 = vpack.c.b16 %v2466, %v2460
          %v2527 = vpack.c.b16 %v2467, %v2461
          %v2528 = vpack.c.b16 %v2474, %v2468
          %v2529 = vpack.c.b16 %v2475, %v2469
          %v2530 = vpack.c.b16 %v2476, %v2470
          %v2531 = vpack.c.b16 %v2477, %v2471
          %v2532 = vpack.c.b16 %v2478, %v2472
          %v2533 = vpack.c.b16 %v2479, %v2473
          %v2534 = vpack.c.b16 %v2486, %v2480
          %v2535 = vpack.c.b16 %v2487, %v2481
          %v2536 = vpack.c.b16 %v2488, %v2482
          %v2537 = vpack.c.b16 %v2489, %v2483
          %v2538 = vpack.c.b16 %v2490, %v2484
          %v2539 = vpack.c.b16 %v2491, %v2485
          %v2589 = vlaneseq
          %v2590 = vshrl.u32 %v2589, 7
          %v2591 = vsub.s32 0, %v2590
          %v2592 = vrot.slane %v2347, %v2591
          %v2593 = vlaneseq
          %v2594 = vshrl.u32 %v2593, 7
          %v2595 = vsub.s32 1, %v2594
          %v2596 = vrot.slane %v2347, %v2595
          %v2597 = vlaneseq
          %v2598 = vshrl.u32 %v2597, 7
          %v2599 = vsub.s32 2, %v2598
          %v2600 = vrot.slane %v2347, %v2599
          %v2601 = vlaneseq
          %v2602 = vshrl.u32 %v2601, 7
          %v2603 = vsub.s32 3, %v2602
          %v2604 = vrot.slane %v2347, %v2603
          %v2605 = vlaneseq
          %v2606 = vshrl.u32 %v2605, 7
          %v2607 = vsub.s32 4, %v2606
          %v2608 = vrot.slane %v2347, %v2607
          %v2609 = vlaneseq
          %v2610 = vshrl.u32 %v2609, 7
          %v2611 = vsub.s32 5, %v2610
          %v2612 = vrot.slane %v2347, %v2611
          %2619 = vmatprep.subr.bf16.mxu0 %v2535
          %2620 = vmatpush1.bf16.msra.mxu0 %v2534
          %2621 = vmatprep.subr.bf16.mxu0 %v2529
          %2622 = vmatpush1.bf16.msra.mxu0 %v2528
          %2623 = vmatprep.subr.bf16.mxu0 %v2523
          %2624 = vmatpush1.bf16.msra.mxu0 %v2522
          %2625 = vmatprep.subr.bf16.mxu0 %v2517
          %2626 = vmatpush1.bf16.msra.mxu0 %v2516
          %2627 = vmatprep.subr.bf16.mxu0 %v2511
          %2628 = vmatpush1.bf16.msra.mxu0 %v2510
          %2629 = vmatprep.subr.bf16.mxu0 %v2505
          %2630 = vmatpush1.bf16.msra.mxu0 %v2504
          %2631 = vmatprep.subr.bf16.mxu0 %v2499
          %2632 = vmatpush1.bf16.msra.mxu0 %v2498
          %2633 = vmatprep.subr.bf16.mxu0 %v2493
          %2634 = vmatpush1.bf16.msra.mxu0 %v2492
          %2635 = vmatprep.subr.bf16.mxu0 0
          %2636 = vmatpush2.bf16.msra.mxu0 0
          %2637 = vmatprep.subr.bf16.mxu0 0
          %2638 = vmatpush2.bf16.msra.mxu0 0
          %2639 = vmatprep.subr.bf16.mxu0 0
          %2640 = vmatpush2.bf16.msra.mxu0 0
          %2641 = vmatprep.subr.bf16.mxu0 0
          %2642 = vmatpush2.bf16.msra.mxu0 0
          %2643 = vmatprep.subr.bf16.mxu0 0
          %2644 = vmatpush2.bf16.msra.mxu0 0
          %2645 = vmatprep.subr.bf16.mxu0 0
          %2646 = vmatpush2.bf16.msra.mxu0 0
          %2647 = vmatprep.subr.bf16.mxu0 0
          %2648 = vmatpush2.bf16.msra.mxu0 0
          %2649 = vmatprep.subr.bf16.mxu0 0
          %2650 = vmatpush2.bf16.msra.mxu0 0
          %2651 = vmatprep.mubr.bf16.mxu0 0
          %2652 = vmatmul.mubr.bf16.gmra.mxu0 %v2298
          %v2653 = vpop.f32.mrf.mxu0
          %v2654 = vadd.f32 %v2592, %v2653
          %v2655 = vpop.f32.mrf.mxu0
          %v2656 = vadd.f32 %v2596, %v2655
          %v2657 = vpop.f32.mrf.mxu0
          %v2658 = vpop.f32.mrf.mxu0
          %2659 = vdwg.mxu0
          %2660 = vmatprep.subr.bf16.mxu0 %v2537
          %2661 = vmatpush1.bf16.msra.mxu0 %v2536
          %2662 = vmatprep.subr.bf16.mxu0 %v2531
          %2663 = vmatpush1.bf16.msra.mxu0 %v2530
          %2664 = vmatprep.subr.bf16.mxu0 %v2525
          %2665 = vmatpush1.bf16.msra.mxu0 %v2524
          %2666 = vmatprep.subr.bf16.mxu0 %v2519
          %2667 = vmatpush1.bf16.msra.mxu0 %v2518
          %2668 = vmatprep.subr.bf16.mxu0 %v2513
          %2669 = vmatpush1.bf16.msra.mxu0 %v2512
          %2670 = vmatprep.subr.bf16.mxu0 %v2507
          %2671 = vmatpush1.bf16.msra.mxu0 %v2506
          %2672 = vmatprep.subr.bf16.mxu0 %v2501
          %2673 = vmatpush1.bf16.msra.mxu0 %v2500
          %2674 = vmatprep.subr.bf16.mxu0 %v2495
          %2675 = vmatpush1.bf16.msra.mxu0 %v2494
          %2676 = vmatprep.subr.bf16.mxu0 0
          %2677 = vmatpush2.bf16.msra.mxu0 0
          %2678 = vmatprep.subr.bf16.mxu0 0
          %2679 = vmatpush2.bf16.msra.mxu0 0
          %2680 = vmatprep.subr.bf16.mxu0 0
          %2681 = vmatpush2.bf16.msra.mxu0 0
          %2682 = vmatprep.subr.bf16.mxu0 0
          %2683 = vmatpush2.bf16.msra.mxu0 0
          %2684 = vmatprep.subr.bf16.mxu0 0
          %2685 = vmatpush2.bf16.msra.mxu0 0
          %2686 = vmatprep.subr.bf16.mxu0 0
          %2687 = vmatpush2.bf16.msra.mxu0 0
          %2688 = vmatprep.subr.bf16.mxu0 0
          %2689 = vmatpush2.bf16.msra.mxu0 0
          %2690 = vmatprep.subr.bf16.mxu0 0
          %2691 = vmatpush2.bf16.msra.mxu0 0
          %2692 = vmatprep.mubr.bf16.mxu0 0
          %2693 = vmatmul.mubr.bf16.gmra.mxu0 %v2298
          %v2694 = vpop.f32.mrf.mxu0
          %v2695 = vadd.f32 %v2600, %v2694
          %v2696 = vpop.f32.mrf.mxu0
          %v2697 = vadd.f32 %v2604, %v2696
          %v2698 = vpop.f32.mrf.mxu0
          %v2699 = vpop.f32.mrf.mxu0
          %2700 = vdwg.mxu0
          %2701 = vmatprep.subr.bf16.mxu0 %v2539
          %2702 = vmatpush1.bf16.msra.mxu0 %v2538
          %2703 = vmatprep.subr.bf16.mxu0 %v2533
          %2704 = vmatpush1.bf16.msra.mxu0 %v2532
          %2705 = vmatprep.subr.bf16.mxu0 %v2527
          %2706 = vmatpush1.bf16.msra.mxu0 %v2526
          %2707 = vmatprep.subr.bf16.mxu0 %v2521
          %2708 = vmatpush1.bf16.msra.mxu0 %v2520
          %2709 = vmatprep.subr.bf16.mxu0 %v2515
          %2710 = vmatpush1.bf16.msra.mxu0 %v2514
          %2711 = vmatprep.subr.bf16.mxu0 %v2509
          %2712 = vmatpush1.bf16.msra.mxu0 %v2508
          %2713 = vmatprep.subr.bf16.mxu0 %v2503
          %2714 = vmatpush1.bf16.msra.mxu0 %v2502
          %2715 = vmatprep.subr.bf16.mxu0 %v2497
          %2716 = vmatpush1.bf16.msra.mxu0 %v2496
          %2717 = vmatprep.subr.bf16.mxu0 0
          %2718 = vmatpush2.bf16.msra.mxu0 0
          %2719 = vmatprep.subr.bf16.mxu0 0
          %2720 = vmatpush2.bf16.msra.mxu0 0
          %2721 = vmatprep.subr.bf16.mxu0 0
          %2722 = vmatpush2.bf16.msra.mxu0 0
          %2723 = vmatprep.subr.bf16.mxu0 0
          %2724 = vmatpush2.bf16.msra.mxu0 0
          %2725 = vmatprep.subr.bf16.mxu0 0
          %2726 = vmatpush2.bf16.msra.mxu0 0
          %2727 = vmatprep.subr.bf16.mxu0 0
          %2728 = vmatpush2.bf16.msra.mxu0 0
          %2729 = vmatprep.subr.bf16.mxu0 0
          %2730 = vmatpush2.bf16.msra.mxu0 0
          %2731 = vmatprep.subr.bf16.mxu0 0
          %2732 = vmatpush2.bf16.msra.mxu0 0
          %2733 = vmatprep.mubr.bf16.mxu0 0
          %2734 = vmatmul.mubr.bf16.gmra.mxu0 %v2298
          %v2735 = vpop.f32.mrf.mxu0
          %v2736 = vadd.f32 %v2608, %v2735
          %v2737 = vpop.f32.mrf.mxu0
          %v2738 = vadd.f32 %v2612, %v2737
          %v2739 = vpop.f32.mrf.mxu0
          %v2740 = vpop.f32.mrf.mxu0
          %2741 = vdwg.mxu0
          %v2742 = vmax.f32 %v2654, 0.0
          %v2743 = vmax.f32 %v2656, 0.0
          %v2744 = vmax.f32 %v2695, 0.0
          %v2745 = vmax.f32 %v2697, 0.0
          %v2746 = vmax.f32 %v2736, 0.0
          %v2747 = vmax.f32 %v2738, 0.0
          %v2748 = vpack.c.bf16 %v2742, %v2742
          %v2749 = vpack.c.bf16 %v2743, %v2743
          %v2750 = vpack.c.bf16 %v2744, %v2744
          %v2751 = vpack.c.bf16 %v2745, %v2745
          %v2752 = vpack.c.bf16 %v2746, %v2746
          %v2753 = vpack.c.bf16 %v2747, %v2747
          %v2754 = vld [vmem:[%s15] sm:$0xf]
          %v2755 = vld [vmem:[%s15 + $0x4] sm:$0xf]
          %v2756 = vld [vmem:[%s15 + $0x8] sm:$0xf]
          %v2757 = vld [vmem:[%s15 + $0xc] sm:$0xf]
          %v2758 = vld [vmem:[%s15 + $0x10] sm:$0xf]
          %v2759 = vld [vmem:[%s15 + $0x14] sm:$0xf]
          %v2760 = vld [vmem:[%s15 + $0x18] sm:$0xf]
          %v2761 = vld [vmem:[%s15 + $0x1c] sm:$0xf]
          %v2762 = vld [vmem:[%s15 + $0x20] sm:$0xf]
          %v2763 = vld [vmem:[%s15 + $0x24] sm:$0xf]
          %v2764 = vld [vmem:[%s15 + $0x28] sm:$0xf]
          %v2765 = vld [vmem:[%s15 + $0x2c] sm:$0xf]
          %v2766 = vld [vmem:[%s15 + $0x30] sm:$0xf]
          %v2767 = vld [vmem:[%s15 + $0x34] sm:$0xf]
          %v2768 = vld [vmem:[%s15 + $0x38] sm:$0xf]
          %v2769 = vld [vmem:[%s15 + $0x3c] sm:$0xf]
          %v2770 = vld [vmem:[%s15 + $0x40] sm:$0xf]
          %v2771 = vld [vmem:[%s15 + $0x44] sm:$0xf]
          %v2772 = vld [vmem:[%s15 + $0x48] sm:$0xf]
          %v2773 = vld [vmem:[%s15 + $0x4c] sm:$0xf]
          %v2774 = vld [vmem:[%s15 + $0x50] sm:$0xf]
          %v2775 = vld [vmem:[%s15 + $0x54] sm:$0xf]
          %v2776 = vld [vmem:[%s15 + $0x58] sm:$0xf]
          %v2777 = vld [vmem:[%s15 + $0x5c] sm:$0xf]
          %v2778 = vld [vmem:[%s15 + $0x60] sm:$0xf]
          %v2779 = vld [vmem:[%s15 + $0x64] sm:$0xf]
          %v2780 = vld [vmem:[%s15 + $0x68] sm:$0xf]
          %v2781 = vld [vmem:[%s15 + $0x6c] sm:$0xf]
          %v2782 = vld [vmem:[%s15 + $0x70] sm:$0xf]
          %v2783 = vld [vmem:[%s15 + $0x74] sm:$0xf]
          %v2784 = vld [vmem:[%s15 + $0x78] sm:$0xf]
          %v2785 = vld [vmem:[%s15 + $0x7c] sm:$0xf]
          %v2786 = vld [vmem:[%s15 + $0x80] sm:$0xf]
          %v2787 = vld [vmem:[%s15 + $0x84] sm:$0xf]
          %v2788 = vld [vmem:[%s15 + $0x88] sm:$0xf]
          %v2789 = vld [vmem:[%s15 + $0x8c] sm:$0xf]
          %v2790 = vld [vmem:[%s15 + $0x90] sm:$0xf]
          %v2791 = vld [vmem:[%s15 + $0x94] sm:$0xf]
          %v2792 = vld [vmem:[%s15 + $0x98] sm:$0xf]
          %v2793 = vld [vmem:[%s15 + $0x9c] sm:$0xf]
          %v2794 = vld [vmem:[%s15 + $0xa0] sm:$0xf]
          %v2795 = vld [vmem:[%s15 + $0xa4] sm:$0xf]
          %v2796 = vld [vmem:[%s15 + $0xa8] sm:$0xf]
          %v2797 = vld [vmem:[%s15 + $0xac] sm:$0xf]
          %v2798 = vld [vmem:[%s15 + $0xb0] sm:$0xf]
          %v2799 = vld [vmem:[%s15 + $0xb4] sm:$0xf]
          %v2800 = vld [vmem:[%s15 + $0xb8] sm:$0xf]
          %v2801 = vld [vmem:[%s15 + $0xbc] sm:$0xf]
          %v2802 = vld [vmem:[%s15 + $0xc0] sm:$0xf]
          %v2803 = vld [vmem:[%s15 + $0xc4] sm:$0xf]
          %v2804 = vld [vmem:[%s15 + $0xc8] sm:$0xf]
          %v2805 = vld [vmem:[%s15 + $0xcc] sm:$0xf]
          %v2806 = vld [vmem:[%s15 + $0xd0] sm:$0xf]
          %v2807 = vld [vmem:[%s15 + $0xd4] sm:$0xf]
          %v2808 = vld [vmem:[%s15 + $0xd8] sm:$0xf]
          %v2809 = vld [vmem:[%s15 + $0xdc] sm:$0xf]
          %v2810 = vld [vmem:[%s15 + $0xe0] sm:$0xf]
          %v2811 = vld [vmem:[%s15 + $0xe4] sm:$0xf]
          %v2812 = vld [vmem:[%s15 + $0xe8] sm:$0xf]
          %v2813 = vld [vmem:[%s15 + $0xec] sm:$0xf]
          %v2814 = vld [vmem:[%s15 + $0xf0] sm:$0xf]
          %v2815 = vld [vmem:[%s15 + $0xf4] sm:$0xf]
          %v2816 = vld [vmem:[%s15 + $0xf8] sm:$0xf]
          %v2817 = vld [vmem:[%s15 + $0xfc] sm:$0xf]
          %v2818 = vld [vmem:[%s15 + $0x100] sm:$0xf]
          %v2819 = vld [vmem:[%s15 + $0x104] sm:$0xf]
          %v2820 = vld [vmem:[%s15 + $0x108] sm:$0xf]
          %v2821 = vld [vmem:[%s15 + $0x10c] sm:$0xf]
          %v2822 = vld [vmem:[%s15 + $0x110] sm:$0xf]
          %v2823 = vld [vmem:[%s15 + $0x114] sm:$0xf]
          %v2824 = vld [vmem:[%s15 + $0x118] sm:$0xf]
          %v2825 = vld [vmem:[%s15 + $0x11c] sm:$0xf]
          %v2826 = vld [vmem:[%s15 + $0x120] sm:$0xf]
          %v2827 = vld [vmem:[%s15 + $0x124] sm:$0xf]
          %v2828 = vld [vmem:[%s15 + $0x128] sm:$0xf]
          %v2829 = vld [vmem:[%s15 + $0x12c] sm:$0xf]
          %v2830 = vld [vmem:[%s15 + $0x130] sm:$0xf]
          %v2831 = vld [vmem:[%s15 + $0x134] sm:$0xf]
          %v2832 = vld [vmem:[%s15 + $0x138] sm:$0xf]
          %v2833 = vld [vmem:[%s15 + $0x13c] sm:$0xf]
          %v2834 = vld [vmem:[%s15 + $0x140] sm:$0xf]
          %v2835 = vld [vmem:[%s15 + $0x144] sm:$0xf]
          %v2836 = vld [vmem:[%s15 + $0x148] sm:$0xf]
          %v2837 = vld [vmem:[%s15 + $0x14c] sm:$0xf]
          %v2838 = vld [vmem:[%s15 + $0x150] sm:$0xf]
          %v2839 = vld [vmem:[%s15 + $0x154] sm:$0xf]
          %v2840 = vld [vmem:[%s15 + $0x158] sm:$0xf]
          %v2841 = vld [vmem:[%s15 + $0x15c] sm:$0xf]
          %v2842 = vld [vmem:[%s15 + $0x160] sm:$0xf]
          %v2843 = vld [vmem:[%s15 + $0x164] sm:$0xf]
          %v2844 = vld [vmem:[%s15 + $0x168] sm:$0xf]
          %v2845 = vld [vmem:[%s15 + $0x16c] sm:$0xf]
          %v2846 = vld [vmem:[%s15 + $0x170] sm:$0xf]
          %v2847 = vld [vmem:[%s15 + $0x174] sm:$0xf]
          %v2848 = vld [vmem:[%s15 + $0x178] sm:$0xf]
          %v2849 = vld [vmem:[%s15 + $0x17c] sm:$0xf]
          %v2946 = vunpack.c.l.b16 %v2754
          %v2947 = vunpack.c.l.b16 %v2755
          %v2948 = vunpack.c.l.b16 %v2756
          %v2949 = vunpack.c.l.b16 %v2757
          %v2950 = vunpack.c.l.b16 %v2758
          %v2951 = vunpack.c.l.b16 %v2759
          %v2952 = vunpack.c.l.b16 %v2760
          %v2953 = vunpack.c.l.b16 %v2761
          %v2954 = vunpack.c.l.b16 %v2762
          %v2955 = vunpack.c.l.b16 %v2763
          %v2956 = vunpack.c.l.b16 %v2764
          %v2957 = vunpack.c.l.b16 %v2765
          %v2958 = vunpack.c.l.b16 %v2766
          %v2959 = vunpack.c.l.b16 %v2767
          %v2960 = vunpack.c.l.b16 %v2768
          %v2961 = vunpack.c.l.b16 %v2769
          %v2962 = vunpack.c.l.b16 %v2770
          %v2963 = vunpack.c.l.b16 %v2771
          %v2964 = vunpack.c.l.b16 %v2772
          %v2965 = vunpack.c.l.b16 %v2773
          %v2966 = vunpack.c.l.b16 %v2774
          %v2967 = vunpack.c.l.b16 %v2775
          %v2968 = vunpack.c.l.b16 %v2776
          %v2969 = vunpack.c.l.b16 %v2777
          %v2970 = vunpack.c.l.b16 %v2778
          %v2971 = vunpack.c.l.b16 %v2779
          %v2972 = vunpack.c.l.b16 %v2780
          %v2973 = vunpack.c.l.b16 %v2781
          %v2974 = vunpack.c.l.b16 %v2782
          %v2975 = vunpack.c.l.b16 %v2783
          %v2976 = vunpack.c.l.b16 %v2784
          %v2977 = vunpack.c.l.b16 %v2785
          %v2978 = vunpack.c.l.b16 %v2786
          %v2979 = vunpack.c.l.b16 %v2787
          %v2980 = vunpack.c.l.b16 %v2788
          %v2981 = vunpack.c.l.b16 %v2789
          %v2982 = vunpack.c.l.b16 %v2790
          %v2983 = vunpack.c.l.b16 %v2791
          %v2984 = vunpack.c.l.b16 %v2792
          %v2985 = vunpack.c.l.b16 %v2793
          %v2986 = vunpack.c.l.b16 %v2794
          %v2987 = vunpack.c.l.b16 %v2795
          %v2988 = vunpack.c.l.b16 %v2796
          %v2989 = vunpack.c.l.b16 %v2797
          %v2990 = vunpack.c.l.b16 %v2798
          %v2991 = vunpack.c.l.b16 %v2799
          %v2992 = vunpack.c.l.b16 %v2800
          %v2993 = vunpack.c.l.b16 %v2801
          %v2994 = vunpack.c.l.b16 %v2802
          %v2995 = vunpack.c.l.b16 %v2803
          %v2996 = vunpack.c.l.b16 %v2804
          %v2997 = vunpack.c.l.b16 %v2805
          %v2998 = vunpack.c.l.b16 %v2806
          %v2999 = vunpack.c.l.b16 %v2807
          %v3000 = vunpack.c.l.b16 %v2808
          %v3001 = vunpack.c.l.b16 %v2809
          %v3002 = vunpack.c.l.b16 %v2810
          %v3003 = vunpack.c.l.b16 %v2811
          %v3004 = vunpack.c.l.b16 %v2812
          %v3005 = vunpack.c.l.b16 %v2813
          %v3006 = vunpack.c.l.b16 %v2814
          %v3007 = vunpack.c.l.b16 %v2815
          %v3008 = vunpack.c.l.b16 %v2816
          %v3009 = vunpack.c.l.b16 %v2817
          %v3010 = vunpack.c.l.b16 %v2818
          %v3011 = vunpack.c.l.b16 %v2819
          %v3012 = vunpack.c.l.b16 %v2820
          %v3013 = vunpack.c.l.b16 %v2821
          %v3014 = vunpack.c.l.b16 %v2822
          %v3015 = vunpack.c.l.b16 %v2823
          %v3016 = vunpack.c.l.b16 %v2824
          %v3017 = vunpack.c.l.b16 %v2825
          %v3018 = vunpack.c.l.b16 %v2826
          %v3019 = vunpack.c.l.b16 %v2827
          %v3020 = vunpack.c.l.b16 %v2828
          %v3021 = vunpack.c.l.b16 %v2829
          %v3022 = vunpack.c.l.b16 %v2830
          %v3023 = vunpack.c.l.b16 %v2831
          %v3024 = vunpack.c.l.b16 %v2832
          %v3025 = vunpack.c.l.b16 %v2833
          %v3026 = vunpack.c.l.b16 %v2834
          %v3027 = vunpack.c.l.b16 %v2835
          %v3028 = vunpack.c.l.b16 %v2836
          %v3029 = vunpack.c.l.b16 %v2837
          %v3030 = vunpack.c.l.b16 %v2838
          %v3031 = vunpack.c.l.b16 %v2839
          %v3032 = vunpack.c.l.b16 %v2840
          %v3033 = vunpack.c.l.b16 %v2841
          %v3034 = vunpack.c.l.b16 %v2842
          %v3035 = vunpack.c.l.b16 %v2843
          %v3036 = vunpack.c.l.b16 %v2844
          %v3037 = vunpack.c.l.b16 %v2845
          %v3038 = vunpack.c.l.b16 %v2846
          %v3039 = vunpack.c.l.b16 %v2847
          %v3040 = vunpack.c.l.b16 %v2848
          %v3041 = vunpack.c.l.b16 %v2849
          %v3042 = vpack.c.b16 %v2947, %v2946
          %v3043 = vpack.c.b16 %v2949, %v2948
          %v3044 = vpack.c.b16 %v2951, %v2950
          %v3045 = vpack.c.b16 %v2953, %v2952
          %v3046 = vpack.c.b16 %v2955, %v2954
          %v3047 = vpack.c.b16 %v2957, %v2956
          %v3048 = vpack.c.b16 %v2959, %v2958
          %v3049 = vpack.c.b16 %v2961, %v2960
          %v3050 = vpack.c.b16 %v2963, %v2962
          %v3051 = vpack.c.b16 %v2965, %v2964
          %v3052 = vpack.c.b16 %v2967, %v2966
          %v3053 = vpack.c.b16 %v2969, %v2968
          %v3054 = vpack.c.b16 %v2971, %v2970
          %v3055 = vpack.c.b16 %v2973, %v2972
          %v3056 = vpack.c.b16 %v2975, %v2974
          %v3057 = vpack.c.b16 %v2977, %v2976
          %v3058 = vpack.c.b16 %v2979, %v2978
          %v3059 = vpack.c.b16 %v2981, %v2980
          %v3060 = vpack.c.b16 %v2983, %v2982
          %v3061 = vpack.c.b16 %v2985, %v2984
          %v3062 = vpack.c.b16 %v2987, %v2986
          %v3063 = vpack.c.b16 %v2989, %v2988
          %v3064 = vpack.c.b16 %v2991, %v2990
          %v3065 = vpack.c.b16 %v2993, %v2992
          %v3066 = vpack.c.b16 %v2995, %v2994
          %v3067 = vpack.c.b16 %v2997, %v2996
          %v3068 = vpack.c.b16 %v2999, %v2998
          %v3069 = vpack.c.b16 %v3001, %v3000
          %v3070 = vpack.c.b16 %v3003, %v3002
          %v3071 = vpack.c.b16 %v3005, %v3004
          %v3072 = vpack.c.b16 %v3007, %v3006
          %v3073 = vpack.c.b16 %v3009, %v3008
          %v3074 = vpack.c.b16 %v3011, %v3010
          %v3075 = vpack.c.b16 %v3013, %v3012
          %v3076 = vpack.c.b16 %v3015, %v3014
          %v3077 = vpack.c.b16 %v3017, %v3016
          %v3078 = vpack.c.b16 %v3019, %v3018
          %v3079 = vpack.c.b16 %v3021, %v3020
          %v3080 = vpack.c.b16 %v3023, %v3022
          %v3081 = vpack.c.b16 %v3025, %v3024
          %v3082 = vpack.c.b16 %v3027, %v3026
          %v3083 = vpack.c.b16 %v3029, %v3028
          %v3084 = vpack.c.b16 %v3031, %v3030
          %v3085 = vpack.c.b16 %v3033, %v3032
          %v3086 = vpack.c.b16 %v3035, %v3034
          %v3087 = vpack.c.b16 %v3037, %v3036
          %v3088 = vpack.c.b16 %v3039, %v3038
          %v3089 = vpack.c.b16 %v3041, %v3040
          %3138 = vmatprep.subr.bf16.mxu0 0
          %3139 = vmatpush1.bf16.msra.mxu0 %v3049
          %3140 = vmatprep.subr.bf16.mxu0 0
          %3141 = vmatpush1.bf16.msra.mxu0 %v3048
          %3142 = vmatprep.subr.bf16.mxu0 0
          %3143 = vmatpush1.bf16.msra.mxu0 %v3047
          %3144 = vmatprep.subr.bf16.mxu0 0
          %3145 = vmatpush1.bf16.msra.mxu0 %v3046
          %3146 = vmatprep.subr.bf16.mxu0 0
          %3147 = vmatpush1.bf16.msra.mxu0 %v3045
          %3148 = vmatprep.subr.bf16.mxu0 0
          %3149 = vmatpush1.bf16.msra.mxu0 %v3044
          %3150 = vmatprep.subr.bf16.mxu0 0
          %3151 = vmatpush1.bf16.msra.mxu0 %v3043
          %3152 = vmatprep.subr.bf16.mxu0 0
          %3153 = vmatpush1.bf16.msra.mxu0 %v3042
          %3154 = vmatprep.subr.bf16.mxu0 0
          %3155 = vmatpush2.bf16.msra.mxu0 %v3057
          %3156 = vmatprep.subr.bf16.mxu0 0
          %3157 = vmatpush2.bf16.msra.mxu0 %v3056
          %3158 = vmatprep.subr.bf16.mxu0 0
          %3159 = vmatpush2.bf16.msra.mxu0 %v3055
          %3160 = vmatprep.subr.bf16.mxu0 0
          %3161 = vmatpush2.bf16.msra.mxu0 %v3054
          %3162 = vmatprep.subr.bf16.mxu0 0
          %3163 = vmatpush2.bf16.msra.mxu0 %v3053
          %3164 = vmatprep.subr.bf16.mxu0 0
          %3165 = vmatpush2.bf16.msra.mxu0 %v3052
          %3166 = vmatprep.subr.bf16.mxu0 0
          %3167 = vmatpush2.bf16.msra.mxu0 %v3051
          %3168 = vmatprep.subr.bf16.mxu0 0
          %3169 = vmatpush2.bf16.msra.mxu0 %v3050
          %3170 = vmatprep.mubr.bf16.mxu0 %v2749
          %3171 = vmatmul.mubr.bf16.gmra.mxu0 %v2748
          %v3172 = vpop.f32.mrf.mxu0
          %v3173 = vadd.f32 0.0, %v3172
          %v3174 = vpop.f32.mrf.mxu0
          %v3175 = vpop.f32.mrf.mxu0
          %v3176 = vpop.f32.mrf.mxu0
          %3177 = vdwg.mxu0
          %3178 = vmatprep.subr.bf16.mxu0 0
          %3179 = vmatpush1.bf16.msra.mxu0 %v3065
          %3180 = vmatprep.subr.bf16.mxu0 0
          %3181 = vmatpush1.bf16.msra.mxu0 %v3064
          %3182 = vmatprep.subr.bf16.mxu0 0
          %3183 = vmatpush1.bf16.msra.mxu0 %v3063
          %3184 = vmatprep.subr.bf16.mxu0 0
          %3185 = vmatpush1.bf16.msra.mxu0 %v3062
          %3186 = vmatprep.subr.bf16.mxu0 0
          %3187 = vmatpush1.bf16.msra.mxu0 %v3061
          %3188 = vmatprep.subr.bf16.mxu0 0
          %3189 = vmatpush1.bf16.msra.mxu0 %v3060
          %3190 = vmatprep.subr.bf16.mxu0 0
          %3191 = vmatpush1.bf16.msra.mxu0 %v3059
          %3192 = vmatprep.subr.bf16.mxu0 0
          %3193 = vmatpush1.bf16.msra.mxu0 %v3058
          %3194 = vmatprep.subr.bf16.mxu0 0
          %3195 = vmatpush2.bf16.msra.mxu0 %v3073
          %3196 = vmatprep.subr.bf16.mxu0 0
          %3197 = vmatpush2.bf16.msra.mxu0 %v3072
          %3198 = vmatprep.subr.bf16.mxu0 0
          %3199 = vmatpush2.bf16.msra.mxu0 %v3071
          %3200 = vmatprep.subr.bf16.mxu0 0
          %3201 = vmatpush2.bf16.msra.mxu0 %v3070
          %3202 = vmatprep.subr.bf16.mxu0 0
          %3203 = vmatpush2.bf16.msra.mxu0 %v3069
          %3204 = vmatprep.subr.bf16.mxu0 0
          %3205 = vmatpush2.bf16.msra.mxu0 %v3068
          %3206 = vmatprep.subr.bf16.mxu0 0
          %3207 = vmatpush2.bf16.msra.mxu0 %v3067
          %3208 = vmatprep.subr.bf16.mxu0 0
          %3209 = vmatpush2.bf16.msra.mxu0 %v3066
          %3210 = vmatprep.mubr.bf16.mxu0 %v2751
          %3211 = vmatmul.mubr.bf16.gmra.mxu0 %v2750
          %v3212 = vpop.f32.mrf.mxu0
          %v3213 = vadd.f32 %v3173, %v3212
          %v3214 = vpop.f32.mrf.mxu0
          %v3215 = vpop.f32.mrf.mxu0
          %v3216 = vpop.f32.mrf.mxu0
          %3217 = vdwg.mxu0
          %3218 = vmatprep.subr.bf16.mxu0 0
          %3219 = vmatpush1.bf16.msra.mxu0 %v3081
          %3220 = vmatprep.subr.bf16.mxu0 0
          %3221 = vmatpush1.bf16.msra.mxu0 %v3080
          %3222 = vmatprep.subr.bf16.mxu0 0
          %3223 = vmatpush1.bf16.msra.mxu0 %v3079
          %3224 = vmatprep.subr.bf16.mxu0 0
          %3225 = vmatpush1.bf16.msra.mxu0 %v3078
          %3226 = vmatprep.subr.bf16.mxu0 0
          %3227 = vmatpush1.bf16.msra.mxu0 %v3077
          %3228 = vmatprep.subr.bf16.mxu0 0
          %3229 = vmatpush1.bf16.msra.mxu0 %v3076
          %3230 = vmatprep.subr.bf16.mxu0 0
          %3231 = vmatpush1.bf16.msra.mxu0 %v3075
          %3232 = vmatprep.subr.bf16.mxu0 0
          %3233 = vmatpush1.bf16.msra.mxu0 %v3074
          %3234 = vmatprep.subr.bf16.mxu0 0
          %3235 = vmatpush2.bf16.msra.mxu0 %v3089
          %3236 = vmatprep.subr.bf16.mxu0 0
          %3237 = vmatpush2.bf16.msra.mxu0 %v3088
          %3238 = vmatprep.subr.bf16.mxu0 0
          %3239 = vmatpush2.bf16.msra.mxu0 %v3087
          %3240 = vmatprep.subr.bf16.mxu0 0
          %3241 = vmatpush2.bf16.msra.mxu0 %v3086
          %3242 = vmatprep.subr.bf16.mxu0 0
          %3243 = vmatpush2.bf16.msra.mxu0 %v3085
          %3244 = vmatprep.subr.bf16.mxu0 0
          %3245 = vmatpush2.bf16.msra.mxu0 %v3084
          %3246 = vmatprep.subr.bf16.mxu0 0
          %3247 = vmatpush2.bf16.msra.mxu0 %v3083
          %3248 = vmatprep.subr.bf16.mxu0 0
          %3249 = vmatpush2.bf16.msra.mxu0 %v3082
          %3250 = vmatprep.mubr.bf16.mxu0 %v2753
          %3251 = vmatmul.mubr.bf16.gmra.mxu0 %v2752
          %v3252 = vpop.f32.mrf.mxu0
          %v3253 = vadd.f32 %v3213, %v3252
          %v3254 = vpop.f32.mrf.mxu0
          %v3255 = vpop.f32.mrf.mxu0
          %v3256 = vpop.f32.mrf.mxu0
          %3257 = vdwg.mxu0
          %vm3258 = vcmask 49152
          %3259 = vst.msk [vmem:[%s669] sm:$0x1] %vm3258, %v3253
        $region112: #{pointnet_forward.1} parent=83 // pred_fallthru
          _
        %s3260 = sand.u32 %s402, 1
        %s3261 = scalar_lea.sflag [#allocation5], %s3260
        %s3262 = sand.u32 %s402, 1
        %s3263 = scalar_lea.vmem [#allocation12], %s3262
        %s3264 = sand.u32 %s428, 1
        %s3265 = scalar_lea.sflag [#allocation14], %s3264
        %s3266 = sand.u32 %s428, 1
        %s3267 = scalar_lea.vmem [#allocation13], %s3266
        %s3268 = smul.u32 2, %s44
        %p3269 = scmp.lt.s32.totalorder %s43, 1
        %s3270 = scalar_select %p3269, %s43, 1
        %p3271 = scmp.lt.s32.totalorder %s3268, 3
        %s3272 = scalar_select %p3271, %s3268, 3
        %s3273 = smul.addr %s3272, 4
        %s3274 = smul.addr %s3270, 16
        %s3275 = sadd.s32 %s3273, %s3274
        %s3276 = smul.addr %s3275, 8
        %s3277 = scalar_lea.vmem %s18, %s3276
        // Predicated region
        $region113: #{pointnet_forward.1} parent=83 // pred_check
          %p3278 = pneg %p412
        $region114: #{pointnet_forward.1} parent=83 // pred_check_branch
          %3280 = sbr.rel (%p3278) target = $region116
        $region115: #{pointnet_forward.1} parent=83 // pred_region
          %s3282 = ssub.s32 16, 16
          %3283 = vsyncadd %s3261, %s3282
          %s3284 = smul.addr %s43, 16
          %s3285 = scalar_lea.hbm %s16, %s3284
          %s3287 = sshll.u32 %s3263, 4
          %s3288 = int_to_ptr.vmem [resolvable:$true] %s3287
          %3290 = dma.vmem_to_hbm [thread:$0]  %s3288, 16, %s3285, %s3261
        $region116: #{pointnet_forward.1} parent=83 // pred_fallthru
          _
        // Predicated region
        $region117: #{pointnet_forward.1} parent=83 // pred_check
          %p3291 = pneg %p438
        $region118: #{pointnet_forward.1} parent=83 // pred_check_branch
          %3293 = sbr.rel (%p3291) target = $region120
        $region119: #{pointnet_forward.1} parent=83 // pred_region
          %s3295 = ssub.s32 16, 16
          %3296 = vsyncadd %s3265, %s3295
          %s3297 = smul.addr %s43, 16
          %s3298 = scalar_lea.hbm %s17, %s3297
          %s3300 = sshll.u32 %s3267, 4
          %s3301 = int_to_ptr.vmem [resolvable:$true] %s3300
          %3303 = dma.vmem_to_hbm [thread:$0]  %s3301, 16, %s3298, %s3265
        $region120: #{pointnet_forward.1} parent=83 // pred_fallthru
          _
        // Predicated region
        $region121: #{pointnet_forward.1} parent=83 // pred_check
          %p3304 = pneg %p466
        $region122: #{pointnet_forward.1} parent=83 // pred_check_branch
          %3306 = sbr.rel (%p3304) target = $region124
        $region123: #{pointnet_forward.1} parent=83 // pred_region
          %s3307 = smul.u32 2, %s44
        $region124: #{pointnet_forward.1} parent=83 // pred_fallthru
          _
      $region84: #{pointnet_forward.1} parent=5 // pred_fallthru
        _
      %p3308 = scmp.le.s32.totalorder 2, %s34
      // Predicated region
      $region125: #{pointnet_forward.1} parent=5 // pred_check
        %p3309 = pneg %p3308
      $region126: #{pointnet_forward.1} parent=5 // pred_check_branch
        %3311 = sbr.rel (%p3309) target = $region128
      $region127: #{pointnet_forward.1} parent=5 // pred_region
        %s3312 = ssub.s32 %s34, 2
        // Predicated region
        $region129: #{pointnet_forward.1} parent=127 // pred_check
          %p3313 = pneg %p418
        $region130: #{pointnet_forward.1} parent=127 // pred_check_branch
          %3315 = sbr.rel (%p3313) target = $region132
        $region131: #{pointnet_forward.1} parent=127 // pred_region
          %s3316 = sand.u32 %s403, 1
          %s3317 = scalar_lea.sflag [#allocation5], %s3316
          %s3318 = sand.u32 %s403, 1
          %s3319 = scalar_lea.vmem [#allocation12], %s3318
          %3320 = dma.done %s3317, 16
        $region132: #{pointnet_forward.1} parent=127 // pred_fallthru
          _
        // Predicated region
        $region133: #{pointnet_forward.1} parent=127 // pred_check
          %p3321 = pneg %p444
        $region134: #{pointnet_forward.1} parent=127 // pred_check_branch
          %3323 = sbr.rel (%p3321) target = $region136
        $region135: #{pointnet_forward.1} parent=127 // pred_region
          %s3324 = sand.u32 %s429, 1
          %s3325 = scalar_lea.sflag [#allocation14], %s3324
          %s3326 = sand.u32 %s429, 1
          %s3327 = scalar_lea.vmem [#allocation13], %s3326
          %3328 = dma.done %s3325, 16
        $region136: #{pointnet_forward.1} parent=127 // pred_fallthru
          _
        // Predicated region
        $region137: #{pointnet_forward.1} parent=127 // pred_check
          %p3329 = pneg %p472
        $region138: #{pointnet_forward.1} parent=127 // pred_check_branch
          %3331 = sbr.rel (%p3329) target = $region140
        $region139: #{pointnet_forward.1} parent=127 // pred_region
          %s3332 = smul.u32 2, %s46
          %p3333 = scmp.lt.s32.totalorder %s45, 1
          %s3334 = scalar_select %p3333, %s45, 1
          %p3335 = scmp.lt.s32.totalorder %s3332, 3
          %s3336 = scalar_select %p3335, %s3332, 3
          %s3337 = smul.addr %s3336, 4
          %s3338 = smul.addr %s3334, 16
          %s3339 = sadd.s32 %s3337, %s3338
          %s3340 = smul.addr %s3339, 8
          %s3341 = scalar_lea.vmem %s18, %s3340
        $region140: #{pointnet_forward.1} parent=127 // pred_fallthru
          _
      $region128: #{pointnet_forward.1} parent=5 // pred_fallthru
        _
    $region6: #{pointnet_forward.1} parent=1 // loop_footer
      %s38 = sadd.s32 1, %s34
    $region7: #{pointnet_forward.1} parent=1 // loop_footer_branch
      %33 = sbr.rel target = $region3
    $region8: #{pointnet_forward.1} parent=1 // loop_exit
      _
    %3342 = vsyncpa [#allocation4], 1
    %s3343 = scalar_lea.sflag [#allocation4], 1
    %3344 = vsyncpa %s3343, 1
    %3345 = vsyncpa [#allocation7], 1
    %3346 = vsyncpa [#allocation10], 1
    %3347 = vsyncpa [#allocation5], 1
    %s3348 = scalar_lea.sflag [#allocation5], 1
    %3349 = vsyncpa %s3348, 1
    %3350 = vsyncpa [#allocation14], 1
    %s3351 = scalar_lea.sflag [#allocation14], 1
    %3352 = vsyncpa %s3351, 1

</llo_original>
